<compile_context>
chip_gen: v7x
topology: tpu7x:2x2x1
jax: 0.10.0
libtpu: 0.0.40
codegen_flags: <defaults>
</compile_context>

<pallas_src>
import functools

import jax
import jax.numpy as jnp
from jax.experimental import pallas as pl
from jax.experimental.pallas import tpu as pltpu

# ----------------------------- model hyper-params -----------------------------
BATCH = 8             # number of graphs
GRAPHS_PER_BLOCK = 4  # graphs processed per grid step (grid = BATCH // 4 = 2)
N_NODES = 128         # nodes per graph (multiple of 8 sublanes)
HIDDEN = 32           # params.hidden_dim (== node feature dim for the encoder)
OUT_FEATURES = 8      # params.out_features
NUM_GNN_LAYERS = 3    # depth of GNNEncoder
LANE = 128            # TPU lane width
# params.class_of_activation() assumed to be torch.nn.ReLU


def _round_up(x, m):
    return ((x + m - 1) // m) * m


def _pad_axis(a, axis, target):
    if a.shape[axis] >= target:
        return a
    pad = [(0, 0)] * a.ndim
    pad[axis] = (0, target - a.shape[axis])
    return jnp.pad(a, pad)


# --------------------------------- kernel -------------------------------------
def gnn_classifier_kernel(num_layers, num_classes,
                          x_ref, a_ref, wg_ref, bg_ref,
                          w1_ref, b1_ref, w2_ref, b2_ref,
                          out_ref):
    # One grid step == G graphs.  Feature dims are padded to 128 lanes, MXU
    # operands are bf16 (pre-cast in the wrapper), accumulation is f32.
    g, n, hp = x_ref.shape
    cp = out_ref.shape[2]

    a = a_ref[...]                       # [G, N, N]   bf16
    h = x_ref[...]                       # [G, N, HP]  bf16

    # ---- GNNEncoder: L GCN layers, relu(A @ H @ W + b) ----
    for l in range(num_layers):
        # Per-graph aggregation A_g @ H_g, batched over the G graphs (f32 acc).
        agg = jnp.einsum('gij,gjh->gih', a, h,
                         preferred_element_type=jnp.float32)          # [G,N,HP]
        # ONE stacked [G*N, HP] x [HP, HP] matmul for the shared GCN weight.
        hs = jnp.dot(agg.reshape(g * n, hp).astype(jnp.bfloat16), wg_ref[l],
                     preferred_element_type=jnp.float32)              # [G*N,HP]
        hs = jnp.maximum(hs + bg_ref[l], 0.0)                         # f32 bias + ReLU
        h = hs.astype(jnp.bfloat16).reshape(g, n, hp)                 # next layer's H

    h_stacked = h.reshape(g * n, hp)                                  # [G*N, HP] bf16

    # ---- Linear(hidden, hidden) + ReLU (stacked over all graphs) ----
    z = jnp.dot(h_stacked, w1_ref[...],
                preferred_element_type=jnp.float32) + b1_ref[...]
    z = jnp.maximum(z, 0.0)

    # ---- Linear(hidden, out_features) ----
    logits = jnp.dot(z.astype(jnp.bfloat16), w2_ref[...],
                     preferred_element_type=jnp.float32) + b2_ref[...]  # [G*N, CP]

    # Mask padded class columns so they cannot affect the log-softmax.
    col = jax.lax.broadcasted_iota(jnp.int32, logits.shape, 1)
    logits = jnp.where(col < num_classes, logits, -1e30)

    # ---- LogSoftmax(dim=1) in f32 over the stacked slab ----
    m = jnp.max(logits, axis=1, keepdims=True)
    shifted = logits - m
    lse = jnp.log(jnp.sum(jnp.exp(shifted), axis=1, keepdims=True))
    out_ref[...] = (shifted - lse).reshape(g, n, cp).astype(out_ref.dtype)


# -------------------------------- wrapper --------------------------------------
def gnn_node_classifier(x, a_norm, params, *, num_classes=OUT_FEATURES,
                        graphs_per_block=GRAPHS_PER_BLOCK):
    """x: [B, N, H] f32, a_norm: [B, N, N] f32, params unpadded f32."""
    wg, bg, w1, b1, w2, b2 = params
    batch, n, hidden = x.shape
    num_layers = wg.shape[0]
    hp = _round_up(hidden, LANE)         # lane-dense hidden width
    cp = _round_up(w2.shape[1], LANE)    # lane-dense class width

    # Largest block size that evenly divides the batch (== 4 for batch == 8).
    g = min(graphs_per_block, batch)
    while batch % g:
        g -= 1
    num_blocks = batch // g

    # ---- layout glue (plain JAX): pad feature dims to 128 lanes, cast MXU
    #      operands to bf16; biases stay f32. Zero padding is exact in bf16. ----
    x_p = _pad_axis(x, 2, hp).astype(jnp.bfloat16)
    a_bf = a_norm.astype(jnp.bfloat16)
    wg_p = _pad_axis(_pad_axis(wg, 1, hp), 2, hp).astype(jnp.bfloat16)
    bg_p = _pad_axis(bg, 2, hp)
    w1_p = _pad_axis(_pad_axis(w1, 0, hp), 1, hp).astype(jnp.bfloat16)
    b1_p = _pad_axis(b1, 1, hp)
    w2_p = _pad_axis(_pad_axis(w2, 0, hp), 1, cp).astype(jnp.bfloat16)
    b2_p = _pad_axis(b2, 1, cp)

    # Advisory cost estimate so XLA can overlap this small call.
    flops = batch * (num_layers * (2 * n * n * hp + 2 * n * hp * hp)
                     + 2 * n * hp * hp + 2 * n * hp * cp)
    bytes_accessed = (x_p.size * 2 + a_bf.size * 2
                      + wg_p.size * 2 + bg_p.size * 4
                      + w1_p.size * 2 + b1_p.size * 4
                      + w2_p.size * 2 + b2_p.size * 4
                      + batch * n * cp * 4)
    cost = pl.CostEstimate(flops=flops,
                           transcendentals=batch * n * (cp + 1),
                           bytes_accessed=bytes_accessed)

    out_padded = pl.pallas_call(
        functools.partial(gnn_classifier_kernel, num_layers, num_classes),
        out_shape=jax.ShapeDtypeStruct((batch, n, cp), jnp.float32),
        grid=(num_blocks,),
        in_specs=[
            pl.BlockSpec((g, n, hp), lambda b: (b, 0, 0)),               # x (bf16)
            pl.BlockSpec((g, n, n), lambda b: (b, 0, 0)),                # A_norm (bf16)
            pl.BlockSpec((num_layers, hp, hp), lambda b: (0, 0, 0)),     # GNN weights
            pl.BlockSpec((num_layers, 1, hp), lambda b: (0, 0, 0)),      # GNN biases
            pl.BlockSpec((hp, hp), lambda b: (0, 0)),                    # head W1
            pl.BlockSpec((1, hp), lambda b: (0, 0)),                     # head b1
            pl.BlockSpec((hp, cp), lambda b: (0, 0)),                    # head W2
            pl.BlockSpec((1, cp), lambda b: (0, 0)),                     # head b2
        ],
        out_specs=pl.BlockSpec((g, n, cp), lambda b: (b, 0, 0)),
        compiler_params=pltpu.CompilerParams(
            dimension_semantics=("parallel",)),
        cost_estimate=cost,
    )(x_p, a_bf, wg_p, bg_p, w1_p, b1_p, w2_p, b2_p)

    # Drop padded class columns (pure layout glue).
    return out_padded[:, :, :num_classes]


# --------------------------- deterministic setup --------------------------------
def make_params(key):
    ks = jax.random.split(key, 6)
    wg = 0.3 * jax.random.normal(ks[0], (NUM_GNN_LAYERS, HIDDEN, HIDDEN), jnp.float32)
    bg = 0.1 * jax.random.normal(ks[1], (NUM_GNN_LAYERS, 1, HIDDEN), jnp.float32)
    w1 = 0.3 * jax.random.normal(ks[2], (HIDDEN, HIDDEN), jnp.float32)
    b1 = 0.1 * jax.random.normal(ks[3], (1, HIDDEN), jnp.float32)
    w2 = 0.3 * jax.random.normal(ks[4], (HIDDEN, OUT_FEATURES), jnp.float32)
    b2 = 0.1 * jax.random.normal(ks[5], (1, OUT_FEATURES), jnp.float32)
    return wg, bg, w1, b1, w2, b2


def make_graph_batch(key, batch):
    kx, ka = jax.random.split(key)
    # Node features
    x = jax.random.normal(kx, (batch, N_NODES, HIDDEN), jnp.float32)
    # Random sparse symmetric adjacency + self loops, D^-1/2 (A+I) D^-1/2 (glue, plain JAX).
    raw = jax.random.uniform(ka, (batch, N_NODES, N_NODES))
    adj = (raw < 0.03).astype(jnp.float32)
    adj = jnp.maximum(adj, jnp.transpose(adj, (0, 2, 1)))
    adj = jnp.maximum(adj, jnp.eye(N_NODES, dtype=jnp.float32)[None])
    deg = jnp.sum(adj, axis=-1)
    d_inv_sqrt = 1.0 / jnp.sqrt(deg)
    a_norm = adj * d_inv_sqrt[:, :, None] * d_inv_sqrt[:, None, :]
    return x, a_norm


# --------------------------- pure-JAX reference ----------------------------------
def reference_forward(x, a_norm, params):
    # Mirrors the kernel's bf16-matmul-operand / f32-accumulate numerics.
    wg, bg, w1, b1, w2, b2 = params
    bf = jnp.bfloat16
    a = a_norm.astype(bf)
    h = x
    for l in range(wg.shape[0]):
        agg = jnp.einsum("bij,bjh->bih", a, h.astype(bf),
                         preferred_element_type=jnp.float32)
        h = jnp.maximum(
            jnp.einsum("bih,hk->bik", agg.astype(bf), wg[l].astype(bf),
                       preferred_element_type=jnp.float32) + bg[l], 0.0)
    z = jnp.maximum(
        jnp.einsum("bih,hk->bik", h.astype(bf), w1.astype(bf),
                   preferred_element_type=jnp.float32) + b1, 0.0)
    logits = jnp.einsum("bih,hc->bic", z.astype(bf), w2.astype(bf),
                        preferred_element_type=jnp.float32) + b2
    return jax.nn.log_softmax(logits, axis=-1)


if __name__ == "__main__":
    key = jax.random.PRNGKey(0)
    k_g, k_p = jax.random.split(key)
    x, a_norm = make_graph_batch(k_g, BATCH)
    params = make_params(k_p)

    out = gnn_node_classifier(x, a_norm, params, num_classes=OUT_FEATURES)
    out = jax.block_until_ready(out)

    ref = reference_forward(x, a_norm, params)
    assert out.shape == (BATCH, N_NODES, OUT_FEATURES)
    assert jnp.allclose(out, ref, atol=2e-3, rtol=2e-3), "mismatch vs reference"
    # log-softmax rows must exponentiate-sum to 1
    assert jnp.allclose(jnp.sum(jnp.exp(out), axis=-1), 1.0, atol=1e-4)

    print("KERNEL_OK")
</pallas_src>

<mosaic_0001>
module attributes {stable_mosaic.version = 11 : i64} {
  func.func @gnn_classifier_kernel(%arg0: i32, %arg1: memref<4x128x128xbf16, #tpu.memory_space<vmem>>, %arg2: memref<4x128x128xbf16, #tpu.memory_space<vmem>>, %arg3: memref<3x128x128xbf16, #tpu.memory_space<vmem>>, %arg4: memref<3x1x128xf32, #tpu.memory_space<vmem>>, %arg5: memref<128x128xbf16, #tpu.memory_space<vmem>>, %arg6: memref<1x128xf32, #tpu.memory_space<vmem>>, %arg7: memref<128x128xbf16, #tpu.memory_space<vmem>>, %arg8: memref<1x128xf32, #tpu.memory_space<vmem>>, %arg9: memref<4x128x128xf32, #tpu.memory_space<vmem>>) attributes {dimension_semantics = [#tpu.dimension_semantics<parallel>], iteration_bounds = array<i64: 2>, scalar_prefetch = 0 : i64, scratch_operands = 0 : i64, tpu.core_type = #tpu.core_type<tc>, window_params = [{transform_indices = @transform_0, window_bounds = array<i64: 4, 128, 128>}, {transform_indices = @transform_1, window_bounds = array<i64: 4, 128, 128>}, {pipeline_mode = #tpu.pipeline_mode<synchronous>, transform_indices = @transform_2, window_bounds = array<i64: 3, 128, 128>}, {pipeline_mode = #tpu.pipeline_mode<synchronous>, transform_indices = @transform_3, window_bounds = array<i64: 3, 1, 128>}, {pipeline_mode = #tpu.pipeline_mode<synchronous>, transform_indices = @transform_4, window_bounds = array<i64: 128, 128>}, {pipeline_mode = #tpu.pipeline_mode<synchronous>, transform_indices = @transform_5, window_bounds = array<i64: 1, 128>}, {pipeline_mode = #tpu.pipeline_mode<synchronous>, transform_indices = @transform_6, window_bounds = array<i64: 128, 128>}, {pipeline_mode = #tpu.pipeline_mode<synchronous>, transform_indices = @transform_7, window_bounds = array<i64: 1, 128>}, {transform_indices = @transform_8, window_bounds = array<i64: 4, 128, 128>}]} {
    %c0 = arith.constant 0 : index
    %c0_0 = arith.constant 0 : index
    %c0_1 = arith.constant 0 : index
    %0 = vector.load %arg2[%c0, %c0_0, %c0_1] : memref<4x128x128xbf16, #tpu.memory_space<vmem>>, vector<4x128x128xbf16>
    %c0_2 = arith.constant 0 : index
    %c0_3 = arith.constant 0 : index
    %c0_4 = arith.constant 0 : index
    %1 = vector.load %arg1[%c0_2, %c0_3, %c0_4] : memref<4x128x128xbf16, #tpu.memory_space<vmem>>, vector<4x128x128xbf16>
    "tpu.trace_start"() <{level = 10 : i32, message = "gij,gjh->gih"}> : () -> ()
    %cst = arith.constant dense<0.000000e+00> : vector<4x128x128xf32>
    %2 = tpu.matmul %0, %1, %cst {dimension_numbers = #tpu.dot_dimension_numbers<[2], [1], [1], [2], [0, 0, 0, 1, 1, 2], [0], [0]>} : vector<4x128x128xbf16>, vector<4x128x128xbf16>, vector<4x128x128xf32> -> vector<4x128x128xf32>
    "tpu.trace_stop"() : () -> ()
    %3 = vector.shape_cast %2 : vector<4x128x128xf32> to vector<512x128xf32>
    %4 = arith.truncf %3 : vector<512x128xf32> to vector<512x128xbf16>
    %c0_5 = arith.constant 0 : index
    %c0_6 = arith.constant 0 : index
    %c0_7 = arith.constant 0 : index
    %5 = vector.load %arg3[%c0_5, %c0_6, %c0_7] : memref<3x128x128xbf16, #tpu.memory_space<vmem>>, vector<1x128x128xbf16>
    %6 = vector.shape_cast %5 : vector<1x128x128xbf16> to vector<128x128xbf16>
    %cst_8 = arith.constant dense<0.000000e+00> : vector<512x128xf32>
    %7 = tpu.matmul %4, %6, %cst_8 {dimension_numbers = #tpu.dot_dimension_numbers<[1], [0], [0], [1], [0, 0, 1, 1], [], []>} : vector<512x128xbf16>, vector<128x128xbf16>, vector<512x128xf32> -> vector<512x128xf32>
    %c0_9 = arith.constant 0 : index
    %c0_10 = arith.constant 0 : index
    %c0_11 = arith.constant 0 : index
    %8 = vector.load %arg4[%c0_9, %c0_10, %c0_11] : memref<3x1x128xf32, #tpu.memory_space<vmem>>, vector<1x1x128xf32>
    %9 = vector.shape_cast %8 : vector<1x1x128xf32> to vector<1x128xf32>
    %10 = vector.broadcast %9 : vector<1x128xf32> to vector<512x128xf32>
    %11 = arith.addf %7, %10 : vector<512x128xf32>
    %cst_12 = arith.constant 0.000000e+00 : f32
    %12 = vector.broadcast %cst_12 : f32 to vector<512x128xf32>
    %13 = arith.maximumf %11, %12 : vector<512x128xf32>
    %14 = arith.truncf %13 : vector<512x128xf32> to vector<512x128xbf16>
    %15 = vector.shape_cast %14 : vector<512x128xbf16> to vector<4x128x128xbf16>
    "tpu.trace_start"() <{level = 10 : i32, message = "gij,gjh->gih"}> : () -> ()
    %cst_13 = arith.constant dense<0.000000e+00> : vector<4x128x128xf32>
    %16 = tpu.matmul %0, %15, %cst_13 {dimension_numbers = #tpu.dot_dimension_numbers<[2], [1], [1], [2], [0, 0, 0, 1, 1, 2], [0], [0]>} : vector<4x128x128xbf16>, vector<4x128x128xbf16>, vector<4x128x128xf32> -> vector<4x128x128xf32>
    "tpu.trace_stop"() : () -> ()
    %17 = vector.shape_cast %16 : vector<4x128x128xf32> to vector<512x128xf32>
    %18 = arith.truncf %17 : vector<512x128xf32> to vector<512x128xbf16>
    %c1 = arith.constant 1 : index
    %c0_14 = arith.constant 0 : index
    %c0_15 = arith.constant 0 : index
    %19 = vector.load %arg3[%c1, %c0_14, %c0_15] : memref<3x128x128xbf16, #tpu.memory_space<vmem>>, vector<1x128x128xbf16>
    %20 = vector.shape_cast %19 : vector<1x128x128xbf16> to vector<128x128xbf16>
    %cst_16 = arith.constant dense<0.000000e+00> : vector<512x128xf32>
    %21 = tpu.matmul %18, %20, %cst_16 {dimension_numbers = #tpu.dot_dimension_numbers<[1], [0], [0], [1], [0, 0, 1, 1], [], []>} : vector<512x128xbf16>, vector<128x128xbf16>, vector<512x128xf32> -> vector<512x128xf32>
    %c1_17 = arith.constant 1 : index
    %c0_18 = arith.constant 0 : index
    %c0_19 = arith.constant 0 : index
    %22 = vector.load %arg4[%c1_17, %c0_18, %c0_19] : memref<3x1x128xf32, #tpu.memory_space<vmem>>, vector<1x1x128xf32>
    %23 = vector.shape_cast %22 : vector<1x1x128xf32> to vector<1x128xf32>
    %24 = vector.broadcast %23 : vector<1x128xf32> to vector<512x128xf32>
    %25 = arith.addf %21, %24 : vector<512x128xf32>
    %cst_20 = arith.constant 0.000000e+00 : f32
    %26 = vector.broadcast %cst_20 : f32 to vector<512x128xf32>
    %27 = arith.maximumf %25, %26 : vector<512x128xf32>
    %28 = arith.truncf %27 : vector<512x128xf32> to vector<512x128xbf16>
    %29 = vector.shape_cast %28 : vector<512x128xbf16> to vector<4x128x128xbf16>
    "tpu.trace_start"() <{level = 10 : i32, message = "gij,gjh->gih"}> : () -> ()
    %cst_21 = arith.constant dense<0.000000e+00> : vector<4x128x128xf32>
    %30 = tpu.matmul %0, %29, %cst_21 {dimension_numbers = #tpu.dot_dimension_numbers<[2], [1], [1], [2], [0, 0, 0, 1, 1, 2], [0], [0]>} : vector<4x128x128xbf16>, vector<4x128x128xbf16>, vector<4x128x128xf32> -> vector<4x128x128xf32>
    "tpu.trace_stop"() : () -> ()
    %31 = vector.shape_cast %30 : vector<4x128x128xf32> to vector<512x128xf32>
    %32 = arith.truncf %31 : vector<512x128xf32> to vector<512x128xbf16>
    %c2 = arith.constant 2 : index
    %c0_22 = arith.constant 0 : index
    %c0_23 = arith.constant 0 : index
    %33 = vector.load %arg3[%c2, %c0_22, %c0_23] : memref<3x128x128xbf16, #tpu.memory_space<vmem>>, vector<1x128x128xbf16>
    %34 = vector.shape_cast %33 : vector<1x128x128xbf16> to vector<128x128xbf16>
    %cst_24 = arith.constant dense<0.000000e+00> : vector<512x128xf32>
    %35 = tpu.matmul %32, %34, %cst_24 {dimension_numbers = #tpu.dot_dimension_numbers<[1], [0], [0], [1], [0, 0, 1, 1], [], []>} : vector<512x128xbf16>, vector<128x128xbf16>, vector<512x128xf32> -> vector<512x128xf32>
    %c2_25 = arith.constant 2 : index
    %c0_26 = arith.constant 0 : index
    %c0_27 = arith.constant 0 : index
    %36 = vector.load %arg4[%c2_25, %c0_26, %c0_27] : memref<3x1x128xf32, #tpu.memory_space<vmem>>, vector<1x1x128xf32>
    %37 = vector.shape_cast %36 : vector<1x1x128xf32> to vector<1x128xf32>
    %38 = vector.broadcast %37 : vector<1x128xf32> to vector<512x128xf32>
    %39 = arith.addf %35, %38 : vector<512x128xf32>
    %cst_28 = arith.constant 0.000000e+00 : f32
    %40 = vector.broadcast %cst_28 : f32 to vector<512x128xf32>
    %41 = arith.maximumf %39, %40 : vector<512x128xf32>
    %42 = arith.truncf %41 : vector<512x128xf32> to vector<512x128xbf16>
    %43 = vector.shape_cast %42 : vector<512x128xbf16> to vector<4x128x128xbf16>
    %44 = vector.shape_cast %43 : vector<4x128x128xbf16> to vector<512x128xbf16>
    %c0_29 = arith.constant 0 : index
    %c0_30 = arith.constant 0 : index
    %45 = vector.load %arg5[%c0_29, %c0_30] : memref<128x128xbf16, #tpu.memory_space<vmem>>, vector<128x128xbf16>
    %cst_31 = arith.constant dense<0.000000e+00> : vector<512x128xf32>
    %46 = tpu.matmul %44, %45, %cst_31 {dimension_numbers = #tpu.dot_dimension_numbers<[1], [0], [0], [1], [0, 0, 1, 1], [], []>} : vector<512x128xbf16>, vector<128x128xbf16>, vector<512x128xf32> -> vector<512x128xf32>
    %c0_32 = arith.constant 0 : index
    %c0_33 = arith.constant 0 : index
    %47 = vector.load %arg6[%c0_32, %c0_33] : memref<1x128xf32, #tpu.memory_space<vmem>>, vector<1x128xf32>
    %48 = vector.broadcast %47 : vector<1x128xf32> to vector<512x128xf32>
    %49 = arith.addf %46, %48 : vector<512x128xf32>
    %cst_34 = arith.constant 0.000000e+00 : f32
    %50 = vector.broadcast %cst_34 : f32 to vector<512x128xf32>
    %51 = arith.maximumf %49, %50 : vector<512x128xf32>
    %52 = arith.truncf %51 : vector<512x128xf32> to vector<512x128xbf16>
    %c0_35 = arith.constant 0 : index
    %c0_36 = arith.constant 0 : index
    %53 = vector.load %arg7[%c0_35, %c0_36] : memref<128x128xbf16, #tpu.memory_space<vmem>>, vector<128x128xbf16>
    %cst_37 = arith.constant dense<0.000000e+00> : vector<512x128xf32>
    %54 = tpu.matmul %52, %53, %cst_37 {dimension_numbers = #tpu.dot_dimension_numbers<[1], [0], [0], [1], [0, 0, 1, 1], [], []>} : vector<512x128xbf16>, vector<128x128xbf16>, vector<512x128xf32> -> vector<512x128xf32>
    %c0_38 = arith.constant 0 : index
    %c0_39 = arith.constant 0 : index
    %55 = vector.load %arg8[%c0_38, %c0_39] : memref<1x128xf32, #tpu.memory_space<vmem>>, vector<1x128xf32>
    %56 = vector.broadcast %55 : vector<1x128xf32> to vector<512x128xf32>
    %57 = arith.addf %54, %56 : vector<512x128xf32>
    %58 = tpu.iota {dimensions = array<i32: 1>} : vector<512x128xi32>
    %c8_i32 = arith.constant 8 : i32
    %59 = vector.broadcast %c8_i32 : i32 to vector<512x128xi32>
    %60 = arith.cmpi slt, %58, %59 : vector<512x128xi32>
    %cst_40 = arith.constant -1.000000e+30 : f32
    %61 = vector.broadcast %cst_40 : f32 to vector<512x128xf32>
    %62 = arith.select %60, %57, %61 : vector<512x128xi1>, vector<512x128xf32>
    %cst_41 = arith.constant dense<0xFF800000> : vector<512xf32>
    %63 = vector.multi_reduction <maximumf>, %62, %cst_41 [1] : vector<512x128xf32> to vector<512xf32>
    %64 = vector.shape_cast %63 : vector<512xf32> to vector<512x1xf32>
    %65 = vector.broadcast %64 : vector<512x1xf32> to vector<512x128xf32>
    %66 = arith.subf %62, %65 : vector<512x128xf32>
    %67 = math.exp %66 : vector<512x128xf32>
    %cst_42 = arith.constant dense<0.000000e+00> : vector<512xf32>
    %68 = vector.multi_reduction <add>, %67, %cst_42 [1] : vector<512x128xf32> to vector<512xf32>
    %69 = vector.shape_cast %68 : vector<512xf32> to vector<512x1xf32>
    %70 = math.log %69 : vector<512x1xf32>
    %71 = vector.broadcast %70 : vector<512x1xf32> to vector<512x128xf32>
    %72 = arith.subf %66, %71 : vector<512x128xf32>
    %73 = vector.shape_cast %72 : vector<512x128xf32> to vector<4x128x128xf32>
    %c0_43 = arith.constant 0 : index
    %c0_44 = arith.constant 0 : index
    %c0_45 = arith.constant 0 : index
    %74 = vector.load %arg9[%c0_43, %c0_44, %c0_45] : memref<4x128x128xf32, #tpu.memory_space<vmem>>, vector<4x128x128xf32>
    tpu.vector_store %arg9[%c0_43, %c0_44, %c0_45], %73 {strides = array<i32>} : memref<4x128x128xf32, #tpu.memory_space<vmem>>, vector<4x128x128xf32>,
    return
  }
  func.func @transform_0(%arg0: i32) -> (i32, i32, i32) {
    %c0_i32 = arith.constant 0 : i32
    %c0_i32_0 = arith.constant 0 : i32
    %c0_i32_1 = arith.constant 0 : i32
    return %arg0, %c0_i32, %c0_i32_0 : i32, i32, i32
  }
  func.func @transform_1(%arg0: i32) -> (i32, i32, i32) {
    %c0_i32 = arith.constant 0 : i32
    %c0_i32_0 = arith.constant 0 : i32
    %c0_i32_1 = arith.constant 0 : i32
    return %arg0, %c0_i32, %c0_i32_0 : i32, i32, i32
  }
  func.func @transform_2(%arg0: i32) -> (i32, i32, i32) {
    %c0_i32 = arith.constant 0 : i32
    %c0_i32_0 = arith.constant 0 : i32
    %c0_i32_1 = arith.constant 0 : i32
    %c0_i32_2 = arith.constant 0 : i32
    return %c0_i32, %c0_i32_0, %c0_i32_1 : i32, i32, i32
  }
  func.func @transform_3(%arg0: i32) -> (i32, i32, i32) {
    %c0_i32 = arith.constant 0 : i32
    %c0_i32_0 = arith.constant 0 : i32
    %c0_i32_1 = arith.constant 0 : i32
    %c0_i32_2 = arith.constant 0 : i32
    return %c0_i32, %c0_i32_0, %c0_i32_1 : i32, i32, i32
  }
  func.func @transform_4(%arg0: i32) -> (i32, i32) {
    %c0_i32 = arith.constant 0 : i32
    %c0_i32_0 = arith.constant 0 : i32
    %c0_i32_1 = arith.constant 0 : i32
    return %c0_i32, %c0_i32_0 : i32, i32
  }
  func.func @transform_5(%arg0: i32) -> (i32, i32) {
    %c0_i32 = arith.constant 0 : i32
    %c0_i32_0 = arith.constant 0 : i32
    %c0_i32_1 = arith.constant 0 : i32
    return %c0_i32, %c0_i32_0 : i32, i32
  }
  func.func @transform_6(%arg0: i32) -> (i32, i32) {
    %c0_i32 = arith.constant 0 : i32
    %c0_i32_0 = arith.constant 0 : i32
    %c0_i32_1 = arith.constant 0 : i32
    return %c0_i32, %c0_i32_0 : i32, i32
  }
  func.func @transform_7(%arg0: i32) -> (i32, i32) {
    %c0_i32 = arith.constant 0 : i32
    %c0_i32_0 = arith.constant 0 : i32
    %c0_i32_1 = arith.constant 0 : i32
    return %c0_i32, %c0_i32_0 : i32, i32
  }
  func.func @transform_8(%arg0: i32) -> (i32, i32, i32) {
    %c0_i32 = arith.constant 0 : i32
    %c0_i32_0 = arith.constant 0 : i32
    %c0_i32_1 = arith.constant 0 : i32
    return %arg0, %c0_i32, %c0_i32_0 : i32, i32, i32
  }
}

</mosaic_0001>

<llo_original>
// kernel: tpu_custom_call.1
$region0: #{tpu_custom_call.1}
  #allocation0 [shape = 'u32[]', space=smem, size = 0x4, offset = 0x4, fixed_abs, tag = 'smem constant byte address 0x4 - core index']
  #allocation1 [shape = 'u32[144,128]{1,0:T(1,128)}', space=vmem, size = 0x12000, scoped, tag = 'internal scratch']
  %s0 = inlined_call_operand.hbm [shape: bf16[8,128,128], index: 0, kind: input, shape index: {}]
  %s1 = inlined_call_operand.hbm [shape: bf16[8,128,128], index: 1, kind: input, shape index: {}]
  %s2 = inlined_call_operand.hbm [shape: bf16[3,128,128], index: 2, kind: input, shape index: {}]
  %s3 = inlined_call_operand.vmem [shape: f32[3,1,128], index: 3, kind: input, shape index: {}]
  %s4 = inlined_call_operand.hbm [shape: bf16[128,128], index: 4, kind: input, shape index: {}]
  %s5 = inlined_call_operand.vmem [shape: f32[1,128], index: 5, kind: input, shape index: {}]
  %s6 = inlined_call_operand.hbm [shape: bf16[128,128], index: 6, kind: input, shape index: {}]
  %s7 = inlined_call_operand.vmem [shape: f32[1,128], index: 7, kind: input, shape index: {}]
  %s8 = inlined_call_operand.hbm [shape: f32[8,128,128], index: 8, kind: output, shape index: {}]
  %s9 = sld [smem:[#allocation0]]
  $region85: #{tpu_custom_call.1} parent=0
    _
  %s11 = ssub.s32 1, %s9
  %s12 = scalar_select 0, %s11, %s9
  $region1: #{tpu_custom_call.1} parent=0
    #allocation2 [shape = 'u8[262144]{0}', space=vmem, size = 0x40000, scoped, tag = 'input window, operand 0']
    #allocation3 [shape = 's32[2]{0}', space=sflag, size = 0x8, scoped, tag = 'scoped memory for tpu_custom_call.1']
    #allocation4 [shape = 's32[2]{0}', space=sflag, size = 0x8, scoped, tag = 'scoped memory for tpu_custom_call.1']
    #allocation5 [shape = 'u8[262144]{0}', space=vmem, size = 0x40000, scoped, tag = 'input window, operand 1']
    #allocation6 [shape = 's32[2]{0}', space=sflag, size = 0x8, scoped, tag = 'scoped memory for tpu_custom_call.1']
    #allocation7 [shape = 'u8[98304]{0}', space=vmem, size = 0x18000, scoped, tag = 'input window, operand 2, single buffered']
    #allocation8 [shape = 'u8[32768]{0}', space=vmem, size = 0x8000, scoped, tag = 'input window, operand 4, single buffered']
    #allocation9 [shape = 's32[1]{0}', space=sflag, size = 0x4, scoped, tag = 'scoped memory for tpu_custom_call.1']
    #allocation10 [shape = 'u8[32768]{0}', space=vmem, size = 0x8000, scoped, tag = 'input window, operand 6, single buffered']
    #allocation11 [shape = 'u8[524288]{0}', space=vmem, size = 0x80000, scoped, tag = 'output window, operand 0']
    %13 = vsyncpa [#allocation3], 0
    %s14 = scalar_lea.sflag [#allocation3], 1
    %15 = vsyncpa %s14, 0
    %16 = vsyncpa [#allocation6], 0
    %s17 = scalar_lea.sflag [#allocation6], 1
    %18 = vsyncpa %s17, 0
    %19 = vsyncpa [#allocation9], 0
    %20 = vsyncpa [#allocation4], 0
    %s21 = scalar_lea.sflag [#allocation4], 1
    %22 = vsyncpa %s21, 0
    loop: start=0, step=1, limit=4
    $region2: #{tpu_custom_call.1} parent=1 // loop_pre_header
      _
    $region3: #{tpu_custom_call.1} parent=1 // loop_header
      %s24 = sphi 0, %s28
      %p25 = scmp.ge.s32.totalorder %s24, 4
      %s34 = sphi 0, %s36
      %s37 = sphi 0, %s34
      %s38 = sphi 0, %s37
      %s54 = sphi 0, %s38
      %s60 = sphi 0, %s62
      %s63 = sphi 0, %s60
      %s64 = sphi 0, %s63
      %s80 = sphi 0, %s64
      %s84 = sphi 0, %s84
      %s86 = sphi 0, %s84
      %s87 = sphi 0, %s86
      %s101 = sphi 0, %s87
      %s105 = sphi 0, %s105
      %s107 = sphi 0, %s105
      %s108 = sphi 0, %s107
      %s122 = sphi 0, %s108
      %s126 = sphi 0, %s126
      %s128 = sphi 0, %s126
      %s129 = sphi 0, %s128
      %s143 = sphi 0, %s129
      %s147 = sphi 0, %s147
      %s149 = sphi 0, %s147
      %s150 = sphi 0, %s149
      %s164 = sphi 0, %s150
      %s168 = sphi 0, %s168
      %s170 = sphi 0, %s168
      %s171 = sphi 0, %s170
      %s185 = sphi 0, %s171
      %s189 = sphi 0, %s189
      %s191 = sphi 0, %s189
      %s192 = sphi 0, %s191
      %s206 = sphi 0, %s192
      %s212 = sphi 0, %s214
      %s215 = sphi 0, %s212
      %s216 = sphi 0, %s215
      %s232 = sphi 0, %s216
    $region4: #{tpu_custom_call.1} parent=1 // loop_header_branch
      %27 = sbr.rel (%p25) target = $region8
    $region5: #{tpu_custom_call.1} parent=1 // loop_body
      %s29 = ssub.s32 %s24, 1
      %s30 = ssub.s32 %s24, 2
      %s31 = sadd.s32 %s24, 1
      %s32 = ssub.s32 %s24, %s31
      %p33 = scmp.eq.s32.totalorder %s32, 0
      %s35 = sadd.s32 %s34, 1
      %s36 = scalar_select %p33, %s34, %s35
      %p39 = pneg %p33
      %p40 = scmp.eq.s32.totalorder %s24, 1
      %p41 = por %p39, %p40
      %p42 = scmp.ne.s32.totalorder %s34, %s37
      %p43 = scmp.eq.s32.totalorder %s24, 0
      %p44 = por %p42, %p43
      %p45 = scmp.ne.s32.totalorder %s34, %s37
      %p46 = scmp.eq.s32.totalorder %s29, 1
      %p47 = por %p45, %p46
      %p48 = scmp.ne.s32.totalorder %s37, %s38
      %p49 = scmp.eq.s32.totalorder %s29, 0
      %p50 = por %p48, %p49
      %p51 = scmp.ne.s32.totalorder %s37, %s38
      %p52 = scmp.eq.s32.totalorder %s30, 1
      %p53 = por %p51, %p52
      %p55 = scmp.ne.s32.totalorder %s38, %s54
      %p56 = scmp.eq.s32.totalorder %s30, 0
      %p57 = por %p55, %p56
      %s58 = ssub.s32 %s24, %s31
      %p59 = scmp.eq.s32.totalorder %s58, 0
      %s61 = sadd.s32 %s60, 1
      %s62 = scalar_select %p59, %s60, %s61
      %p65 = pneg %p59
      %p66 = scmp.eq.s32.totalorder %s24, 1
      %p67 = por %p65, %p66
      %p68 = scmp.ne.s32.totalorder %s60, %s63
      %p69 = scmp.eq.s32.totalorder %s24, 0
      %p70 = por %p68, %p69
      %p71 = scmp.ne.s32.totalorder %s60, %s63
      %p72 = scmp.eq.s32.totalorder %s29, 1
      %p73 = por %p71, %p72
      %p74 = scmp.ne.s32.totalorder %s63, %s64
      %p75 = scmp.eq.s32.totalorder %s29, 0
      %p76 = por %p74, %p75
      %p77 = scmp.ne.s32.totalorder %s63, %s64
      %p78 = scmp.eq.s32.totalorder %s30, 1
      %p79 = por %p77, %p78
      %p81 = scmp.ne.s32.totalorder %s64, %s80
      %p82 = scmp.eq.s32.totalorder %s30, 0
      %p83 = por %p81, %p82
      %s85 = sadd.s32 %s84, 1
      %p88 = scmp.eq.s32.totalorder %s24, 1
      %p89 = scmp.ne.s32.totalorder %s84, %s86
      %p90 = scmp.eq.s32.totalorder %s24, 0
      %p91 = por %p89, %p90
      %p92 = scmp.ne.s32.totalorder %s84, %s86
      %p93 = scmp.eq.s32.totalorder %s29, 1
      %p94 = por %p92, %p93
      %p95 = scmp.ne.s32.totalorder %s86, %s87
      %p96 = scmp.eq.s32.totalorder %s29, 0
      %p97 = por %p95, %p96
      %p98 = scmp.ne.s32.totalorder %s86, %s87
      %p99 = scmp.eq.s32.totalorder %s30, 1
      %p100 = por %p98, %p99
      %p102 = scmp.ne.s32.totalorder %s87, %s101
      %p103 = scmp.eq.s32.totalorder %s30, 0
      %p104 = por %p102, %p103
      %s106 = sadd.s32 %s105, 1
      %p109 = scmp.eq.s32.totalorder %s24, 1
      %p110 = scmp.ne.s32.totalorder %s105, %s107
      %p111 = scmp.eq.s32.totalorder %s24, 0
      %p112 = por %p110, %p111
      %p113 = scmp.ne.s32.totalorder %s105, %s107
      %p114 = scmp.eq.s32.totalorder %s29, 1
      %p115 = por %p113, %p114
      %p116 = scmp.ne.s32.totalorder %s107, %s108
      %p117 = scmp.eq.s32.totalorder %s29, 0
      %p118 = por %p116, %p117
      %p119 = scmp.ne.s32.totalorder %s107, %s108
      %p120 = scmp.eq.s32.totalorder %s30, 1
      %p121 = por %p119, %p120
      %p123 = scmp.ne.s32.totalorder %s108, %s122
      %p124 = scmp.eq.s32.totalorder %s30, 0
      %p125 = por %p123, %p124
      %s127 = sadd.s32 %s126, 1
      %p130 = scmp.eq.s32.totalorder %s24, 1
      %p131 = scmp.ne.s32.totalorder %s126, %s128
      %p132 = scmp.eq.s32.totalorder %s24, 0
      %p133 = por %p131, %p132
      %p134 = scmp.ne.s32.totalorder %s126, %s128
      %p135 = scmp.eq.s32.totalorder %s29, 1
      %p136 = por %p134, %p135
      %p137 = scmp.ne.s32.totalorder %s128, %s129
      %p138 = scmp.eq.s32.totalorder %s29, 0
      %p139 = por %p137, %p138
      %p140 = scmp.ne.s32.totalorder %s128, %s129
      %p141 = scmp.eq.s32.totalorder %s30, 1
      %p142 = por %p140, %p141
      %p144 = scmp.ne.s32.totalorder %s129, %s143
      %p145 = scmp.eq.s32.totalorder %s30, 0
      %p146 = por %p144, %p145
      %s148 = sadd.s32 %s147, 1
      %p151 = scmp.eq.s32.totalorder %s24, 1
      %p152 = scmp.ne.s32.totalorder %s147, %s149
      %p153 = scmp.eq.s32.totalorder %s24, 0
      %p154 = por %p152, %p153
      %p155 = scmp.ne.s32.totalorder %s147, %s149
      %p156 = scmp.eq.s32.totalorder %s29, 1
      %p157 = por %p155, %p156
      %p158 = scmp.ne.s32.totalorder %s149, %s150
      %p159 = scmp.eq.s32.totalorder %s29, 0
      %p160 = por %p158, %p159
      %p161 = scmp.ne.s32.totalorder %s149, %s150
      %p162 = scmp.eq.s32.totalorder %s30, 1
      %p163 = por %p161, %p162
      %p165 = scmp.ne.s32.totalorder %s150, %s164
      %p166 = scmp.eq.s32.totalorder %s30, 0
      %p167 = por %p165, %p166
      %s169 = sadd.s32 %s168, 1
      %p172 = scmp.eq.s32.totalorder %s24, 1
      %p173 = scmp.ne.s32.totalorder %s168, %s170
      %p174 = scmp.eq.s32.totalorder %s24, 0
      %p175 = por %p173, %p174
      %p176 = scmp.ne.s32.totalorder %s168, %s170
      %p177 = scmp.eq.s32.totalorder %s29, 1
      %p178 = por %p176, %p177
      %p179 = scmp.ne.s32.totalorder %s170, %s171
      %p180 = scmp.eq.s32.totalorder %s29, 0
      %p181 = por %p179, %p180
      %p182 = scmp.ne.s32.totalorder %s170, %s171
      %p183 = scmp.eq.s32.totalorder %s30, 1
      %p184 = por %p182, %p183
      %p186 = scmp.ne.s32.totalorder %s171, %s185
      %p187 = scmp.eq.s32.totalorder %s30, 0
      %p188 = por %p186, %p187
      %s190 = sadd.s32 %s189, 1
      %p193 = scmp.eq.s32.totalorder %s24, 1
      %p194 = scmp.ne.s32.totalorder %s189, %s191
      %p195 = scmp.eq.s32.totalorder %s24, 0
      %p196 = por %p194, %p195
      %p197 = scmp.ne.s32.totalorder %s189, %s191
      %p198 = scmp.eq.s32.totalorder %s29, 1
      %p199 = por %p197, %p198
      %p200 = scmp.ne.s32.totalorder %s191, %s192
      %p201 = scmp.eq.s32.totalorder %s29, 0
      %p202 = por %p200, %p201
      %p203 = scmp.ne.s32.totalorder %s191, %s192
      %p204 = scmp.eq.s32.totalorder %s30, 1
      %p205 = por %p203, %p204
      %p207 = scmp.ne.s32.totalorder %s192, %s206
      %p208 = scmp.eq.s32.totalorder %s30, 0
      %p209 = por %p207, %p208
      %s210 = ssub.s32 %s24, %s31
      %p211 = scmp.eq.s32.totalorder %s210, 0
      %s213 = sadd.s32 %s212, 1
      %s214 = scalar_select %p211, %s212, %s213
      %p217 = pneg %p211
      %p218 = scmp.eq.s32.totalorder %s24, 1
      %p219 = por %p217, %p218
      %p220 = scmp.ne.s32.totalorder %s212, %s215
      %p221 = scmp.eq.s32.totalorder %s24, 0
      %p222 = por %p220, %p221
      %p223 = scmp.ne.s32.totalorder %s212, %s215
      %p224 = scmp.eq.s32.totalorder %s29, 1
      %p225 = por %p223, %p224
      %p226 = scmp.ne.s32.totalorder %s215, %s216
      %p227 = scmp.eq.s32.totalorder %s29, 0
      %p228 = por %p226, %p227
      %p229 = scmp.ne.s32.totalorder %s215, %s216
      %p230 = scmp.eq.s32.totalorder %s30, 1
      %p231 = por %p229, %p230
      %p233 = scmp.ne.s32.totalorder %s216, %s232
      %p234 = scmp.eq.s32.totalorder %s30, 0
      %p235 = por %p233, %p234
      %p236 = scmp.le.s32.totalorder 1, %s24
      %p237 = scmp.lt.s32.totalorder %s24, 3
      %p238 = pnand %p236, %p237
      %p239 = pneg %p238
      // Predicated region
      $region9: #{tpu_custom_call.1} parent=5 // pred_check
        _
      $region10: #{tpu_custom_call.1} parent=5 // pred_check_branch
        %241 = sbr.rel (%p238) target = $region12
      $region11: #{tpu_custom_call.1} parent=5 // pred_region
        %s242 = ssub.s32 %s24, 1
        // Predicated region
        $region13: #{tpu_custom_call.1} parent=11 // pred_check
          %p243 = pneg %p97
        $region14: #{tpu_custom_call.1} parent=11 // pred_check_branch
          %245 = sbr.rel (%p243) target = $region16
        $region15: #{tpu_custom_call.1} parent=11 // pred_region
          %s247 = ssub.s32 3072, 3072
          %248 = vsyncadd [#allocation6], %s247
          %s249 = sshll.u32 [#allocation7], 4
          %s250 = int_to_ptr.vmem [resolvable:$true] %s249
          %255 = dma.hbm_to_vmem [thread:$0]  %s2, 3072, %s250, [#allocation6], 64, 64, 4
        $region16: #{tpu_custom_call.1} parent=11 // pred_fallthru
          _
        // Predicated region
        $region17: #{tpu_custom_call.1} parent=11 // pred_check
          %p256 = pneg %p118
        $region18: #{tpu_custom_call.1} parent=11 // pred_check_branch
          %258 = sbr.rel (%p256) target = $region20
        $region19: #{tpu_custom_call.1} parent=11 // pred_region
          _
        $region20: #{tpu_custom_call.1} parent=11 // pred_fallthru
          _
        // Predicated region
        $region21: #{tpu_custom_call.1} parent=11 // pred_check
          %p259 = pneg %p139
        $region22: #{tpu_custom_call.1} parent=11 // pred_check_branch
          %261 = sbr.rel (%p259) target = $region24
        $region23: #{tpu_custom_call.1} parent=11 // pred_region
          %s263 = ssub.s32 1024, 1024
          %264 = vsyncadd [#allocation9], %s263
          %s265 = sshll.u32 [#allocation8], 4
          %s266 = int_to_ptr.vmem [resolvable:$true] %s265
          %271 = dma.hbm_to_vmem [thread:$0]  %s4, 1024, %s266, [#allocation9], 64, 64, 4
        $region24: #{tpu_custom_call.1} parent=11 // pred_fallthru
          _
        // Predicated region
        $region25: #{tpu_custom_call.1} parent=11 // pred_check
          %p272 = pneg %p160
        $region26: #{tpu_custom_call.1} parent=11 // pred_check_branch
          %274 = sbr.rel (%p272) target = $region28
        $region27: #{tpu_custom_call.1} parent=11 // pred_region
          _
        $region28: #{tpu_custom_call.1} parent=11 // pred_fallthru
          _
        // Predicated region
        $region29: #{tpu_custom_call.1} parent=11 // pred_check
          %p275 = pneg %p181
        $region30: #{tpu_custom_call.1} parent=11 // pred_check_branch
          %277 = sbr.rel (%p275) target = $region32
        $region31: #{tpu_custom_call.1} parent=11 // pred_region
          %s279 = ssub.s32 1024, 1024
          %280 = vsyncadd [#allocation9], %s279
          %s281 = sshll.u32 [#allocation10], 4
          %s282 = int_to_ptr.vmem [resolvable:$true] %s281
          %287 = dma.hbm_to_vmem [thread:$0]  %s6, 1024, %s282, [#allocation9], 64, 64, 4
        $region32: #{tpu_custom_call.1} parent=11 // pred_fallthru
          _
        // Predicated region
        $region33: #{tpu_custom_call.1} parent=11 // pred_check
          %p288 = pneg %p202
        $region34: #{tpu_custom_call.1} parent=11 // pred_check_branch
          %290 = sbr.rel (%p288) target = $region36
        $region35: #{tpu_custom_call.1} parent=11 // pred_region
          _
        $region36: #{tpu_custom_call.1} parent=11 // pred_fallthru
          _
      $region12: #{tpu_custom_call.1} parent=5 // pred_fallthru
        _
      %p291 = scmp.lt.s32.totalorder %s24, 2
      // Predicated region
      $region37: #{tpu_custom_call.1} parent=5 // pred_check
        %p292 = pneg %p291
      $region38: #{tpu_custom_call.1} parent=5 // pred_check_branch
        %294 = sbr.rel (%p292) target = $region40
      $region39: #{tpu_custom_call.1} parent=5 // pred_region
        // Predicated region
        $region41: #{tpu_custom_call.1} parent=39 // pred_check
          %p295 = pneg %p44
        $region42: #{tpu_custom_call.1} parent=39 // pred_check_branch
          %297 = sbr.rel (%p295) target = $region44
        $region43: #{tpu_custom_call.1} parent=39 // pred_region
          %s298 = sand.u32 %s34, 1
          %s299 = scalar_lea.sflag [#allocation3], %s298
          %s300 = sand.u32 %s34, 1
          %s301 = smul.addr %s300, 256
          %s302 = scalar_lea.vmem [#allocation2], %s301
          %s303 = smul.u32 4, %s24
          %s305 = ssub.s32 4096, 4096
          %306 = vsyncadd %s299, %s305
          %s307 = smul.addr %s303, 16
          %s308 = smul.addr %s307, 64
          %s309 = scalar_lea.hbm %s0, %s308
          %s310 = sshll.u32 %s302, 4
          %s311 = int_to_ptr.vmem [resolvable:$true] %s310
          %316 = dma.hbm_to_vmem [thread:$0]  %s309, 4096, %s311, %s299, 64, 64, 4
        $region44: #{tpu_custom_call.1} parent=39 // pred_fallthru
          _
        // Predicated region
        $region45: #{tpu_custom_call.1} parent=39 // pred_check
          %p317 = pneg %p70
        $region46: #{tpu_custom_call.1} parent=39 // pred_check_branch
          %319 = sbr.rel (%p317) target = $region48
        $region47: #{tpu_custom_call.1} parent=39 // pred_region
          %s320 = sand.u32 %s24, 1
          %s321 = scalar_lea.sflag [#allocation6], %s320
          %s322 = sand.u32 %s60, 1
          %s323 = smul.addr %s322, 256
          %s324 = scalar_lea.vmem [#allocation5], %s323
          %s325 = smul.u32 4, %s24
          %s327 = ssub.s32 4096, 4096
          %328 = vsyncadd %s321, %s327
          %s329 = smul.addr %s325, 16
          %s330 = smul.addr %s329, 64
          %s331 = scalar_lea.hbm %s1, %s330
          %s332 = sshll.u32 %s324, 4
          %s333 = int_to_ptr.vmem [resolvable:$true] %s332
          %338 = dma.hbm_to_vmem [thread:$0]  %s331, 4096, %s333, %s321, 64, 64, 4
        $region48: #{tpu_custom_call.1} parent=39 // pred_fallthru
          _
      $region40: #{tpu_custom_call.1} parent=5 // pred_fallthru
        _
      %p339 = scmp.le.s32.totalorder 1, %s24
      %p340 = scmp.lt.s32.totalorder %s24, 3
      %p341 = pnand %p339, %p340
      %p342 = pneg %p341
      // Predicated region
      $region49: #{tpu_custom_call.1} parent=5 // pred_check
        _
      $region50: #{tpu_custom_call.1} parent=5 // pred_check_branch
        %344 = sbr.rel (%p341) target = $region52
      $region51: #{tpu_custom_call.1} parent=5 // pred_region
        %s345 = ssub.s32 %s24, 1
        %s346 = sand.u32 %s37, 1
        %s347 = scalar_lea.sflag [#allocation3], %s346
        %s348 = sand.u32 %s37, 1
        %s349 = smul.addr %s348, 256
        %s350 = scalar_lea.vmem [#allocation2], %s349
        // Predicated region
        $region53: #{tpu_custom_call.1} parent=51 // pred_check
          %p351 = pneg %p50
        $region54: #{tpu_custom_call.1} parent=51 // pred_check_branch
          %353 = sbr.rel (%p351) target = $region56
        $region55: #{tpu_custom_call.1} parent=51 // pred_region
          %354 = dma.done %s347, 4096
        $region56: #{tpu_custom_call.1} parent=51 // pred_fallthru
          _
        %s355 = sand.u32 %s29, 1
        %s356 = scalar_lea.sflag [#allocation6], %s355
        %s357 = sand.u32 %s63, 1
        %s358 = smul.addr %s357, 256
        %s359 = scalar_lea.vmem [#allocation5], %s358
        // Predicated region
        $region57: #{tpu_custom_call.1} parent=51 // pred_check
          %p360 = pneg %p76
        $region58: #{tpu_custom_call.1} parent=51 // pred_check_branch
          %362 = sbr.rel (%p360) target = $region60
        $region59: #{tpu_custom_call.1} parent=51 // pred_region
          %363 = dma.done %s356, 4096
        $region60: #{tpu_custom_call.1} parent=51 // pred_fallthru
          _
        // Predicated region
        $region61: #{tpu_custom_call.1} parent=51 // pred_check
          %p364 = pneg %p97
        $region62: #{tpu_custom_call.1} parent=51 // pred_check_branch
          %366 = sbr.rel (%p364) target = $region64
        $region63: #{tpu_custom_call.1} parent=51 // pred_region
          %367 = dma.done [#allocation6], 3072
        $region64: #{tpu_custom_call.1} parent=51 // pred_fallthru
          _
        // Predicated region
        $region65: #{tpu_custom_call.1} parent=51 // pred_check
          %p368 = pneg %p139
        $region66: #{tpu_custom_call.1} parent=51 // pred_check_branch
          %370 = sbr.rel (%p368) target = $region68
        $region67: #{tpu_custom_call.1} parent=51 // pred_region
          %371 = dma.done [#allocation9], 1024
        $region68: #{tpu_custom_call.1} parent=51 // pred_fallthru
          _
        // Predicated region
        $region69: #{tpu_custom_call.1} parent=51 // pred_check
          %p372 = pneg %p181
        $region70: #{tpu_custom_call.1} parent=51 // pred_check_branch
          %374 = sbr.rel (%p372) target = $region72
        $region71: #{tpu_custom_call.1} parent=51 // pred_region
          %375 = dma.done [#allocation9], 1024
        $region72: #{tpu_custom_call.1} parent=51 // pred_fallthru
          _
        %s376 = sand.u32 %s37, 1
        %s377 = scalar_lea.sflag [#allocation3], %s376
        %s378 = sand.u32 %s37, 1
        %s379 = smul.addr %s378, 256
        %s380 = scalar_lea.vmem [#allocation2], %s379
        %p381 = pneg %p50
        %p382 = pneg %p47
        %s383 = sand.u32 %s29, 1
        %s384 = scalar_lea.sflag [#allocation6], %s383
        %s385 = sand.u32 %s63, 1
        %s386 = smul.addr %s385, 256
        %s387 = scalar_lea.vmem [#allocation5], %s386
        %p388 = pneg %p76
        %p389 = pneg %p73
        %p390 = pneg %p97
        %p391 = pneg %p94
        %p392 = pneg %p118
        %p393 = pneg %p115
        %p394 = pneg %p139
        %p395 = pneg %p136
        %p396 = pneg %p160
        %p397 = pneg %p157
        %p398 = pneg %p181
        %p399 = pneg %p178
        %p400 = pneg %p202
        %p401 = pneg %p199
        %p402 = pneg %p228
        %p403 = pneg %p225
        %s404 = sand.u32 %s215, 1
        %s405 = scalar_lea.sflag [#allocation4], %s404
        %s406 = sand.u32 %s215, 1
        %s407 = smul.addr %s406, 512
        %s408 = scalar_lea.vmem [#allocation11], %s407
        %s409 = smul.u32 4, %s29
        %s410 = smul.u32 4, %s29
        %s411 = smul.u32 4, %s29
        %v413 = vld [vmem:[%s359] sm:$0xf]
        %v414 = vld [vmem:[%s359 + $0x4] sm:$0xf]
        %v415 = vld [vmem:[%s359 + $0x8] sm:$0xf]
        %v416 = vld [vmem:[%s359 + $0xc] sm:$0xf]
        %v417 = vld [vmem:[%s359 + $0x10] sm:$0xf]
        %v418 = vld [vmem:[%s359 + $0x14] sm:$0xf]
        %v419 = vld [vmem:[%s359 + $0x18] sm:$0xf]
        %v420 = vld [vmem:[%s359 + $0x1c] sm:$0xf]
        %v421 = vld [vmem:[%s359 + $0x20] sm:$0xf]
        %v422 = vld [vmem:[%s359 + $0x24] sm:$0xf]
        %v423 = vld [vmem:[%s359 + $0x28] sm:$0xf]
        %v424 = vld [vmem:[%s359 + $0x2c] sm:$0xf]
        %v425 = vld [vmem:[%s359 + $0x30] sm:$0xf]
        %v426 = vld [vmem:[%s359 + $0x34] sm:$0xf]
        %v427 = vld [vmem:[%s359 + $0x38] sm:$0xf]
        %v428 = vld [vmem:[%s359 + $0x3c] sm:$0xf]
        %v429 = vld [vmem:[%s359 + $0x40] sm:$0xf]
        %v430 = vld [vmem:[%s359 + $0x44] sm:$0xf]
        %v431 = vld [vmem:[%s359 + $0x48] sm:$0xf]
        %v432 = vld [vmem:[%s359 + $0x4c] sm:$0xf]
        %v433 = vld [vmem:[%s359 + $0x50] sm:$0xf]
        %v434 = vld [vmem:[%s359 + $0x54] sm:$0xf]
        %v435 = vld [vmem:[%s359 + $0x58] sm:$0xf]
        %v436 = vld [vmem:[%s359 + $0x5c] sm:$0xf]
        %v437 = vld [vmem:[%s359 + $0x60] sm:$0xf]
        %v438 = vld [vmem:[%s359 + $0x64] sm:$0xf]
        %v439 = vld [vmem:[%s359 + $0x68] sm:$0xf]
        %v440 = vld [vmem:[%s359 + $0x6c] sm:$0xf]
        %v441 = vld [vmem:[%s359 + $0x70] sm:$0xf]
        %v442 = vld [vmem:[%s359 + $0x74] sm:$0xf]
        %v443 = vld [vmem:[%s359 + $0x78] sm:$0xf]
        %v444 = vld [vmem:[%s359 + $0x7c] sm:$0xf]
        %v445 = vld [vmem:[%s359 + $0x80] sm:$0xf]
        %v446 = vld [vmem:[%s359 + $0x84] sm:$0xf]
        %v447 = vld [vmem:[%s359 + $0x88] sm:$0xf]
        %v448 = vld [vmem:[%s359 + $0x8c] sm:$0xf]
        %v449 = vld [vmem:[%s359 + $0x90] sm:$0xf]
        %v450 = vld [vmem:[%s359 + $0x94] sm:$0xf]
        %v451 = vld [vmem:[%s359 + $0x98] sm:$0xf]
        %v452 = vld [vmem:[%s359 + $0x9c] sm:$0xf]
        %v453 = vld [vmem:[%s359 + $0xa0] sm:$0xf]
        %v454 = vld [vmem:[%s359 + $0xa4] sm:$0xf]
        %v455 = vld [vmem:[%s359 + $0xa8] sm:$0xf]
        %v456 = vld [vmem:[%s359 + $0xac] sm:$0xf]
        %v457 = vld [vmem:[%s359 + $0xb0] sm:$0xf]
        %v458 = vld [vmem:[%s359 + $0xb4] sm:$0xf]
        %v459 = vld [vmem:[%s359 + $0xb8] sm:$0xf]
        %v460 = vld [vmem:[%s359 + $0xbc] sm:$0xf]
        %v461 = vld [vmem:[%s359 + $0xc0] sm:$0xf]
        %v462 = vld [vmem:[%s359 + $0xc4] sm:$0xf]
        %v463 = vld [vmem:[%s359 + $0xc8] sm:$0xf]
        %v464 = vld [vmem:[%s359 + $0xcc] sm:$0xf]
        %v465 = vld [vmem:[%s359 + $0xd0] sm:$0xf]
        %v466 = vld [vmem:[%s359 + $0xd4] sm:$0xf]
        %v467 = vld [vmem:[%s359 + $0xd8] sm:$0xf]
        %v468 = vld [vmem:[%s359 + $0xdc] sm:$0xf]
        %v469 = vld [vmem:[%s359 + $0xe0] sm:$0xf]
        %v470 = vld [vmem:[%s359 + $0xe4] sm:$0xf]
        %v471 = vld [vmem:[%s359 + $0xe8] sm:$0xf]
        %v472 = vld [vmem:[%s359 + $0xec] sm:$0xf]
        %v473 = vld [vmem:[%s359 + $0xf0] sm:$0xf]
        %v474 = vld [vmem:[%s359 + $0xf4] sm:$0xf]
        %v475 = vld [vmem:[%s359 + $0xf8] sm:$0xf]
        %v476 = vld [vmem:[%s359 + $0xfc] sm:$0xf]
        %v477 = vld [vmem:[%s350] sm:$0xf]
        %v478 = vld [vmem:[%s350 + $0x4] sm:$0xf]
        %v479 = vld [vmem:[%s350 + $0x8] sm:$0xf]
        %v480 = vld [vmem:[%s350 + $0xc] sm:$0xf]
        %v481 = vld [vmem:[%s350 + $0x10] sm:$0xf]
        %v482 = vld [vmem:[%s350 + $0x14] sm:$0xf]
        %v483 = vld [vmem:[%s350 + $0x18] sm:$0xf]
        %v484 = vld [vmem:[%s350 + $0x1c] sm:$0xf]
        %v485 = vld [vmem:[%s350 + $0x20] sm:$0xf]
        %v486 = vld [vmem:[%s350 + $0x24] sm:$0xf]
        %v487 = vld [vmem:[%s350 + $0x28] sm:$0xf]
        %v488 = vld [vmem:[%s350 + $0x2c] sm:$0xf]
        %v489 = vld [vmem:[%s350 + $0x30] sm:$0xf]
        %v490 = vld [vmem:[%s350 + $0x34] sm:$0xf]
        %v491 = vld [vmem:[%s350 + $0x38] sm:$0xf]
        %v492 = vld [vmem:[%s350 + $0x3c] sm:$0xf]
        %v493 = vld [vmem:[%s350 + $0x40] sm:$0xf]
        %v494 = vld [vmem:[%s350 + $0x44] sm:$0xf]
        %v495 = vld [vmem:[%s350 + $0x48] sm:$0xf]
        %v496 = vld [vmem:[%s350 + $0x4c] sm:$0xf]
        %v497 = vld [vmem:[%s350 + $0x50] sm:$0xf]
        %v498 = vld [vmem:[%s350 + $0x54] sm:$0xf]
        %v499 = vld [vmem:[%s350 + $0x58] sm:$0xf]
        %v500 = vld [vmem:[%s350 + $0x5c] sm:$0xf]
        %v501 = vld [vmem:[%s350 + $0x60] sm:$0xf]
        %v502 = vld [vmem:[%s350 + $0x64] sm:$0xf]
        %v503 = vld [vmem:[%s350 + $0x68] sm:$0xf]
        %v504 = vld [vmem:[%s350 + $0x6c] sm:$0xf]
        %v505 = vld [vmem:[%s350 + $0x70] sm:$0xf]
        %v506 = vld [vmem:[%s350 + $0x74] sm:$0xf]
        %v507 = vld [vmem:[%s350 + $0x78] sm:$0xf]
        %v508 = vld [vmem:[%s350 + $0x7c] sm:$0xf]
        %v509 = vld [vmem:[%s350 + $0x80] sm:$0xf]
        %v510 = vld [vmem:[%s350 + $0x84] sm:$0xf]
        %v511 = vld [vmem:[%s350 + $0x88] sm:$0xf]
        %v512 = vld [vmem:[%s350 + $0x8c] sm:$0xf]
        %v513 = vld [vmem:[%s350 + $0x90] sm:$0xf]
        %v514 = vld [vmem:[%s350 + $0x94] sm:$0xf]
        %v515 = vld [vmem:[%s350 + $0x98] sm:$0xf]
        %v516 = vld [vmem:[%s350 + $0x9c] sm:$0xf]
        %v517 = vld [vmem:[%s350 + $0xa0] sm:$0xf]
        %v518 = vld [vmem:[%s350 + $0xa4] sm:$0xf]
        %v519 = vld [vmem:[%s350 + $0xa8] sm:$0xf]
        %v520 = vld [vmem:[%s350 + $0xac] sm:$0xf]
        %v521 = vld [vmem:[%s350 + $0xb0] sm:$0xf]
        %v522 = vld [vmem:[%s350 + $0xb4] sm:$0xf]
        %v523 = vld [vmem:[%s350 + $0xb8] sm:$0xf]
        %v524 = vld [vmem:[%s350 + $0xbc] sm:$0xf]
        %v525 = vld [vmem:[%s350 + $0xc0] sm:$0xf]
        %v526 = vld [vmem:[%s350 + $0xc4] sm:$0xf]
        %v527 = vld [vmem:[%s350 + $0xc8] sm:$0xf]
        %v528 = vld [vmem:[%s350 + $0xcc] sm:$0xf]
        %v529 = vld [vmem:[%s350 + $0xd0] sm:$0xf]
        %v530 = vld [vmem:[%s350 + $0xd4] sm:$0xf]
        %v531 = vld [vmem:[%s350 + $0xd8] sm:$0xf]
        %v532 = vld [vmem:[%s350 + $0xdc] sm:$0xf]
        %v533 = vld [vmem:[%s350 + $0xe0] sm:$0xf]
        %v534 = vld [vmem:[%s350 + $0xe4] sm:$0xf]
        %v535 = vld [vmem:[%s350 + $0xe8] sm:$0xf]
        %v536 = vld [vmem:[%s350 + $0xec] sm:$0xf]
        %v537 = vld [vmem:[%s350 + $0xf0] sm:$0xf]
        %v538 = vld [vmem:[%s350 + $0xf4] sm:$0xf]
        %v539 = vld [vmem:[%s350 + $0xf8] sm:$0xf]
        %v540 = vld [vmem:[%s350 + $0xfc] sm:$0xf]
        %v557 = vunpack.c.l.b16 %v413
        %v558 = vunpack.c.l.b16 %v414
        %v559 = vunpack.c.l.b16 %v415
        %v560 = vunpack.c.l.b16 %v416
        %v561 = vunpack.c.l.b16 %v417
        %v562 = vunpack.c.l.b16 %v418
        %v563 = vunpack.c.l.b16 %v419
        %v564 = vunpack.c.l.b16 %v420
        %v565 = vunpack.c.l.b16 %v421
        %v566 = vunpack.c.l.b16 %v422
        %v567 = vunpack.c.l.b16 %v423
        %v568 = vunpack.c.l.b16 %v424
        %v569 = vunpack.c.l.b16 %v425
        %v570 = vunpack.c.l.b16 %v426
        %v571 = vunpack.c.l.b16 %v427
        %v572 = vunpack.c.l.b16 %v428
        %v573 = vpack.c.b16 %v558, %v557
        %v574 = vpack.c.b16 %v560, %v559
        %v575 = vpack.c.b16 %v562, %v561
        %v576 = vpack.c.b16 %v564, %v563
        %v577 = vpack.c.b16 %v566, %v565
        %v578 = vpack.c.b16 %v568, %v567
        %v579 = vpack.c.b16 %v570, %v569
        %v580 = vpack.c.b16 %v572, %v571
        %v605 = vunpack.c.l.b16 %v477
        %v606 = vunpack.c.l.b16 %v478
        %v607 = vunpack.c.l.b16 %v479
        %v608 = vunpack.c.l.b16 %v480
        %v609 = vunpack.c.l.b16 %v481
        %v610 = vunpack.c.l.b16 %v482
        %v611 = vunpack.c.l.b16 %v483
        %v612 = vunpack.c.l.b16 %v484
        %v613 = vunpack.c.l.b16 %v485
        %v614 = vunpack.c.l.b16 %v486
        %v615 = vunpack.c.l.b16 %v487
        %v616 = vunpack.c.l.b16 %v488
        %v617 = vunpack.c.l.b16 %v489
        %v618 = vunpack.c.l.b16 %v490
        %v619 = vunpack.c.l.b16 %v491
        %v620 = vunpack.c.l.b16 %v492
        %v621 = vpack.c.b16 %v606, %v605
        %v622 = vpack.c.b16 %v608, %v607
        %v623 = vpack.c.b16 %v610, %v609
        %v624 = vpack.c.b16 %v612, %v611
        %v625 = vpack.c.b16 %v614, %v613
        %v626 = vpack.c.b16 %v616, %v615
        %v627 = vpack.c.b16 %v618, %v617
        %v628 = vpack.c.b16 %v620, %v619
        %637 = vmatprep.subr.bf16.mxu0 0
        %638 = vmatpush1.bf16.msra.mxu0 %v621
        %639 = vmatprep.subr.bf16.mxu0 0
        %640 = vmatpush1.bf16.msra.mxu0 %v622
        %641 = vmatprep.subr.bf16.mxu0 0
        %642 = vmatpush1.bf16.msra.mxu0 %v623
        %643 = vmatprep.subr.bf16.mxu0 0
        %644 = vmatpush1.bf16.msra.mxu0 %v624
        %645 = vmatprep.subr.bf16.mxu0 0
        %646 = vmatpush1.bf16.msra.mxu0 %v625
        %647 = vmatprep.subr.bf16.mxu0 0
        %648 = vmatpush1.bf16.msra.mxu0 %v626
        %649 = vmatprep.subr.bf16.mxu0 0
        %650 = vmatpush1.bf16.msra.mxu0 %v627
        %651 = vmatprep.subr.bf16.mxu0 0
        %652 = vmatpush1.bf16.msra.mxu0 %v628
        %653 = vmatprep.subr.bf16.mxu0 0
        %654 = vmatpush1.bf16.msra.mxu0 0
        %655 = vmatprep.subr.bf16.mxu0 0
        %656 = vmatpush1.bf16.msra.mxu0 0
        %657 = vmatprep.subr.bf16.mxu0 0
        %658 = vmatpush1.bf16.msra.mxu0 0
        %659 = vmatprep.subr.bf16.mxu0 0
        %660 = vmatpush1.bf16.msra.mxu0 0
        %661 = vmatprep.subr.bf16.mxu0 0
        %662 = vmatpush1.bf16.msra.mxu0 0
        %663 = vmatprep.subr.bf16.mxu0 0
        %664 = vmatpush1.bf16.msra.mxu0 0
        %665 = vmatprep.subr.bf16.mxu0 0
        %666 = vmatpush1.bf16.msra.mxu0 0
        %667 = vmatprep.subr.bf16.mxu0 0
        %668 = vmatpush1.bf16.msra.mxu0 0
        %669 = vmatprep.mubr.bf16.mxu0 0
        %670 = vmatmul.mubr.bf16.gmra.mrb[0].mxu0 %v573
        %v671 = vpop.f32.mrb[0].mxu0
        %v672 = vadd.f32 0.0, %v671
        %v673 = vpop.f32.mrb[0].mxu0
        %v674 = vpop.f32.mrb[0].mxu0
        %v675 = vadd.f32 0.0, %v674
        %v676 = vpop.f32.mrb[0].mxu0
        %677 = vmatprep.mubr.bf16.mxu0 0
        %678 = vmatmul.mubr.bf16.gmra.mrb[0].mxu0 %v574
        %v679 = vpop.f32.mrb[0].mxu0
        %v680 = vadd.f32 0.0, %v679
        %v681 = vpop.f32.mrb[0].mxu0
        %v682 = vpop.f32.mrb[0].mxu0
        %v683 = vadd.f32 0.0, %v682
        %v684 = vpop.f32.mrb[0].mxu0
        %685 = vmatprep.mubr.bf16.mxu0 0
        %686 = vmatmul.mubr.bf16.gmra.mrb[0].mxu0 %v575
        %v687 = vpop.f32.mrb[0].mxu0
        %v688 = vadd.f32 0.0, %v687
        %v689 = vpop.f32.mrb[0].mxu0
        %v690 = vpop.f32.mrb[0].mxu0
        %v691 = vadd.f32 0.0, %v690
        %v692 = vpop.f32.mrb[0].mxu0
        %693 = vmatprep.mubr.bf16.mxu0 0
        %694 = vmatmul.mubr.bf16.gmra.mrb[0].mxu0 %v576
        %v695 = vpop.f32.mrb[0].mxu0
        %v696 = vadd.f32 0.0, %v695
        %v697 = vpop.f32.mrb[0].mxu0
        %v698 = vpop.f32.mrb[0].mxu0
        %v699 = vadd.f32 0.0, %v698
        %v700 = vpop.f32.mrb[0].mxu0
        %701 = vmatprep.mubr.bf16.mxu0 0
        %702 = vmatmul.mubr.bf16.gmra.mrb[0].mxu0 %v577
        %v703 = vpop.f32.mrb[0].mxu0
        %v704 = vadd.f32 0.0, %v703
        %v705 = vpop.f32.mrb[0].mxu0
        %v706 = vpop.f32.mrb[0].mxu0
        %v707 = vadd.f32 0.0, %v706
        %v708 = vpop.f32.mrb[0].mxu0
        %709 = vmatprep.mubr.bf16.mxu0 0
        %710 = vmatmul.mubr.bf16.gmra.mrb[0].mxu0 %v578
        %v711 = vpop.f32.mrb[0].mxu0
        %v712 = vadd.f32 0.0, %v711
        %v713 = vpop.f32.mrb[0].mxu0
        %v714 = vpop.f32.mrb[0].mxu0
        %v715 = vadd.f32 0.0, %v714
        %v716 = vpop.f32.mrb[0].mxu0
        %717 = vmatprep.mubr.bf16.mxu0 0
        %718 = vmatmul.mubr.bf16.gmra.mrb[0].mxu0 %v579
        %v719 = vpop.f32.mrb[0].mxu0
        %v720 = vadd.f32 0.0, %v719
        %v721 = vpop.f32.mrb[0].mxu0
        %v722 = vpop.f32.mrb[0].mxu0
        %v723 = vadd.f32 0.0, %v722
        %v724 = vpop.f32.mrb[0].mxu0
        %725 = vmatprep.mubr.bf16.mxu0 0
        %726 = vmatmul.mubr.bf16.gmra.mrb[0].mxu0 %v580
        %v727 = vpop.f32.mrb[0].mxu0
        %v728 = vadd.f32 0.0, %v727
        %v729 = vpop.f32.mrb[0].mxu0
        %v730 = vpop.f32.mrb[0].mxu0
        %v731 = vadd.f32 0.0, %v730
        %v732 = vpop.f32.mrb[0].mxu0
        %733 = vdwg.mxu0
        %v750 = vunpack.c.l.b16 %v429
        %v751 = vunpack.c.l.b16 %v430
        %v752 = vunpack.c.l.b16 %v431
        %v753 = vunpack.c.l.b16 %v432
        %v754 = vunpack.c.l.b16 %v433
        %v755 = vunpack.c.l.b16 %v434
        %v756 = vunpack.c.l.b16 %v435
        %v757 = vunpack.c.l.b16 %v436
        %v758 = vunpack.c.l.b16 %v437
        %v759 = vunpack.c.l.b16 %v438
        %v760 = vunpack.c.l.b16 %v439
        %v761 = vunpack.c.l.b16 %v440
        %v762 = vunpack.c.l.b16 %v441
        %v763 = vunpack.c.l.b16 %v442
        %v764 = vunpack.c.l.b16 %v443
        %v765 = vunpack.c.l.b16 %v444
        %v766 = vpack.c.b16 %v751, %v750
        %v767 = vpack.c.b16 %v753, %v752
        %v768 = vpack.c.b16 %v755, %v754
        %v769 = vpack.c.b16 %v757, %v756
        %v770 = vpack.c.b16 %v759, %v758
        %v771 = vpack.c.b16 %v761, %v760
        %v772 = vpack.c.b16 %v763, %v762
        %v773 = vpack.c.b16 %v765, %v764
        %v798 = vunpack.c.l.b16 %v493
        %v799 = vunpack.c.l.b16 %v494
        %v800 = vunpack.c.l.b16 %v495
        %v801 = vunpack.c.l.b16 %v496
        %v802 = vunpack.c.l.b16 %v497
        %v803 = vunpack.c.l.b16 %v498
        %v804 = vunpack.c.l.b16 %v499
        %v805 = vunpack.c.l.b16 %v500
        %v806 = vunpack.c.l.b16 %v501
        %v807 = vunpack.c.l.b16 %v502
        %v808 = vunpack.c.l.b16 %v503
        %v809 = vunpack.c.l.b16 %v504
        %v810 = vunpack.c.l.b16 %v505
        %v811 = vunpack.c.l.b16 %v506
        %v812 = vunpack.c.l.b16 %v507
        %v813 = vunpack.c.l.b16 %v508
        %v814 = vpack.c.b16 %v799, %v798
        %v815 = vpack.c.b16 %v801, %v800
        %v816 = vpack.c.b16 %v803, %v802
        %v817 = vpack.c.b16 %v805, %v804
        %v818 = vpack.c.b16 %v807, %v806
        %v819 = vpack.c.b16 %v809, %v808
        %v820 = vpack.c.b16 %v811, %v810
        %v821 = vpack.c.b16 %v813, %v812
        %830 = vmatprep.subr.bf16.mxu0 0
        %831 = vmatpush1.bf16.msra.mxu0 %v814
        %832 = vmatprep.subr.bf16.mxu0 0
        %833 = vmatpush1.bf16.msra.mxu0 %v815
        %834 = vmatprep.subr.bf16.mxu0 0
        %835 = vmatpush1.bf16.msra.mxu0 %v816
        %836 = vmatprep.subr.bf16.mxu0 0
        %837 = vmatpush1.bf16.msra.mxu0 %v817
        %838 = vmatprep.subr.bf16.mxu0 0
        %839 = vmatpush1.bf16.msra.mxu0 %v818
        %840 = vmatprep.subr.bf16.mxu0 0
        %841 = vmatpush1.bf16.msra.mxu0 %v819
        %842 = vmatprep.subr.bf16.mxu0 0
        %843 = vmatpush1.bf16.msra.mxu0 %v820
        %844 = vmatprep.subr.bf16.mxu0 0
        %845 = vmatpush1.bf16.msra.mxu0 %v821
        %846 = vmatprep.subr.bf16.mxu0 0
        %847 = vmatpush1.bf16.msra.mxu0 0
        %848 = vmatprep.subr.bf16.mxu0 0
        %849 = vmatpush1.bf16.msra.mxu0 0
        %850 = vmatprep.subr.bf16.mxu0 0
        %851 = vmatpush1.bf16.msra.mxu0 0
        %852 = vmatprep.subr.bf16.mxu0 0
        %853 = vmatpush1.bf16.msra.mxu0 0
        %854 = vmatprep.subr.bf16.mxu0 0
        %855 = vmatpush1.bf16.msra.mxu0 0
        %856 = vmatprep.subr.bf16.mxu0 0
        %857 = vmatpush1.bf16.msra.mxu0 0
        %858 = vmatprep.subr.bf16.mxu0 0
        %859 = vmatpush1.bf16.msra.mxu0 0
        %860 = vmatprep.subr.bf16.mxu0 0
        %861 = vmatpush1.bf16.msra.mxu0 0
        %862 = vmatprep.mubr.bf16.mxu0 0
        %863 = vmatmul.mubr.bf16.gmra.mrb[0].mxu0 %v766
        %v864 = vpop.f32.mrb[0].mxu0
        %v865 = vadd.f32 0.0, %v864
        %v866 = vpop.f32.mrb[0].mxu0
        %v867 = vpop.f32.mrb[0].mxu0
        %v868 = vadd.f32 0.0, %v867
        %v869 = vpop.f32.mrb[0].mxu0
        %870 = vmatprep.mubr.bf16.mxu0 0
        %871 = vmatmul.mubr.bf16.gmra.mrb[0].mxu0 %v767
        %v872 = vpop.f32.mrb[0].mxu0
        %v873 = vadd.f32 0.0, %v872
        %v874 = vpop.f32.mrb[0].mxu0
        %v875 = vpop.f32.mrb[0].mxu0
        %v876 = vadd.f32 0.0, %v875
        %v877 = vpop.f32.mrb[0].mxu0
        %878 = vmatprep.mubr.bf16.mxu0 0
        %879 = vmatmul.mubr.bf16.gmra.mrb[0].mxu0 %v768
        %v880 = vpop.f32.mrb[0].mxu0
        %v881 = vadd.f32 0.0, %v880
        %v882 = vpop.f32.mrb[0].mxu0
        %v883 = vpop.f32.mrb[0].mxu0
        %v884 = vadd.f32 0.0, %v883
        %v885 = vpop.f32.mrb[0].mxu0
        %886 = vmatprep.mubr.bf16.mxu0 0
        %887 = vmatmul.mubr.bf16.gmra.mrb[0].mxu0 %v769
        %v888 = vpop.f32.mrb[0].mxu0
        %v889 = vadd.f32 0.0, %v888
        %v890 = vpop.f32.mrb[0].mxu0
        %v891 = vpop.f32.mrb[0].mxu0
        %v892 = vadd.f32 0.0, %v891
        %v893 = vpop.f32.mrb[0].mxu0
        %894 = vmatprep.mubr.bf16.mxu0 0
        %895 = vmatmul.mubr.bf16.gmra.mrb[0].mxu0 %v770
        %v896 = vpop.f32.mrb[0].mxu0
        %v897 = vadd.f32 0.0, %v896
        %v898 = vpop.f32.mrb[0].mxu0
        %v899 = vpop.f32.mrb[0].mxu0
        %v900 = vadd.f32 0.0, %v899
        %v901 = vpop.f32.mrb[0].mxu0
        %902 = vmatprep.mubr.bf16.mxu0 0
        %903 = vmatmul.mubr.bf16.gmra.mrb[0].mxu0 %v771
        %v904 = vpop.f32.mrb[0].mxu0
        %v905 = vadd.f32 0.0, %v904
        %v906 = vpop.f32.mrb[0].mxu0
        %v907 = vpop.f32.mrb[0].mxu0
        %v908 = vadd.f32 0.0, %v907
        %v909 = vpop.f32.mrb[0].mxu0
        %910 = vmatprep.mubr.bf16.mxu0 0
        %911 = vmatmul.mubr.bf16.gmra.mrb[0].mxu0 %v772
        %v912 = vpop.f32.mrb[0].mxu0
        %v913 = vadd.f32 0.0, %v912
        %v914 = vpop.f32.mrb[0].mxu0
        %v915 = vpop.f32.mrb[0].mxu0
        %v916 = vadd.f32 0.0, %v915
        %v917 = vpop.f32.mrb[0].mxu0
        %918 = vmatprep.mubr.bf16.mxu0 0
        %919 = vmatmul.mubr.bf16.gmra.mrb[0].mxu0 %v773
        %v920 = vpop.f32.mrb[0].mxu0
        %v921 = vadd.f32 0.0, %v920
        %v922 = vpop.f32.mrb[0].mxu0
        %v923 = vpop.f32.mrb[0].mxu0
        %v924 = vadd.f32 0.0, %v923
        %v925 = vpop.f32.mrb[0].mxu0
        %926 = vdwg.mxu0
        %v943 = vunpack.c.l.b16 %v445
        %v944 = vunpack.c.l.b16 %v446
        %v945 = vunpack.c.l.b16 %v447
        %v946 = vunpack.c.l.b16 %v448
        %v947 = vunpack.c.l.b16 %v449
        %v948 = vunpack.c.l.b16 %v450
        %v949 = vunpack.c.l.b16 %v451
        %v950 = vunpack.c.l.b16 %v452
        %v951 = vunpack.c.l.b16 %v453
        %v952 = vunpack.c.l.b16 %v454
        %v953 = vunpack.c.l.b16 %v455
        %v954 = vunpack.c.l.b16 %v456
        %v955 = vunpack.c.l.b16 %v457
        %v956 = vunpack.c.l.b16 %v458
        %v957 = vunpack.c.l.b16 %v459
        %v958 = vunpack.c.l.b16 %v460
        %v959 = vpack.c.b16 %v944, %v943
        %v960 = vpack.c.b16 %v946, %v945
        %v961 = vpack.c.b16 %v948, %v947
        %v962 = vpack.c.b16 %v950, %v949
        %v963 = vpack.c.b16 %v952, %v951
        %v964 = vpack.c.b16 %v954, %v953
        %v965 = vpack.c.b16 %v956, %v955
        %v966 = vpack.c.b16 %v958, %v957
        %v991 = vunpack.c.l.b16 %v509
        %v992 = vunpack.c.l.b16 %v510
        %v993 = vunpack.c.l.b16 %v511
        %v994 = vunpack.c.l.b16 %v512
        %v995 = vunpack.c.l.b16 %v513
        %v996 = vunpack.c.l.b16 %v514
        %v997 = vunpack.c.l.b16 %v515
        %v998 = vunpack.c.l.b16 %v516
        %v999 = vunpack.c.l.b16 %v517
        %v1000 = vunpack.c.l.b16 %v518
        %v1001 = vunpack.c.l.b16 %v519
        %v1002 = vunpack.c.l.b16 %v520
        %v1003 = vunpack.c.l.b16 %v521
        %v1004 = vunpack.c.l.b16 %v522
        %v1005 = vunpack.c.l.b16 %v523
        %v1006 = vunpack.c.l.b16 %v524
        %v1007 = vpack.c.b16 %v992, %v991
        %v1008 = vpack.c.b16 %v994, %v993
        %v1009 = vpack.c.b16 %v996, %v995
        %v1010 = vpack.c.b16 %v998, %v997
        %v1011 = vpack.c.b16 %v1000, %v999
        %v1012 = vpack.c.b16 %v1002, %v1001
        %v1013 = vpack.c.b16 %v1004, %v1003
        %v1014 = vpack.c.b16 %v1006, %v1005
        %1023 = vmatprep.subr.bf16.mxu0 0
        %1024 = vmatpush1.bf16.msra.mxu0 %v1007
        %1025 = vmatprep.subr.bf16.mxu0 0
        %1026 = vmatpush1.bf16.msra.mxu0 %v1008
        %1027 = vmatprep.subr.bf16.mxu0 0
        %1028 = vmatpush1.bf16.msra.mxu0 %v1009
        %1029 = vmatprep.subr.bf16.mxu0 0
        %1030 = vmatpush1.bf16.msra.mxu0 %v1010
        %1031 = vmatprep.subr.bf16.mxu0 0
        %1032 = vmatpush1.bf16.msra.mxu0 %v1011
        %1033 = vmatprep.subr.bf16.mxu0 0
        %1034 = vmatpush1.bf16.msra.mxu0 %v1012
        %1035 = vmatprep.subr.bf16.mxu0 0
        %1036 = vmatpush1.bf16.msra.mxu0 %v1013
        %1037 = vmatprep.subr.bf16.mxu0 0
        %1038 = vmatpush1.bf16.msra.mxu0 %v1014
        %1039 = vmatprep.subr.bf16.mxu0 0
        %1040 = vmatpush1.bf16.msra.mxu0 0
        %1041 = vmatprep.subr.bf16.mxu0 0
        %1042 = vmatpush1.bf16.msra.mxu0 0
        %1043 = vmatprep.subr.bf16.mxu0 0
        %1044 = vmatpush1.bf16.msra.mxu0 0
        %1045 = vmatprep.subr.bf16.mxu0 0
        %1046 = vmatpush1.bf16.msra.mxu0 0
        %1047 = vmatprep.subr.bf16.mxu0 0
        %1048 = vmatpush1.bf16.msra.mxu0 0
        %1049 = vmatprep.subr.bf16.mxu0 0
        %1050 = vmatpush1.bf16.msra.mxu0 0
        %1051 = vmatprep.subr.bf16.mxu0 0
        %1052 = vmatpush1.bf16.msra.mxu0 0
        %1053 = vmatprep.subr.bf16.mxu0 0
        %1054 = vmatpush1.bf16.msra.mxu0 0
        %1055 = vmatprep.mubr.bf16.mxu0 0
        %1056 = vmatmul.mubr.bf16.gmra.mrb[0].mxu0 %v959
        %v1057 = vpop.f32.mrb[0].mxu0
        %v1058 = vadd.f32 0.0, %v1057
        %v1059 = vpop.f32.mrb[0].mxu0
        %v1060 = vpop.f32.mrb[0].mxu0
        %v1061 = vadd.f32 0.0, %v1060
        %v1062 = vpop.f32.mrb[0].mxu0
        %1063 = vmatprep.mubr.bf16.mxu0 0
        %1064 = vmatmul.mubr.bf16.gmra.mrb[0].mxu0 %v960
        %v1065 = vpop.f32.mrb[0].mxu0
        %v1066 = vadd.f32 0.0, %v1065
        %v1067 = vpop.f32.mrb[0].mxu0
        %v1068 = vpop.f32.mrb[0].mxu0
        %v1069 = vadd.f32 0.0, %v1068
        %v1070 = vpop.f32.mrb[0].mxu0
        %1071 = vmatprep.mubr.bf16.mxu0 0
        %1072 = vmatmul.mubr.bf16.gmra.mrb[0].mxu0 %v961
        %v1073 = vpop.f32.mrb[0].mxu0
        %v1074 = vadd.f32 0.0, %v1073
        %v1075 = vpop.f32.mrb[0].mxu0
        %v1076 = vpop.f32.mrb[0].mxu0
        %v1077 = vadd.f32 0.0, %v1076
        %v1078 = vpop.f32.mrb[0].mxu0
        %1079 = vmatprep.mubr.bf16.mxu0 0
        %1080 = vmatmul.mubr.bf16.gmra.mrb[0].mxu0 %v962
        %v1081 = vpop.f32.mrb[0].mxu0
        %v1082 = vadd.f32 0.0, %v1081
        %v1083 = vpop.f32.mrb[0].mxu0
        %v1084 = vpop.f32.mrb[0].mxu0
        %v1085 = vadd.f32 0.0, %v1084
        %v1086 = vpop.f32.mrb[0].mxu0
        %1087 = vmatprep.mubr.bf16.mxu0 0
        %1088 = vmatmul.mubr.bf16.gmra.mrb[0].mxu0 %v963
        %v1089 = vpop.f32.mrb[0].mxu0
        %v1090 = vadd.f32 0.0, %v1089
        %v1091 = vpop.f32.mrb[0].mxu0
        %v1092 = vpop.f32.mrb[0].mxu0
        %v1093 = vadd.f32 0.0, %v1092
        %v1094 = vpop.f32.mrb[0].mxu0
        %1095 = vmatprep.mubr.bf16.mxu0 0
        %1096 = vmatmul.mubr.bf16.gmra.mrb[0].mxu0 %v964
        %v1097 = vpop.f32.mrb[0].mxu0
        %v1098 = vadd.f32 0.0, %v1097
        %v1099 = vpop.f32.mrb[0].mxu0
        %v1100 = vpop.f32.mrb[0].mxu0
        %v1101 = vadd.f32 0.0, %v1100
        %v1102 = vpop.f32.mrb[0].mxu0
        %1103 = vmatprep.mubr.bf16.mxu0 0
        %1104 = vmatmul.mubr.bf16.gmra.mrb[0].mxu0 %v965
        %v1105 = vpop.f32.mrb[0].mxu0
        %v1106 = vadd.f32 0.0, %v1105
        %v1107 = vpop.f32.mrb[0].mxu0
        %v1108 = vpop.f32.mrb[0].mxu0
        %v1109 = vadd.f32 0.0, %v1108
        %v1110 = vpop.f32.mrb[0].mxu0
        %1111 = vmatprep.mubr.bf16.mxu0 0
        %1112 = vmatmul.mubr.bf16.gmra.mrb[0].mxu0 %v966
        %v1113 = vpop.f32.mrb[0].mxu0
        %v1114 = vadd.f32 0.0, %v1113
        %v1115 = vpop.f32.mrb[0].mxu0
        %v1116 = vpop.f32.mrb[0].mxu0
        %v1117 = vadd.f32 0.0, %v1116
        %v1118 = vpop.f32.mrb[0].mxu0
        %1119 = vdwg.mxu0
        %v1136 = vunpack.c.l.b16 %v461
        %v1137 = vunpack.c.l.b16 %v462
        %v1138 = vunpack.c.l.b16 %v463
        %v1139 = vunpack.c.l.b16 %v464
        %v1140 = vunpack.c.l.b16 %v465
        %v1141 = vunpack.c.l.b16 %v466
        %v1142 = vunpack.c.l.b16 %v467
        %v1143 = vunpack.c.l.b16 %v468
        %v1144 = vunpack.c.l.b16 %v469
        %v1145 = vunpack.c.l.b16 %v470
        %v1146 = vunpack.c.l.b16 %v471
        %v1147 = vunpack.c.l.b16 %v472
        %v1148 = vunpack.c.l.b16 %v473
        %v1149 = vunpack.c.l.b16 %v474
        %v1150 = vunpack.c.l.b16 %v475
        %v1151 = vunpack.c.l.b16 %v476
        %v1152 = vpack.c.b16 %v1137, %v1136
        %v1153 = vpack.c.b16 %v1139, %v1138
        %v1154 = vpack.c.b16 %v1141, %v1140
        %v1155 = vpack.c.b16 %v1143, %v1142
        %v1156 = vpack.c.b16 %v1145, %v1144
        %v1157 = vpack.c.b16 %v1147, %v1146
        %v1158 = vpack.c.b16 %v1149, %v1148
        %v1159 = vpack.c.b16 %v1151, %v1150
        %v1184 = vunpack.c.l.b16 %v525
        %v1185 = vunpack.c.l.b16 %v526
        %v1186 = vunpack.c.l.b16 %v527
        %v1187 = vunpack.c.l.b16 %v528
        %v1188 = vunpack.c.l.b16 %v529
        %v1189 = vunpack.c.l.b16 %v530
        %v1190 = vunpack.c.l.b16 %v531
        %v1191 = vunpack.c.l.b16 %v532
        %v1192 = vunpack.c.l.b16 %v533
        %v1193 = vunpack.c.l.b16 %v534
        %v1194 = vunpack.c.l.b16 %v535
        %v1195 = vunpack.c.l.b16 %v536
        %v1196 = vunpack.c.l.b16 %v537
        %v1197 = vunpack.c.l.b16 %v538
        %v1198 = vunpack.c.l.b16 %v539
        %v1199 = vunpack.c.l.b16 %v540
        %v1200 = vpack.c.b16 %v1185, %v1184
        %v1201 = vpack.c.b16 %v1187, %v1186
        %v1202 = vpack.c.b16 %v1189, %v1188
        %v1203 = vpack.c.b16 %v1191, %v1190
        %v1204 = vpack.c.b16 %v1193, %v1192
        %v1205 = vpack.c.b16 %v1195, %v1194
        %v1206 = vpack.c.b16 %v1197, %v1196
        %v1207 = vpack.c.b16 %v1199, %v1198
        %1216 = vmatprep.subr.bf16.mxu0 0
        %1217 = vmatpush1.bf16.msra.mxu0 %v1200
        %1218 = vmatprep.subr.bf16.mxu0 0
        %1219 = vmatpush1.bf16.msra.mxu0 %v1201
        %1220 = vmatprep.subr.bf16.mxu0 0
        %1221 = vmatpush1.bf16.msra.mxu0 %v1202
        %1222 = vmatprep.subr.bf16.mxu0 0
        %1223 = vmatpush1.bf16.msra.mxu0 %v1203
        %1224 = vmatprep.subr.bf16.mxu0 0
        %1225 = vmatpush1.bf16.msra.mxu0 %v1204
        %1226 = vmatprep.subr.bf16.mxu0 0
        %1227 = vmatpush1.bf16.msra.mxu0 %v1205
        %1228 = vmatprep.subr.bf16.mxu0 0
        %1229 = vmatpush1.bf16.msra.mxu0 %v1206
        %1230 = vmatprep.subr.bf16.mxu0 0
        %1231 = vmatpush1.bf16.msra.mxu0 %v1207
        %1232 = vmatprep.subr.bf16.mxu0 0
        %1233 = vmatpush1.bf16.msra.mxu0 0
        %1234 = vmatprep.subr.bf16.mxu0 0
        %1235 = vmatpush1.bf16.msra.mxu0 0
        %1236 = vmatprep.subr.bf16.mxu0 0
        %1237 = vmatpush1.bf16.msra.mxu0 0
        %1238 = vmatprep.subr.bf16.mxu0 0
        %1239 = vmatpush1.bf16.msra.mxu0 0
        %1240 = vmatprep.subr.bf16.mxu0 0
        %1241 = vmatpush1.bf16.msra.mxu0 0
        %1242 = vmatprep.subr.bf16.mxu0 0
        %1243 = vmatpush1.bf16.msra.mxu0 0
        %1244 = vmatprep.subr.bf16.mxu0 0
        %1245 = vmatpush1.bf16.msra.mxu0 0
        %1246 = vmatprep.subr.bf16.mxu0 0
        %1247 = vmatpush1.bf16.msra.mxu0 0
        %1248 = vmatprep.mubr.bf16.mxu0 0
        %1249 = vmatmul.mubr.bf16.gmra.mrb[0].mxu0 %v1152
        %v1250 = vpop.f32.mrb[0].mxu0
        %v1251 = vadd.f32 0.0, %v1250
        %v1252 = vpop.f32.mrb[0].mxu0
        %v1253 = vpop.f32.mrb[0].mxu0
        %v1254 = vadd.f32 0.0, %v1253
        %v1255 = vpop.f32.mrb[0].mxu0
        %1256 = vmatprep.mubr.bf16.mxu0 0
        %1257 = vmatmul.mubr.bf16.gmra.mrb[0].mxu0 %v1153
        %v1258 = vpop.f32.mrb[0].mxu0
        %v1259 = vadd.f32 0.0, %v1258
        %v1260 = vpop.f32.mrb[0].mxu0
        %v1261 = vpop.f32.mrb[0].mxu0
        %v1262 = vadd.f32 0.0, %v1261
        %v1263 = vpop.f32.mrb[0].mxu0
        %1264 = vmatprep.mubr.bf16.mxu0 0
        %1265 = vmatmul.mubr.bf16.gmra.mrb[0].mxu0 %v1154
        %v1266 = vpop.f32.mrb[0].mxu0
        %v1267 = vadd.f32 0.0, %v1266
        %v1268 = vpop.f32.mrb[0].mxu0
        %v1269 = vpop.f32.mrb[0].mxu0
        %v1270 = vadd.f32 0.0, %v1269
        %v1271 = vpop.f32.mrb[0].mxu0
        %1272 = vmatprep.mubr.bf16.mxu0 0
        %1273 = vmatmul.mubr.bf16.gmra.mrb[0].mxu0 %v1155
        %v1274 = vpop.f32.mrb[0].mxu0
        %v1275 = vadd.f32 0.0, %v1274
        %v1276 = vpop.f32.mrb[0].mxu0
        %v1277 = vpop.f32.mrb[0].mxu0
        %v1278 = vadd.f32 0.0, %v1277
        %v1279 = vpop.f32.mrb[0].mxu0
        %1280 = vmatprep.mubr.bf16.mxu0 0
        %1281 = vmatmul.mubr.bf16.gmra.mrb[0].mxu0 %v1156
        %v1282 = vpop.f32.mrb[0].mxu0
        %v1283 = vadd.f32 0.0, %v1282
        %v1284 = vpop.f32.mrb[0].mxu0
        %v1285 = vpop.f32.mrb[0].mxu0
        %v1286 = vadd.f32 0.0, %v1285
        %v1287 = vpop.f32.mrb[0].mxu0
        %1288 = vmatprep.mubr.bf16.mxu0 0
        %1289 = vmatmul.mubr.bf16.gmra.mrb[0].mxu0 %v1157
        %v1290 = vpop.f32.mrb[0].mxu0
        %v1291 = vadd.f32 0.0, %v1290
        %v1292 = vpop.f32.mrb[0].mxu0
        %v1293 = vpop.f32.mrb[0].mxu0
        %v1294 = vadd.f32 0.0, %v1293
        %v1295 = vpop.f32.mrb[0].mxu0
        %1296 = vmatprep.mubr.bf16.mxu0 0
        %1297 = vmatmul.mubr.bf16.gmra.mrb[0].mxu0 %v1158
        %v1298 = vpop.f32.mrb[0].mxu0
        %v1299 = vadd.f32 0.0, %v1298
        %v1300 = vpop.f32.mrb[0].mxu0
        %v1301 = vpop.f32.mrb[0].mxu0
        %v1302 = vadd.f32 0.0, %v1301
        %v1303 = vpop.f32.mrb[0].mxu0
        %1304 = vmatprep.mubr.bf16.mxu0 0
        %1305 = vmatmul.mubr.bf16.gmra.mrb[0].mxu0 %v1159
        %v1306 = vpop.f32.mrb[0].mxu0
        %v1307 = vadd.f32 0.0, %v1306
        %v1308 = vpop.f32.mrb[0].mxu0
        %v1309 = vpop.f32.mrb[0].mxu0
        %v1310 = vadd.f32 0.0, %v1309
        %v1311 = vpop.f32.mrb[0].mxu0
        %1312 = vdwg.mxu0
        %v1313 = vpack.c.bf16 %v675, %v672
        %v1314 = vpack.c.bf16 %v683, %v680
        %v1315 = vpack.c.bf16 %v691, %v688
        %v1316 = vpack.c.bf16 %v699, %v696
        %v1317 = vpack.c.bf16 %v707, %v704
        %v1318 = vpack.c.bf16 %v715, %v712
        %v1319 = vpack.c.bf16 %v723, %v720
        %v1320 = vpack.c.bf16 %v731, %v728
        %v1321 = vpack.c.bf16 %v868, %v865
        %v1322 = vpack.c.bf16 %v876, %v873
        %v1323 = vpack.c.bf16 %v884, %v881
        %v1324 = vpack.c.bf16 %v892, %v889
        %v1325 = vpack.c.bf16 %v900, %v897
        %v1326 = vpack.c.bf16 %v908, %v905
        %v1327 = vpack.c.bf16 %v916, %v913
        %v1328 = vpack.c.bf16 %v924, %v921
        %v1329 = vpack.c.bf16 %v1061, %v1058
        %v1330 = vpack.c.bf16 %v1069, %v1066
        %v1331 = vpack.c.bf16 %v1077, %v1074
        %v1332 = vpack.c.bf16 %v1085, %v1082
        %v1333 = vpack.c.bf16 %v1093, %v1090
        %v1334 = vpack.c.bf16 %v1101, %v1098
        %v1335 = vpack.c.bf16 %v1109, %v1106
        %v1336 = vpack.c.bf16 %v1117, %v1114
        %v1337 = vpack.c.bf16 %v1254, %v1251
        %v1338 = vpack.c.bf16 %v1262, %v1259
        %v1339 = vpack.c.bf16 %v1270, %v1267
        %v1340 = vpack.c.bf16 %v1278, %v1275
        %v1341 = vpack.c.bf16 %v1286, %v1283
        %v1342 = vpack.c.bf16 %v1294, %v1291
        %v1343 = vpack.c.bf16 %v1302, %v1299
        %v1344 = vpack.c.bf16 %v1310, %v1307
        %v1345 = vld [vmem:[#allocation7] sm:$0xf]
        %v1346 = vld [vmem:[#allocation7 + $0x4] sm:$0xf]
        %v1347 = vld [vmem:[#allocation7 + $0x8] sm:$0xf]
        %v1348 = vld [vmem:[#allocation7 + $0xc] sm:$0xf]
        %v1349 = vld [vmem:[#allocation7 + $0x10] sm:$0xf]
        %v1350 = vld [vmem:[#allocation7 + $0x14] sm:$0xf]
        %v1351 = vld [vmem:[#allocation7 + $0x18] sm:$0xf]
        %v1352 = vld [vmem:[#allocation7 + $0x1c] sm:$0xf]
        %v1353 = vld [vmem:[#allocation7 + $0x20] sm:$0xf]
        %v1354 = vld [vmem:[#allocation7 + $0x24] sm:$0xf]
        %v1355 = vld [vmem:[#allocation7 + $0x28] sm:$0xf]
        %v1356 = vld [vmem:[#allocation7 + $0x2c] sm:$0xf]
        %v1357 = vld [vmem:[#allocation7 + $0x30] sm:$0xf]
        %v1358 = vld [vmem:[#allocation7 + $0x34] sm:$0xf]
        %v1359 = vld [vmem:[#allocation7 + $0x38] sm:$0xf]
        %v1360 = vld [vmem:[#allocation7 + $0x3c] sm:$0xf]
        %v1361 = vld [vmem:[%s3] sm:$0x1]
        %v1363 = vlaneseq
        %v1364 = vshrl.u32 %v1363, 7
        %v1365 = vsub.s32 0, %v1364
        %v1366 = vrot.slane %v1361, %v1365
        %v1384 = vunpack.c.l.b16 %v1345
        %v1385 = vunpack.c.l.b16 %v1346
        %v1386 = vunpack.c.l.b16 %v1347
        %v1387 = vunpack.c.l.b16 %v1348
        %v1388 = vunpack.c.l.b16 %v1349
        %v1389 = vunpack.c.l.b16 %v1350
        %v1390 = vunpack.c.l.b16 %v1351
        %v1391 = vunpack.c.l.b16 %v1352
        %v1392 = vunpack.c.l.b16 %v1353
        %v1393 = vunpack.c.l.b16 %v1354
        %v1394 = vunpack.c.l.b16 %v1355
        %v1395 = vunpack.c.l.b16 %v1356
        %v1396 = vunpack.c.l.b16 %v1357
        %v1397 = vunpack.c.l.b16 %v1358
        %v1398 = vunpack.c.l.b16 %v1359
        %v1399 = vunpack.c.l.b16 %v1360
        %v1400 = vpack.c.b16 %v1385, %v1384
        %v1401 = vpack.c.b16 %v1387, %v1386
        %v1402 = vpack.c.b16 %v1389, %v1388
        %v1403 = vpack.c.b16 %v1391, %v1390
        %v1404 = vpack.c.b16 %v1393, %v1392
        %v1405 = vpack.c.b16 %v1395, %v1394
        %v1406 = vpack.c.b16 %v1397, %v1396
        %v1407 = vpack.c.b16 %v1399, %v1398
        %1416 = vmatprep.subr.bf16.mxu0 0
        %1417 = vmatpush1.bf16.msra.mxu0 %v1400
        %1418 = vmatprep.subr.bf16.mxu0 0
        %1419 = vmatpush1.bf16.msra.mxu0 %v1401
        %1420 = vmatprep.subr.bf16.mxu0 0
        %1421 = vmatpush1.bf16.msra.mxu0 %v1402
        %1422 = vmatprep.subr.bf16.mxu0 0
        %1423 = vmatpush1.bf16.msra.mxu0 %v1403
        %1424 = vmatprep.subr.bf16.mxu0 0
        %1425 = vmatpush1.bf16.msra.mxu0 %v1404
        %1426 = vmatprep.subr.bf16.mxu0 0
        %1427 = vmatpush1.bf16.msra.mxu0 %v1405
        %1428 = vmatprep.subr.bf16.mxu0 0
        %1429 = vmatpush1.bf16.msra.mxu0 %v1406
        %1430 = vmatprep.subr.bf16.mxu0 0
        %1431 = vmatpush1.bf16.msra.mxu0 %v1407
        %1432 = vmatprep.subr.bf16.mxu0 0
        %1433 = vmatpush1.bf16.msra.mxu0 0
        %1434 = vmatprep.subr.bf16.mxu0 0
        %1435 = vmatpush1.bf16.msra.mxu0 0
        %1436 = vmatprep.subr.bf16.mxu0 0
        %1437 = vmatpush1.bf16.msra.mxu0 0
        %1438 = vmatprep.subr.bf16.mxu0 0
        %1439 = vmatpush1.bf16.msra.mxu0 0
        %1440 = vmatprep.subr.bf16.mxu0 0
        %1441 = vmatpush1.bf16.msra.mxu0 0
        %1442 = vmatprep.subr.bf16.mxu0 0
        %1443 = vmatpush1.bf16.msra.mxu0 0
        %1444 = vmatprep.subr.bf16.mxu0 0
        %1445 = vmatpush1.bf16.msra.mxu0 0
        %1446 = vmatprep.subr.bf16.mxu0 0
        %1447 = vmatpush1.bf16.msra.mxu0 0
        %1448 = vmatprep.mubr.bf16.mxu0 0
        %1449 = vmatmul.mubr.bf16.gmra.mrb[0].mxu0 %v1313
        %v1450 = vpop.f32.mrb[0].mxu0
        %v1451 = vadd.f32 %v1366, %v1450
        %v1452 = vpop.f32.mrb[0].mxu0
        %v1453 = vpop.f32.mrb[0].mxu0
        %v1454 = vadd.f32 %v1366, %v1453
        %v1455 = vpop.f32.mrb[0].mxu0
        %1456 = vmatprep.mubr.bf16.mxu0 0
        %1457 = vmatmul.mubr.bf16.gmra.mrb[0].mxu0 %v1314
        %v1458 = vpop.f32.mrb[0].mxu0
        %v1459 = vadd.f32 %v1366, %v1458
        %v1460 = vpop.f32.mrb[0].mxu0
        %v1461 = vpop.f32.mrb[0].mxu0
        %v1462 = vadd.f32 %v1366, %v1461
        %v1463 = vpop.f32.mrb[0].mxu0
        %1464 = vmatprep.mubr.bf16.mxu0 0
        %1465 = vmatmul.mubr.bf16.gmra.mrb[0].mxu0 %v1315
        %v1466 = vpop.f32.mrb[0].mxu0
        %v1467 = vadd.f32 %v1366, %v1466
        %v1468 = vpop.f32.mrb[0].mxu0
        %v1469 = vpop.f32.mrb[0].mxu0
        %v1470 = vadd.f32 %v1366, %v1469
        %v1471 = vpop.f32.mrb[0].mxu0
        %1472 = vmatprep.mubr.bf16.mxu0 0
        %1473 = vmatmul.mubr.bf16.gmra.mrb[0].mxu0 %v1316
        %v1474 = vpop.f32.mrb[0].mxu0
        %v1475 = vadd.f32 %v1366, %v1474
        %v1476 = vpop.f32.mrb[0].mxu0
        %v1477 = vpop.f32.mrb[0].mxu0
        %v1478 = vadd.f32 %v1366, %v1477
        %v1479 = vpop.f32.mrb[0].mxu0
        %1480 = vmatprep.mubr.bf16.mxu0 0
        %1481 = vmatmul.mubr.bf16.gmra.mrb[0].mxu0 %v1317
        %v1482 = vpop.f32.mrb[0].mxu0
        %v1483 = vadd.f32 %v1366, %v1482
        %v1484 = vpop.f32.mrb[0].mxu0
        %v1485 = vpop.f32.mrb[0].mxu0
        %v1486 = vadd.f32 %v1366, %v1485
        %v1487 = vpop.f32.mrb[0].mxu0
        %1488 = vmatprep.mubr.bf16.mxu0 0
        %1489 = vmatmul.mubr.bf16.gmra.mrb[0].mxu0 %v1318
        %v1490 = vpop.f32.mrb[0].mxu0
        %v1491 = vadd.f32 %v1366, %v1490
        %v1492 = vpop.f32.mrb[0].mxu0
        %v1493 = vpop.f32.mrb[0].mxu0
        %v1494 = vadd.f32 %v1366, %v1493
        %v1495 = vpop.f32.mrb[0].mxu0
        %1496 = vmatprep.mubr.bf16.mxu0 0
        %1497 = vmatmul.mubr.bf16.gmra.mrb[0].mxu0 %v1319
        %v1498 = vpop.f32.mrb[0].mxu0
        %v1499 = vadd.f32 %v1366, %v1498
        %v1500 = vpop.f32.mrb[0].mxu0
        %v1501 = vpop.f32.mrb[0].mxu0
        %v1502 = vadd.f32 %v1366, %v1501
        %v1503 = vpop.f32.mrb[0].mxu0
        %1504 = vmatprep.mubr.bf16.mxu0 0
        %1505 = vmatmul.mubr.bf16.gmra.mrb[0].mxu0 %v1320
        %v1506 = vpop.f32.mrb[0].mxu0
        %v1507 = vadd.f32 %v1366, %v1506
        %v1508 = vpop.f32.mrb[0].mxu0
        %v1509 = vpop.f32.mrb[0].mxu0
        %v1510 = vadd.f32 %v1366, %v1509
        %v1511 = vpop.f32.mrb[0].mxu0
        %1512 = vmatprep.mubr.bf16.mxu0 0
        %1513 = vmatmul.mubr.bf16.gmra.mrb[0].mxu0 %v1321
        %v1514 = vpop.f32.mrb[0].mxu0
        %v1515 = vadd.f32 %v1366, %v1514
        %v1516 = vpop.f32.mrb[0].mxu0
        %v1517 = vpop.f32.mrb[0].mxu0
        %v1518 = vadd.f32 %v1366, %v1517
        %v1519 = vpop.f32.mrb[0].mxu0
        %1520 = vmatprep.mubr.bf16.mxu0 0
        %1521 = vmatmul.mubr.bf16.gmra.mrb[0].mxu0 %v1322
        %v1522 = vpop.f32.mrb[0].mxu0
        %v1523 = vadd.f32 %v1366, %v1522
        %v1524 = vpop.f32.mrb[0].mxu0
        %v1525 = vpop.f32.mrb[0].mxu0
        %v1526 = vadd.f32 %v1366, %v1525
        %v1527 = vpop.f32.mrb[0].mxu0
        %1528 = vmatprep.mubr.bf16.mxu0 0
        %1529 = vmatmul.mubr.bf16.gmra.mrb[0].mxu0 %v1323
        %v1530 = vpop.f32.mrb[0].mxu0
        %v1531 = vadd.f32 %v1366, %v1530
        %v1532 = vpop.f32.mrb[0].mxu0
        %v1533 = vpop.f32.mrb[0].mxu0
        %v1534 = vadd.f32 %v1366, %v1533
        %v1535 = vpop.f32.mrb[0].mxu0
        %1536 = vmatprep.mubr.bf16.mxu0 0
        %1537 = vmatmul.mubr.bf16.gmra.mrb[0].mxu0 %v1324
        %v1538 = vpop.f32.mrb[0].mxu0
        %v1539 = vadd.f32 %v1366, %v1538
        %v1540 = vpop.f32.mrb[0].mxu0
        %v1541 = vpop.f32.mrb[0].mxu0
        %v1542 = vadd.f32 %v1366, %v1541
        %v1543 = vpop.f32.mrb[0].mxu0
        %1544 = vmatprep.mubr.bf16.mxu0 0
        %1545 = vmatmul.mubr.bf16.gmra.mrb[0].mxu0 %v1325
        %v1546 = vpop.f32.mrb[0].mxu0
        %v1547 = vadd.f32 %v1366, %v1546
        %v1548 = vpop.f32.mrb[0].mxu0
        %v1549 = vpop.f32.mrb[0].mxu0
        %v1550 = vadd.f32 %v1366, %v1549
        %v1551 = vpop.f32.mrb[0].mxu0
        %1552 = vmatprep.mubr.bf16.mxu0 0
        %1553 = vmatmul.mubr.bf16.gmra.mrb[0].mxu0 %v1326
        %v1554 = vpop.f32.mrb[0].mxu0
        %v1555 = vadd.f32 %v1366, %v1554
        %v1556 = vpop.f32.mrb[0].mxu0
        %v1557 = vpop.f32.mrb[0].mxu0
        %v1558 = vadd.f32 %v1366, %v1557
        %v1559 = vpop.f32.mrb[0].mxu0
        %1560 = vmatprep.mubr.bf16.mxu0 0
        %1561 = vmatmul.mubr.bf16.gmra.mrb[0].mxu0 %v1327
        %v1562 = vpop.f32.mrb[0].mxu0
        %v1563 = vadd.f32 %v1366, %v1562
        %v1564 = vpop.f32.mrb[0].mxu0
        %v1565 = vpop.f32.mrb[0].mxu0
        %v1566 = vadd.f32 %v1366, %v1565
        %v1567 = vpop.f32.mrb[0].mxu0
        %1568 = vmatprep.mubr.bf16.mxu0 0
        %1569 = vmatmul.mubr.bf16.gmra.mrb[0].mxu0 %v1328
        %v1570 = vpop.f32.mrb[0].mxu0
        %v1571 = vadd.f32 %v1366, %v1570
        %v1572 = vpop.f32.mrb[0].mxu0
        %v1573 = vpop.f32.mrb[0].mxu0
        %v1574 = vadd.f32 %v1366, %v1573
        %v1575 = vpop.f32.mrb[0].mxu0
        %1576 = vmatprep.mubr.bf16.mxu0 0
        %1577 = vmatmul.mubr.bf16.gmra.mrb[0].mxu0 %v1329
        %v1578 = vpop.f32.mrb[0].mxu0
        %v1579 = vadd.f32 %v1366, %v1578
        %v1580 = vpop.f32.mrb[0].mxu0
        %v1581 = vpop.f32.mrb[0].mxu0
        %v1582 = vadd.f32 %v1366, %v1581
        %v1583 = vpop.f32.mrb[0].mxu0
        %1584 = vmatprep.mubr.bf16.mxu0 0
        %1585 = vmatmul.mubr.bf16.gmra.mrb[0].mxu0 %v1330
        %v1586 = vpop.f32.mrb[0].mxu0
        %v1587 = vadd.f32 %v1366, %v1586
        %v1588 = vpop.f32.mrb[0].mxu0
        %v1589 = vpop.f32.mrb[0].mxu0
        %v1590 = vadd.f32 %v1366, %v1589
        %v1591 = vpop.f32.mrb[0].mxu0
        %1592 = vmatprep.mubr.bf16.mxu0 0
        %1593 = vmatmul.mubr.bf16.gmra.mrb[0].mxu0 %v1331
        %v1594 = vpop.f32.mrb[0].mxu0
        %v1595 = vadd.f32 %v1366, %v1594
        %v1596 = vpop.f32.mrb[0].mxu0
        %v1597 = vpop.f32.mrb[0].mxu0
        %v1598 = vadd.f32 %v1366, %v1597
        %v1599 = vpop.f32.mrb[0].mxu0
        %1600 = vmatprep.mubr.bf16.mxu0 0
        %1601 = vmatmul.mubr.bf16.gmra.mrb[0].mxu0 %v1332
        %v1602 = vpop.f32.mrb[0].mxu0
        %v1603 = vadd.f32 %v1366, %v1602
        %v1604 = vpop.f32.mrb[0].mxu0
        %v1605 = vpop.f32.mrb[0].mxu0
        %v1606 = vadd.f32 %v1366, %v1605
        %v1607 = vpop.f32.mrb[0].mxu0
        %1608 = vmatprep.mubr.bf16.mxu0 0
        %1609 = vmatmul.mubr.bf16.gmra.mrb[0].mxu0 %v1333
        %v1610 = vpop.f32.mrb[0].mxu0
        %v1611 = vadd.f32 %v1366, %v1610
        %v1612 = vpop.f32.mrb[0].mxu0
        %v1613 = vpop.f32.mrb[0].mxu0
        %v1614 = vadd.f32 %v1366, %v1613
        %v1615 = vpop.f32.mrb[0].mxu0
        %1616 = vmatprep.mubr.bf16.mxu0 0
        %1617 = vmatmul.mubr.bf16.gmra.mrb[0].mxu0 %v1334
        %v1618 = vpop.f32.mrb[0].mxu0
        %v1619 = vadd.f32 %v1366, %v1618
        %v1620 = vpop.f32.mrb[0].mxu0
        %v1621 = vpop.f32.mrb[0].mxu0
        %v1622 = vadd.f32 %v1366, %v1621
        %v1623 = vpop.f32.mrb[0].mxu0
        %1624 = vmatprep.mubr.bf16.mxu0 0
        %1625 = vmatmul.mubr.bf16.gmra.mrb[0].mxu0 %v1335
        %v1626 = vpop.f32.mrb[0].mxu0
        %v1627 = vadd.f32 %v1366, %v1626
        %v1628 = vpop.f32.mrb[0].mxu0
        %v1629 = vpop.f32.mrb[0].mxu0
        %v1630 = vadd.f32 %v1366, %v1629
        %v1631 = vpop.f32.mrb[0].mxu0
        %1632 = vmatprep.mubr.bf16.mxu0 0
        %1633 = vmatmul.mubr.bf16.gmra.mrb[0].mxu0 %v1336
        %v1634 = vpop.f32.mrb[0].mxu0
        %v1635 = vadd.f32 %v1366, %v1634
        %v1636 = vpop.f32.mrb[0].mxu0
        %v1637 = vpop.f32.mrb[0].mxu0
        %v1638 = vadd.f32 %v1366, %v1637
        %v1639 = vpop.f32.mrb[0].mxu0
        %1640 = vmatprep.mubr.bf16.mxu0 0
        %1641 = vmatmul.mubr.bf16.gmra.mrb[0].mxu0 %v1337
        %v1642 = vpop.f32.mrb[0].mxu0
        %v1643 = vadd.f32 %v1366, %v1642
        %v1644 = vpop.f32.mrb[0].mxu0
        %v1645 = vpop.f32.mrb[0].mxu0
        %v1646 = vadd.f32 %v1366, %v1645
        %v1647 = vpop.f32.mrb[0].mxu0
        %1648 = vmatprep.mubr.bf16.mxu0 0
        %1649 = vmatmul.mubr.bf16.gmra.mrb[0].mxu0 %v1338
        %v1650 = vpop.f32.mrb[0].mxu0
        %v1651 = vadd.f32 %v1366, %v1650
        %v1652 = vpop.f32.mrb[0].mxu0
        %v1653 = vpop.f32.mrb[0].mxu0
        %v1654 = vadd.f32 %v1366, %v1653
        %v1655 = vpop.f32.mrb[0].mxu0
        %1656 = vmatprep.mubr.bf16.mxu0 0
        %1657 = vmatmul.mubr.bf16.gmra.mrb[0].mxu0 %v1339
        %v1658 = vpop.f32.mrb[0].mxu0
        %v1659 = vadd.f32 %v1366, %v1658
        %v1660 = vpop.f32.mrb[0].mxu0
        %v1661 = vpop.f32.mrb[0].mxu0
        %v1662 = vadd.f32 %v1366, %v1661
        %v1663 = vpop.f32.mrb[0].mxu0
        %1664 = vmatprep.mubr.bf16.mxu0 0
        %1665 = vmatmul.mubr.bf16.gmra.mrb[0].mxu0 %v1340
        %v1666 = vpop.f32.mrb[0].mxu0
        %v1667 = vadd.f32 %v1366, %v1666
        %v1668 = vpop.f32.mrb[0].mxu0
        %v1669 = vpop.f32.mrb[0].mxu0
        %v1670 = vadd.f32 %v1366, %v1669
        %v1671 = vpop.f32.mrb[0].mxu0
        %1672 = vmatprep.mubr.bf16.mxu0 0
        %1673 = vmatmul.mubr.bf16.gmra.mrb[0].mxu0 %v1341
        %v1674 = vpop.f32.mrb[0].mxu0
        %v1675 = vadd.f32 %v1366, %v1674
        %v1676 = vpop.f32.mrb[0].mxu0
        %v1677 = vpop.f32.mrb[0].mxu0
        %v1678 = vadd.f32 %v1366, %v1677
        %v1679 = vpop.f32.mrb[0].mxu0
        %1680 = vmatprep.mubr.bf16.mxu0 0
        %1681 = vmatmul.mubr.bf16.gmra.mrb[0].mxu0 %v1342
        %v1682 = vpop.f32.mrb[0].mxu0
        %v1683 = vadd.f32 %v1366, %v1682
        %v1684 = vpop.f32.mrb[0].mxu0
        %v1685 = vpop.f32.mrb[0].mxu0
        %v1686 = vadd.f32 %v1366, %v1685
        %v1687 = vpop.f32.mrb[0].mxu0
        %1688 = vmatprep.mubr.bf16.mxu0 0
        %1689 = vmatmul.mubr.bf16.gmra.mrb[0].mxu0 %v1343
        %v1690 = vpop.f32.mrb[0].mxu0
        %v1691 = vadd.f32 %v1366, %v1690
        %v1692 = vpop.f32.mrb[0].mxu0
        %v1693 = vpop.f32.mrb[0].mxu0
        %v1694 = vadd.f32 %v1366, %v1693
        %v1695 = vpop.f32.mrb[0].mxu0
        %1696 = vmatprep.mubr.bf16.mxu0 0
        %1697 = vmatmul.mubr.bf16.gmra.mrb[0].mxu0 %v1344
        %v1698 = vpop.f32.mrb[0].mxu0
        %v1699 = vadd.f32 %v1366, %v1698
        %v1700 = vpop.f32.mrb[0].mxu0
        %v1701 = vpop.f32.mrb[0].mxu0
        %v1702 = vadd.f32 %v1366, %v1701
        %v1703 = vpop.f32.mrb[0].mxu0
        %1704 = vdwg.mxu0
        %v1705 = vmax.f32 %v1451, 0.0
        %v1706 = vmax.f32 %v1454, 0.0
        %v1707 = vmax.f32 %v1459, 0.0
        %v1708 = vmax.f32 %v1462, 0.0
        %v1709 = vmax.f32 %v1467, 0.0
        %v1710 = vmax.f32 %v1470, 0.0
        %v1711 = vmax.f32 %v1475, 0.0
        %v1712 = vmax.f32 %v1478, 0.0
        %v1713 = vmax.f32 %v1483, 0.0
        %v1714 = vmax.f32 %v1486, 0.0
        %v1715 = vmax.f32 %v1491, 0.0
        %v1716 = vmax.f32 %v1494, 0.0
        %v1717 = vmax.f32 %v1499, 0.0
        %v1718 = vmax.f32 %v1502, 0.0
        %v1719 = vmax.f32 %v1507, 0.0
        %v1720 = vmax.f32 %v1510, 0.0
        %v1721 = vmax.f32 %v1515, 0.0
        %v1722 = vmax.f32 %v1518, 0.0
        %v1723 = vmax.f32 %v1523, 0.0
        %v1724 = vmax.f32 %v1526, 0.0
        %v1725 = vmax.f32 %v1531, 0.0
        %v1726 = vmax.f32 %v1534, 0.0
        %v1727 = vmax.f32 %v1539, 0.0
        %v1728 = vmax.f32 %v1542, 0.0
        %v1729 = vmax.f32 %v1547, 0.0
        %v1730 = vmax.f32 %v1550, 0.0
        %v1731 = vmax.f32 %v1555, 0.0
        %v1732 = vmax.f32 %v1558, 0.0
        %v1733 = vmax.f32 %v1563, 0.0
        %v1734 = vmax.f32 %v1566, 0.0
        %v1735 = vmax.f32 %v1571, 0.0
        %v1736 = vmax.f32 %v1574, 0.0
        %v1737 = vmax.f32 %v1579, 0.0
        %v1738 = vmax.f32 %v1582, 0.0
        %v1739 = vmax.f32 %v1587, 0.0
        %v1740 = vmax.f32 %v1590, 0.0
        %v1741 = vmax.f32 %v1595, 0.0
        %v1742 = vmax.f32 %v1598, 0.0
        %v1743 = vmax.f32 %v1603, 0.0
        %v1744 = vmax.f32 %v1606, 0.0
        %v1745 = vmax.f32 %v1611, 0.0
        %v1746 = vmax.f32 %v1614, 0.0
        %v1747 = vmax.f32 %v1619, 0.0
        %v1748 = vmax.f32 %v1622, 0.0
        %v1749 = vmax.f32 %v1627, 0.0
        %v1750 = vmax.f32 %v1630, 0.0
        %v1751 = vmax.f32 %v1635, 0.0
        %v1752 = vmax.f32 %v1638, 0.0
        %v1753 = vmax.f32 %v1643, 0.0
        %v1754 = vmax.f32 %v1646, 0.0
        %v1755 = vmax.f32 %v1651, 0.0
        %v1756 = vmax.f32 %v1654, 0.0
        %v1757 = vmax.f32 %v1659, 0.0
        %v1758 = vmax.f32 %v1662, 0.0
        %v1759 = vmax.f32 %v1667, 0.0
        %v1760 = vmax.f32 %v1670, 0.0
        %v1761 = vmax.f32 %v1675, 0.0
        %v1762 = vmax.f32 %v1678, 0.0
        %v1763 = vmax.f32 %v1683, 0.0
        %v1764 = vmax.f32 %v1686, 0.0
        %v1765 = vmax.f32 %v1691, 0.0
        %v1766 = vmax.f32 %v1694, 0.0
        %v1767 = vmax.f32 %v1699, 0.0
        %v1768 = vmax.f32 %v1702, 0.0
        %v1769 = vpack.c.bf16 %v1706, %v1705
        %v1770 = vpack.c.bf16 %v1708, %v1707
        %v1771 = vpack.c.bf16 %v1710, %v1709
        %v1772 = vpack.c.bf16 %v1712, %v1711
        %v1773 = vpack.c.bf16 %v1714, %v1713
        %v1774 = vpack.c.bf16 %v1716, %v1715
        %v1775 = vpack.c.bf16 %v1718, %v1717
        %v1776 = vpack.c.bf16 %v1720, %v1719
        %v1777 = vpack.c.bf16 %v1722, %v1721
        %v1778 = vpack.c.bf16 %v1724, %v1723
        %v1779 = vpack.c.bf16 %v1726, %v1725
        %v1780 = vpack.c.bf16 %v1728, %v1727
        %v1781 = vpack.c.bf16 %v1730, %v1729
        %v1782 = vpack.c.bf16 %v1732, %v1731
        %v1783 = vpack.c.bf16 %v1734, %v1733
        %v1784 = vpack.c.bf16 %v1736, %v1735
        %v1785 = vpack.c.bf16 %v1738, %v1737
        %v1786 = vpack.c.bf16 %v1740, %v1739
        %v1787 = vpack.c.bf16 %v1742, %v1741
        %v1788 = vpack.c.bf16 %v1744, %v1743
        %v1789 = vpack.c.bf16 %v1746, %v1745
        %v1790 = vpack.c.bf16 %v1748, %v1747
        %v1791 = vpack.c.bf16 %v1750, %v1749
        %v1792 = vpack.c.bf16 %v1752, %v1751
        %v1793 = vpack.c.bf16 %v1754, %v1753
        %v1794 = vpack.c.bf16 %v1756, %v1755
        %v1795 = vpack.c.bf16 %v1758, %v1757
        %v1796 = vpack.c.bf16 %v1760, %v1759
        %v1797 = vpack.c.bf16 %v1762, %v1761
        %v1798 = vpack.c.bf16 %v1764, %v1763
        %v1799 = vpack.c.bf16 %v1766, %v1765
        %v1800 = vpack.c.bf16 %v1768, %v1767
        %1801 = vmatprep.subr.bf16.mxu0 0
        %1802 = vmatpush1.bf16.msra.mxu0 %v1769
        %1803 = vmatprep.subr.bf16.mxu0 0
        %1804 = vmatpush1.bf16.msra.mxu0 %v1770
        %1805 = vmatprep.subr.bf16.mxu0 0
        %1806 = vmatpush1.bf16.msra.mxu0 %v1771
        %1807 = vmatprep.subr.bf16.mxu0 0
        %1808 = vmatpush1.bf16.msra.mxu0 %v1772
        %1809 = vmatprep.subr.bf16.mxu0 0
        %1810 = vmatpush1.bf16.msra.mxu0 %v1773
        %1811 = vmatprep.subr.bf16.mxu0 0
        %1812 = vmatpush1.bf16.msra.mxu0 %v1774
        %1813 = vmatprep.subr.bf16.mxu0 0
        %1814 = vmatpush1.bf16.msra.mxu0 %v1775
        %1815 = vmatprep.subr.bf16.mxu0 0
        %1816 = vmatpush1.bf16.msra.mxu0 %v1776
        %1817 = vmatprep.subr.bf16.mxu0 0
        %1818 = vmatpush1.bf16.msra.mxu0 0
        %1819 = vmatprep.subr.bf16.mxu0 0
        %1820 = vmatpush1.bf16.msra.mxu0 0
        %1821 = vmatprep.subr.bf16.mxu0 0
        %1822 = vmatpush1.bf16.msra.mxu0 0
        %1823 = vmatprep.subr.bf16.mxu0 0
        %1824 = vmatpush1.bf16.msra.mxu0 0
        %1825 = vmatprep.subr.bf16.mxu0 0
        %1826 = vmatpush1.bf16.msra.mxu0 0
        %1827 = vmatprep.subr.bf16.mxu0 0
        %1828 = vmatpush1.bf16.msra.mxu0 0
        %1829 = vmatprep.subr.bf16.mxu0 0
        %1830 = vmatpush1.bf16.msra.mxu0 0
        %1831 = vmatprep.subr.bf16.mxu0 0
        %1832 = vmatpush1.bf16.msra.mxu0 0
        %1833 = vmatprep.mubr.bf16.mxu0 0
        %1834 = vmatmul.mubr.bf16.gmra.mrb[0].mxu0 %v573
        %v1835 = vpop.f32.mrb[0].mxu0
        %v1836 = vadd.f32 0.0, %v1835
        %v1837 = vpop.f32.mrb[0].mxu0
        %v1838 = vpop.f32.mrb[0].mxu0
        %v1839 = vadd.f32 0.0, %v1838
        %v1840 = vpop.f32.mrb[0].mxu0
        %1841 = vmatprep.mubr.bf16.mxu0 0
        %1842 = vmatmul.mubr.bf16.gmra.mrb[0].mxu0 %v574
        %v1843 = vpop.f32.mrb[0].mxu0
        %v1844 = vadd.f32 0.0, %v1843
        %v1845 = vpop.f32.mrb[0].mxu0
        %v1846 = vpop.f32.mrb[0].mxu0
        %v1847 = vadd.f32 0.0, %v1846
        %v1848 = vpop.f32.mrb[0].mxu0
        %1849 = vmatprep.mubr.bf16.mxu0 0
        %1850 = vmatmul.mubr.bf16.gmra.mrb[0].mxu0 %v575
        %v1851 = vpop.f32.mrb[0].mxu0
        %v1852 = vadd.f32 0.0, %v1851
        %v1853 = vpop.f32.mrb[0].mxu0
        %v1854 = vpop.f32.mrb[0].mxu0
        %v1855 = vadd.f32 0.0, %v1854
        %v1856 = vpop.f32.mrb[0].mxu0
        %1857 = vmatprep.mubr.bf16.mxu0 0
        %1858 = vmatmul.mubr.bf16.gmra.mrb[0].mxu0 %v576
        %v1859 = vpop.f32.mrb[0].mxu0
        %v1860 = vadd.f32 0.0, %v1859
        %v1861 = vpop.f32.mrb[0].mxu0
        %v1862 = vpop.f32.mrb[0].mxu0
        %v1863 = vadd.f32 0.0, %v1862
        %v1864 = vpop.f32.mrb[0].mxu0
        %1865 = vmatprep.mubr.bf16.mxu0 0
        %1866 = vmatmul.mubr.bf16.gmra.mrb[0].mxu0 %v577
        %v1867 = vpop.f32.mrb[0].mxu0
        %v1868 = vadd.f32 0.0, %v1867
        %v1869 = vpop.f32.mrb[0].mxu0
        %v1870 = vpop.f32.mrb[0].mxu0
        %v1871 = vadd.f32 0.0, %v1870
        %v1872 = vpop.f32.mrb[0].mxu0
        %1873 = vmatprep.mubr.bf16.mxu0 0
        %1874 = vmatmul.mubr.bf16.gmra.mrb[0].mxu0 %v578
        %v1875 = vpop.f32.mrb[0].mxu0
        %v1876 = vadd.f32 0.0, %v1875
        %v1877 = vpop.f32.mrb[0].mxu0
        %v1878 = vpop.f32.mrb[0].mxu0
        %v1879 = vadd.f32 0.0, %v1878
        %v1880 = vpop.f32.mrb[0].mxu0
        %1881 = vmatprep.mubr.bf16.mxu0 0
        %1882 = vmatmul.mubr.bf16.gmra.mrb[0].mxu0 %v579
        %v1883 = vpop.f32.mrb[0].mxu0
        %v1884 = vadd.f32 0.0, %v1883
        %v1885 = vpop.f32.mrb[0].mxu0
        %v1886 = vpop.f32.mrb[0].mxu0
        %v1887 = vadd.f32 0.0, %v1886
        %v1888 = vpop.f32.mrb[0].mxu0
        %1889 = vmatprep.mubr.bf16.mxu0 0
        %1890 = vmatmul.mubr.bf16.gmra.mrb[0].mxu0 %v580
        %v1891 = vpop.f32.mrb[0].mxu0
        %v1892 = vadd.f32 0.0, %v1891
        %v1893 = vpop.f32.mrb[0].mxu0
        %v1894 = vpop.f32.mrb[0].mxu0
        %v1895 = vadd.f32 0.0, %v1894
        %v1896 = vpop.f32.mrb[0].mxu0
        %1897 = vdwg.mxu0
        %1898 = vmatprep.subr.bf16.mxu0 0
        %1899 = vmatpush1.bf16.msra.mxu0 %v1777
        %1900 = vmatprep.subr.bf16.mxu0 0
        %1901 = vmatpush1.bf16.msra.mxu0 %v1778
        %1902 = vmatprep.subr.bf16.mxu0 0
        %1903 = vmatpush1.bf16.msra.mxu0 %v1779
        %1904 = vmatprep.subr.bf16.mxu0 0
        %1905 = vmatpush1.bf16.msra.mxu0 %v1780
        %1906 = vmatprep.subr.bf16.mxu0 0
        %1907 = vmatpush1.bf16.msra.mxu0 %v1781
        %1908 = vmatprep.subr.bf16.mxu0 0
        %1909 = vmatpush1.bf16.msra.mxu0 %v1782
        %1910 = vmatprep.subr.bf16.mxu0 0
        %1911 = vmatpush1.bf16.msra.mxu0 %v1783
        %1912 = vmatprep.subr.bf16.mxu0 0
        %1913 = vmatpush1.bf16.msra.mxu0 %v1784
        %1914 = vmatprep.subr.bf16.mxu0 0
        %1915 = vmatpush1.bf16.msra.mxu0 0
        %1916 = vmatprep.subr.bf16.mxu0 0
        %1917 = vmatpush1.bf16.msra.mxu0 0
        %1918 = vmatprep.subr.bf16.mxu0 0
        %1919 = vmatpush1.bf16.msra.mxu0 0
        %1920 = vmatprep.subr.bf16.mxu0 0
        %1921 = vmatpush1.bf16.msra.mxu0 0
        %1922 = vmatprep.subr.bf16.mxu0 0
        %1923 = vmatpush1.bf16.msra.mxu0 0
        %1924 = vmatprep.subr.bf16.mxu0 0
        %1925 = vmatpush1.bf16.msra.mxu0 0
        %1926 = vmatprep.subr.bf16.mxu0 0
        %1927 = vmatpush1.bf16.msra.mxu0 0
        %1928 = vmatprep.subr.bf16.mxu0 0
        %1929 = vmatpush1.bf16.msra.mxu0 0
        %1930 = vmatprep.mubr.bf16.mxu0 0
        %1931 = vmatmul.mubr.bf16.gmra.mrb[0].mxu0 %v766
        %v1932 = vpop.f32.mrb[0].mxu0
        %v1933 = vadd.f32 0.0, %v1932
        %v1934 = vpop.f32.mrb[0].mxu0
        %v1935 = vpop.f32.mrb[0].mxu0
        %v1936 = vadd.f32 0.0, %v1935
        %v1937 = vpop.f32.mrb[0].mxu0
        %1938 = vmatprep.mubr.bf16.mxu0 0
        %1939 = vmatmul.mubr.bf16.gmra.mrb[0].mxu0 %v767
        %v1940 = vpop.f32.mrb[0].mxu0
        %v1941 = vadd.f32 0.0, %v1940
        %v1942 = vpop.f32.mrb[0].mxu0
        %v1943 = vpop.f32.mrb[0].mxu0
        %v1944 = vadd.f32 0.0, %v1943
        %v1945 = vpop.f32.mrb[0].mxu0
        %1946 = vmatprep.mubr.bf16.mxu0 0
        %1947 = vmatmul.mubr.bf16.gmra.mrb[0].mxu0 %v768
        %v1948 = vpop.f32.mrb[0].mxu0
        %v1949 = vadd.f32 0.0, %v1948
        %v1950 = vpop.f32.mrb[0].mxu0
        %v1951 = vpop.f32.mrb[0].mxu0
        %v1952 = vadd.f32 0.0, %v1951
        %v1953 = vpop.f32.mrb[0].mxu0
        %1954 = vmatprep.mubr.bf16.mxu0 0
        %1955 = vmatmul.mubr.bf16.gmra.mrb[0].mxu0 %v769
        %v1956 = vpop.f32.mrb[0].mxu0
        %v1957 = vadd.f32 0.0, %v1956
        %v1958 = vpop.f32.mrb[0].mxu0
        %v1959 = vpop.f32.mrb[0].mxu0
        %v1960 = vadd.f32 0.0, %v1959
        %v1961 = vpop.f32.mrb[0].mxu0
        %1962 = vmatprep.mubr.bf16.mxu0 0
        %1963 = vmatmul.mubr.bf16.gmra.mrb[0].mxu0 %v770
        %v1964 = vpop.f32.mrb[0].mxu0
        %v1965 = vadd.f32 0.0, %v1964
        %v1966 = vpop.f32.mrb[0].mxu0
        %v1967 = vpop.f32.mrb[0].mxu0
        %v1968 = vadd.f32 0.0, %v1967
        %v1969 = vpop.f32.mrb[0].mxu0
        %1970 = vmatprep.mubr.bf16.mxu0 0
        %1971 = vmatmul.mubr.bf16.gmra.mrb[0].mxu0 %v771
        %v1972 = vpop.f32.mrb[0].mxu0
        %v1973 = vadd.f32 0.0, %v1972
        %v1974 = vpop.f32.mrb[0].mxu0
        %v1975 = vpop.f32.mrb[0].mxu0
        %v1976 = vadd.f32 0.0, %v1975
        %v1977 = vpop.f32.mrb[0].mxu0
        %1978 = vmatprep.mubr.bf16.mxu0 0
        %1979 = vmatmul.mubr.bf16.gmra.mrb[0].mxu0 %v772
        %v1980 = vpop.f32.mrb[0].mxu0
        %v1981 = vadd.f32 0.0, %v1980
        %v1982 = vpop.f32.mrb[0].mxu0
        %v1983 = vpop.f32.mrb[0].mxu0
        %v1984 = vadd.f32 0.0, %v1983
        %v1985 = vpop.f32.mrb[0].mxu0
        %1986 = vmatprep.mubr.bf16.mxu0 0
        %1987 = vmatmul.mubr.bf16.gmra.mrb[0].mxu0 %v773
        %v1988 = vpop.f32.mrb[0].mxu0
        %v1989 = vadd.f32 0.0, %v1988
        %v1990 = vpop.f32.mrb[0].mxu0
        %v1991 = vpop.f32.mrb[0].mxu0
        %v1992 = vadd.f32 0.0, %v1991
        %v1993 = vpop.f32.mrb[0].mxu0
        %1994 = vdwg.mxu0
        %1995 = vmatprep.subr.bf16.mxu0 0
        %1996 = vmatpush1.bf16.msra.mxu0 %v1785
        %1997 = vmatprep.subr.bf16.mxu0 0
        %1998 = vmatpush1.bf16.msra.mxu0 %v1786
        %1999 = vmatprep.subr.bf16.mxu0 0
        %2000 = vmatpush1.bf16.msra.mxu0 %v1787
        %2001 = vmatprep.subr.bf16.mxu0 0
        %2002 = vmatpush1.bf16.msra.mxu0 %v1788
        %2003 = vmatprep.subr.bf16.mxu0 0
        %2004 = vmatpush1.bf16.msra.mxu0 %v1789
        %2005 = vmatprep.subr.bf16.mxu0 0
        %2006 = vmatpush1.bf16.msra.mxu0 %v1790
        %2007 = vmatprep.subr.bf16.mxu0 0
        %2008 = vmatpush1.bf16.msra.mxu0 %v1791
        %2009 = vmatprep.subr.bf16.mxu0 0
        %2010 = vmatpush1.bf16.msra.mxu0 %v1792
        %2011 = vmatprep.subr.bf16.mxu0 0
        %2012 = vmatpush1.bf16.msra.mxu0 0
        %2013 = vmatprep.subr.bf16.mxu0 0
        %2014 = vmatpush1.bf16.msra.mxu0 0
        %2015 = vmatprep.subr.bf16.mxu0 0
        %2016 = vmatpush1.bf16.msra.mxu0 0
        %2017 = vmatprep.subr.bf16.mxu0 0
        %2018 = vmatpush1.bf16.msra.mxu0 0
        %2019 = vmatprep.subr.bf16.mxu0 0
        %2020 = vmatpush1.bf16.msra.mxu0 0
        %2021 = vmatprep.subr.bf16.mxu0 0
        %2022 = vmatpush1.bf16.msra.mxu0 0
        %2023 = vmatprep.subr.bf16.mxu0 0
        %2024 = vmatpush1.bf16.msra.mxu0 0
        %2025 = vmatprep.subr.bf16.mxu0 0
        %2026 = vmatpush1.bf16.msra.mxu0 0
        %2027 = vmatprep.mubr.bf16.mxu0 0
        %2028 = vmatmul.mubr.bf16.gmra.mrb[0].mxu0 %v959
        %v2029 = vpop.f32.mrb[0].mxu0
        %v2030 = vadd.f32 0.0, %v2029
        %v2031 = vpop.f32.mrb[0].mxu0
        %v2032 = vpop.f32.mrb[0].mxu0
        %v2033 = vadd.f32 0.0, %v2032
        %v2034 = vpop.f32.mrb[0].mxu0
        %2035 = vmatprep.mubr.bf16.mxu0 0
        %2036 = vmatmul.mubr.bf16.gmra.mrb[0].mxu0 %v960
        %v2037 = vpop.f32.mrb[0].mxu0
        %v2038 = vadd.f32 0.0, %v2037
        %v2039 = vpop.f32.mrb[0].mxu0
        %v2040 = vpop.f32.mrb[0].mxu0
        %v2041 = vadd.f32 0.0, %v2040
        %v2042 = vpop.f32.mrb[0].mxu0
        %2043 = vmatprep.mubr.bf16.mxu0 0
        %2044 = vmatmul.mubr.bf16.gmra.mrb[0].mxu0 %v961
        %v2045 = vpop.f32.mrb[0].mxu0
        %v2046 = vadd.f32 0.0, %v2045
        %v2047 = vpop.f32.mrb[0].mxu0
        %v2048 = vpop.f32.mrb[0].mxu0
        %v2049 = vadd.f32 0.0, %v2048
        %v2050 = vpop.f32.mrb[0].mxu0
        %2051 = vmatprep.mubr.bf16.mxu0 0
        %2052 = vmatmul.mubr.bf16.gmra.mrb[0].mxu0 %v962
        %v2053 = vpop.f32.mrb[0].mxu0
        %v2054 = vadd.f32 0.0, %v2053
        %v2055 = vpop.f32.mrb[0].mxu0
        %v2056 = vpop.f32.mrb[0].mxu0
        %v2057 = vadd.f32 0.0, %v2056
        %v2058 = vpop.f32.mrb[0].mxu0
        %2059 = vmatprep.mubr.bf16.mxu0 0
        %2060 = vmatmul.mubr.bf16.gmra.mrb[0].mxu0 %v963
        %v2061 = vpop.f32.mrb[0].mxu0
        %v2062 = vadd.f32 0.0, %v2061
        %v2063 = vpop.f32.mrb[0].mxu0
        %v2064 = vpop.f32.mrb[0].mxu0
        %v2065 = vadd.f32 0.0, %v2064
        %v2066 = vpop.f32.mrb[0].mxu0
        %2067 = vmatprep.mubr.bf16.mxu0 0
        %2068 = vmatmul.mubr.bf16.gmra.mrb[0].mxu0 %v964
        %v2069 = vpop.f32.mrb[0].mxu0
        %v2070 = vadd.f32 0.0, %v2069
        %v2071 = vpop.f32.mrb[0].mxu0
        %v2072 = vpop.f32.mrb[0].mxu0
        %v2073 = vadd.f32 0.0, %v2072
        %v2074 = vpop.f32.mrb[0].mxu0
        %2075 = vmatprep.mubr.bf16.mxu0 0
        %2076 = vmatmul.mubr.bf16.gmra.mrb[0].mxu0 %v965
        %v2077 = vpop.f32.mrb[0].mxu0
        %v2078 = vadd.f32 0.0, %v2077
        %v2079 = vpop.f32.mrb[0].mxu0
        %v2080 = vpop.f32.mrb[0].mxu0
        %v2081 = vadd.f32 0.0, %v2080
        %v2082 = vpop.f32.mrb[0].mxu0
        %2083 = vmatprep.mubr.bf16.mxu0 0
        %2084 = vmatmul.mubr.bf16.gmra.mrb[0].mxu0 %v966
        %v2085 = vpop.f32.mrb[0].mxu0
        %v2086 = vadd.f32 0.0, %v2085
        %v2087 = vpop.f32.mrb[0].mxu0
        %v2088 = vpop.f32.mrb[0].mxu0
        %v2089 = vadd.f32 0.0, %v2088
        %v2090 = vpop.f32.mrb[0].mxu0
        %2091 = vdwg.mxu0
        %2092 = vmatprep.subr.bf16.mxu0 0
        %2093 = vmatpush1.bf16.msra.mxu0 %v1793
        %2094 = vmatprep.subr.bf16.mxu0 0
        %2095 = vmatpush1.bf16.msra.mxu0 %v1794
        %2096 = vmatprep.subr.bf16.mxu0 0
        %2097 = vmatpush1.bf16.msra.mxu0 %v1795
        %2098 = vmatprep.subr.bf16.mxu0 0
        %2099 = vmatpush1.bf16.msra.mxu0 %v1796
        %2100 = vmatprep.subr.bf16.mxu0 0
        %2101 = vmatpush1.bf16.msra.mxu0 %v1797
        %2102 = vmatprep.subr.bf16.mxu0 0
        %2103 = vmatpush1.bf16.msra.mxu0 %v1798
        %2104 = vmatprep.subr.bf16.mxu0 0
        %2105 = vmatpush1.bf16.msra.mxu0 %v1799
        %2106 = vmatprep.subr.bf16.mxu0 0
        %2107 = vmatpush1.bf16.msra.mxu0 %v1800
        %2108 = vmatprep.subr.bf16.mxu0 0
        %2109 = vmatpush1.bf16.msra.mxu0 0
        %2110 = vmatprep.subr.bf16.mxu0 0
        %2111 = vmatpush1.bf16.msra.mxu0 0
        %2112 = vmatprep.subr.bf16.mxu0 0
        %2113 = vmatpush1.bf16.msra.mxu0 0
        %2114 = vmatprep.subr.bf16.mxu0 0
        %2115 = vmatpush1.bf16.msra.mxu0 0
        %2116 = vmatprep.subr.bf16.mxu0 0
        %2117 = vmatpush1.bf16.msra.mxu0 0
        %2118 = vmatprep.subr.bf16.mxu0 0
        %2119 = vmatpush1.bf16.msra.mxu0 0
        %2120 = vmatprep.subr.bf16.mxu0 0
        %2121 = vmatpush1.bf16.msra.mxu0 0
        %2122 = vmatprep.subr.bf16.mxu0 0
        %2123 = vmatpush1.bf16.msra.mxu0 0
        %2124 = vmatprep.mubr.bf16.mxu0 0
        %2125 = vmatmul.mubr.bf16.gmra.mrb[0].mxu0 %v1152
        %v2126 = vpop.f32.mrb[0].mxu0
        %v2127 = vadd.f32 0.0, %v2126
        %v2128 = vpop.f32.mrb[0].mxu0
        %v2129 = vpop.f32.mrb[0].mxu0
        %v2130 = vadd.f32 0.0, %v2129
        %v2131 = vpop.f32.mrb[0].mxu0
        %2132 = vmatprep.mubr.bf16.mxu0 0
        %2133 = vmatmul.mubr.bf16.gmra.mrb[0].mxu0 %v1153
        %v2134 = vpop.f32.mrb[0].mxu0
        %v2135 = vadd.f32 0.0, %v2134
        %v2136 = vpop.f32.mrb[0].mxu0
        %v2137 = vpop.f32.mrb[0].mxu0
        %v2138 = vadd.f32 0.0, %v2137
        %v2139 = vpop.f32.mrb[0].mxu0
        %2140 = vmatprep.mubr.bf16.mxu0 0
        %2141 = vmatmul.mubr.bf16.gmra.mrb[0].mxu0 %v1154
        %v2142 = vpop.f32.mrb[0].mxu0
        %v2143 = vadd.f32 0.0, %v2142
        %v2144 = vpop.f32.mrb[0].mxu0
        %v2145 = vpop.f32.mrb[0].mxu0
        %v2146 = vadd.f32 0.0, %v2145
        %v2147 = vpop.f32.mrb[0].mxu0
        %2148 = vmatprep.mubr.bf16.mxu0 0
        %2149 = vmatmul.mubr.bf16.gmra.mrb[0].mxu0 %v1155
        %v2150 = vpop.f32.mrb[0].mxu0
        %v2151 = vadd.f32 0.0, %v2150
        %v2152 = vpop.f32.mrb[0].mxu0
        %v2153 = vpop.f32.mrb[0].mxu0
        %v2154 = vadd.f32 0.0, %v2153
        %v2155 = vpop.f32.mrb[0].mxu0
        %2156 = vmatprep.mubr.bf16.mxu0 0
        %2157 = vmatmul.mubr.bf16.gmra.mrb[0].mxu0 %v1156
        %v2158 = vpop.f32.mrb[0].mxu0
        %v2159 = vadd.f32 0.0, %v2158
        %v2160 = vpop.f32.mrb[0].mxu0
        %v2161 = vpop.f32.mrb[0].mxu0
        %v2162 = vadd.f32 0.0, %v2161
        %v2163 = vpop.f32.mrb[0].mxu0
        %2164 = vmatprep.mubr.bf16.mxu0 0
        %2165 = vmatmul.mubr.bf16.gmra.mrb[0].mxu0 %v1157
        %v2166 = vpop.f32.mrb[0].mxu0
        %v2167 = vadd.f32 0.0, %v2166
        %v2168 = vpop.f32.mrb[0].mxu0
        %v2169 = vpop.f32.mrb[0].mxu0
        %v2170 = vadd.f32 0.0, %v2169
        %v2171 = vpop.f32.mrb[0].mxu0
        %2172 = vmatprep.mubr.bf16.mxu0 0
        %2173 = vmatmul.mubr.bf16.gmra.mrb[0].mxu0 %v1158
        %v2174 = vpop.f32.mrb[0].mxu0
        %v2175 = vadd.f32 0.0, %v2174
        %v2176 = vpop.f32.mrb[0].mxu0
        %v2177 = vpop.f32.mrb[0].mxu0
        %v2178 = vadd.f32 0.0, %v2177
        %v2179 = vpop.f32.mrb[0].mxu0
        %2180 = vmatprep.mubr.bf16.mxu0 0
        %2181 = vmatmul.mubr.bf16.gmra.mrb[0].mxu0 %v1159
        %v2182 = vpop.f32.mrb[0].mxu0
        %v2183 = vadd.f32 0.0, %v2182
        %v2184 = vpop.f32.mrb[0].mxu0
        %v2185 = vpop.f32.mrb[0].mxu0
        %v2186 = vadd.f32 0.0, %v2185
        %v2187 = vpop.f32.mrb[0].mxu0
        %2188 = vdwg.mxu0
        %v2189 = vpack.c.bf16 %v1839, %v1836
        %v2190 = vpack.c.bf16 %v1847, %v1844
        %v2191 = vpack.c.bf16 %v1855, %v1852
        %v2192 = vpack.c.bf16 %v1863, %v1860
        %v2193 = vpack.c.bf16 %v1871, %v1868
        %v2194 = vpack.c.bf16 %v1879, %v1876
        %v2195 = vpack.c.bf16 %v1887, %v1884
        %v2196 = vpack.c.bf16 %v1895, %v1892
        %v2197 = vpack.c.bf16 %v1936, %v1933
        %v2198 = vpack.c.bf16 %v1944, %v1941
        %v2199 = vpack.c.bf16 %v1952, %v1949
        %v2200 = vpack.c.bf16 %v1960, %v1957
        %v2201 = vpack.c.bf16 %v1968, %v1965
        %v2202 = vpack.c.bf16 %v1976, %v1973
        %v2203 = vpack.c.bf16 %v1984, %v1981
        %v2204 = vpack.c.bf16 %v1992, %v1989
        %v2205 = vpack.c.bf16 %v2033, %v2030
        %v2206 = vpack.c.bf16 %v2041, %v2038
        %v2207 = vpack.c.bf16 %v2049, %v2046
        %v2208 = vpack.c.bf16 %v2057, %v2054
        %v2209 = vpack.c.bf16 %v2065, %v2062
        %v2210 = vpack.c.bf16 %v2073, %v2070
        %v2211 = vpack.c.bf16 %v2081, %v2078
        %v2212 = vpack.c.bf16 %v2089, %v2086
        %v2213 = vpack.c.bf16 %v2130, %v2127
        %v2214 = vpack.c.bf16 %v2138, %v2135
        %v2215 = vpack.c.bf16 %v2146, %v2143
        %v2216 = vpack.c.bf16 %v2154, %v2151
        %v2217 = vpack.c.bf16 %v2162, %v2159
        %v2218 = vpack.c.bf16 %v2170, %v2167
        %v2219 = vpack.c.bf16 %v2178, %v2175
        %v2220 = vpack.c.bf16 %v2186, %v2183
        %s2221 = scalar_lea.vmem [#allocation7], 64
        %v2222 = vld [vmem:[%s2221] sm:$0xf]
        %v2223 = vld [vmem:[%s2221 + $0x4] sm:$0xf]
        %v2224 = vld [vmem:[%s2221 + $0x8] sm:$0xf]
        %v2225 = vld [vmem:[%s2221 + $0xc] sm:$0xf]
        %v2226 = vld [vmem:[%s2221 + $0x10] sm:$0xf]
        %v2227 = vld [vmem:[%s2221 + $0x14] sm:$0xf]
        %v2228 = vld [vmem:[%s2221 + $0x18] sm:$0xf]
        %v2229 = vld [vmem:[%s2221 + $0x1c] sm:$0xf]
        %v2230 = vld [vmem:[%s2221 + $0x20] sm:$0xf]
        %v2231 = vld [vmem:[%s2221 + $0x24] sm:$0xf]
        %v2232 = vld [vmem:[%s2221 + $0x28] sm:$0xf]
        %v2233 = vld [vmem:[%s2221 + $0x2c] sm:$0xf]
        %v2234 = vld [vmem:[%s2221 + $0x30] sm:$0xf]
        %v2235 = vld [vmem:[%s2221 + $0x34] sm:$0xf]
        %v2236 = vld [vmem:[%s2221 + $0x38] sm:$0xf]
        %v2237 = vld [vmem:[%s2221 + $0x3c] sm:$0xf]
        %s2238 = scalar_lea.vmem %s3, 1
        %v2239 = vld [vmem:[%s2238] sm:$0x1]
        %v2241 = vlaneseq
        %v2242 = vshrl.u32 %v2241, 7
        %v2243 = vsub.s32 0, %v2242
        %v2244 = vrot.slane %v2239, %v2243
        %v2262 = vunpack.c.l.b16 %v2222
        %v2263 = vunpack.c.l.b16 %v2223
        %v2264 = vunpack.c.l.b16 %v2224
        %v2265 = vunpack.c.l.b16 %v2225
        %v2266 = vunpack.c.l.b16 %v2226
        %v2267 = vunpack.c.l.b16 %v2227
        %v2268 = vunpack.c.l.b16 %v2228
        %v2269 = vunpack.c.l.b16 %v2229
        %v2270 = vunpack.c.l.b16 %v2230
        %v2271 = vunpack.c.l.b16 %v2231
        %v2272 = vunpack.c.l.b16 %v2232
        %v2273 = vunpack.c.l.b16 %v2233
        %v2274 = vunpack.c.l.b16 %v2234
        %v2275 = vunpack.c.l.b16 %v2235
        %v2276 = vunpack.c.l.b16 %v2236
        %v2277 = vunpack.c.l.b16 %v2237
        %v2278 = vpack.c.b16 %v2263, %v2262
        %v2279 = vpack.c.b16 %v2265, %v2264
        %v2280 = vpack.c.b16 %v2267, %v2266
        %v2281 = vpack.c.b16 %v2269, %v2268
        %v2282 = vpack.c.b16 %v2271, %v2270
        %v2283 = vpack.c.b16 %v2273, %v2272
        %v2284 = vpack.c.b16 %v2275, %v2274
        %v2285 = vpack.c.b16 %v2277, %v2276
        %2294 = vmatprep.subr.bf16.mxu0 0
        %2295 = vmatpush1.bf16.msra.mxu0 %v2278
        %2296 = vmatprep.subr.bf16.mxu0 0
        %2297 = vmatpush1.bf16.msra.mxu0 %v2279
        %2298 = vmatprep.subr.bf16.mxu0 0
        %2299 = vmatpush1.bf16.msra.mxu0 %v2280
        %2300 = vmatprep.subr.bf16.mxu0 0
        %2301 = vmatpush1.bf16.msra.mxu0 %v2281
        %2302 = vmatprep.subr.bf16.mxu0 0
        %2303 = vmatpush1.bf16.msra.mxu0 %v2282
        %2304 = vmatprep.subr.bf16.mxu0 0
        %2305 = vmatpush1.bf16.msra.mxu0 %v2283
        %2306 = vmatprep.subr.bf16.mxu0 0
        %2307 = vmatpush1.bf16.msra.mxu0 %v2284
        %2308 = vmatprep.subr.bf16.mxu0 0
        %2309 = vmatpush1.bf16.msra.mxu0 %v2285
        %2310 = vmatprep.subr.bf16.mxu0 0
        %2311 = vmatpush1.bf16.msra.mxu0 0
        %2312 = vmatprep.subr.bf16.mxu0 0
        %2313 = vmatpush1.bf16.msra.mxu0 0
        %2314 = vmatprep.subr.bf16.mxu0 0
        %2315 = vmatpush1.bf16.msra.mxu0 0
        %2316 = vmatprep.subr.bf16.mxu0 0
        %2317 = vmatpush1.bf16.msra.mxu0 0
        %2318 = vmatprep.subr.bf16.mxu0 0
        %2319 = vmatpush1.bf16.msra.mxu0 0
        %2320 = vmatprep.subr.bf16.mxu0 0
        %2321 = vmatpush1.bf16.msra.mxu0 0
        %2322 = vmatprep.subr.bf16.mxu0 0
        %2323 = vmatpush1.bf16.msra.mxu0 0
        %2324 = vmatprep.subr.bf16.mxu0 0
        %2325 = vmatpush1.bf16.msra.mxu0 0
        %2326 = vmatprep.mubr.bf16.mxu0 0
        %2327 = vmatmul.mubr.bf16.gmra.mrb[0].mxu0 %v2189
        %v2328 = vpop.f32.mrb[0].mxu0
        %v2329 = vadd.f32 %v2244, %v2328
        %v2330 = vpop.f32.mrb[0].mxu0
        %v2331 = vpop.f32.mrb[0].mxu0
        %v2332 = vadd.f32 %v2244, %v2331
        %v2333 = vpop.f32.mrb[0].mxu0
        %2334 = vmatprep.mubr.bf16.mxu0 0
        %2335 = vmatmul.mubr.bf16.gmra.mrb[0].mxu0 %v2190
        %v2336 = vpop.f32.mrb[0].mxu0
        %v2337 = vadd.f32 %v2244, %v2336
        %v2338 = vpop.f32.mrb[0].mxu0
        %v2339 = vpop.f32.mrb[0].mxu0
        %v2340 = vadd.f32 %v2244, %v2339
        %v2341 = vpop.f32.mrb[0].mxu0
        %2342 = vmatprep.mubr.bf16.mxu0 0
        %2343 = vmatmul.mubr.bf16.gmra.mrb[0].mxu0 %v2191
        %v2344 = vpop.f32.mrb[0].mxu0
        %v2345 = vadd.f32 %v2244, %v2344
        %v2346 = vpop.f32.mrb[0].mxu0
        %v2347 = vpop.f32.mrb[0].mxu0
        %v2348 = vadd.f32 %v2244, %v2347
        %v2349 = vpop.f32.mrb[0].mxu0
        %2350 = vmatprep.mubr.bf16.mxu0 0
        %2351 = vmatmul.mubr.bf16.gmra.mrb[0].mxu0 %v2192
        %v2352 = vpop.f32.mrb[0].mxu0
        %v2353 = vadd.f32 %v2244, %v2352
        %v2354 = vpop.f32.mrb[0].mxu0
        %v2355 = vpop.f32.mrb[0].mxu0
        %v2356 = vadd.f32 %v2244, %v2355
        %v2357 = vpop.f32.mrb[0].mxu0
        %2358 = vmatprep.mubr.bf16.mxu0 0
        %2359 = vmatmul.mubr.bf16.gmra.mrb[0].mxu0 %v2193
        %v2360 = vpop.f32.mrb[0].mxu0
        %v2361 = vadd.f32 %v2244, %v2360
        %v2362 = vpop.f32.mrb[0].mxu0
        %v2363 = vpop.f32.mrb[0].mxu0
        %v2364 = vadd.f32 %v2244, %v2363
        %v2365 = vpop.f32.mrb[0].mxu0
        %2366 = vmatprep.mubr.bf16.mxu0 0
        %2367 = vmatmul.mubr.bf16.gmra.mrb[0].mxu0 %v2194
        %v2368 = vpop.f32.mrb[0].mxu0
        %v2369 = vadd.f32 %v2244, %v2368
        %v2370 = vpop.f32.mrb[0].mxu0
        %v2371 = vpop.f32.mrb[0].mxu0
        %v2372 = vadd.f32 %v2244, %v2371
        %v2373 = vpop.f32.mrb[0].mxu0
        %2374 = vmatprep.mubr.bf16.mxu0 0
        %2375 = vmatmul.mubr.bf16.gmra.mrb[0].mxu0 %v2195
        %v2376 = vpop.f32.mrb[0].mxu0
        %v2377 = vadd.f32 %v2244, %v2376
        %v2378 = vpop.f32.mrb[0].mxu0
        %v2379 = vpop.f32.mrb[0].mxu0
        %v2380 = vadd.f32 %v2244, %v2379
        %v2381 = vpop.f32.mrb[0].mxu0
        %2382 = vmatprep.mubr.bf16.mxu0 0
        %2383 = vmatmul.mubr.bf16.gmra.mrb[0].mxu0 %v2196
        %v2384 = vpop.f32.mrb[0].mxu0
        %v2385 = vadd.f32 %v2244, %v2384
        %v2386 = vpop.f32.mrb[0].mxu0
        %v2387 = vpop.f32.mrb[0].mxu0
        %v2388 = vadd.f32 %v2244, %v2387
        %v2389 = vpop.f32.mrb[0].mxu0
        %2390 = vmatprep.mubr.bf16.mxu0 0
        %2391 = vmatmul.mubr.bf16.gmra.mrb[0].mxu0 %v2197
        %v2392 = vpop.f32.mrb[0].mxu0
        %v2393 = vadd.f32 %v2244, %v2392
        %v2394 = vpop.f32.mrb[0].mxu0
        %v2395 = vpop.f32.mrb[0].mxu0
        %v2396 = vadd.f32 %v2244, %v2395
        %v2397 = vpop.f32.mrb[0].mxu0
        %2398 = vmatprep.mubr.bf16.mxu0 0
        %2399 = vmatmul.mubr.bf16.gmra.mrb[0].mxu0 %v2198
        %v2400 = vpop.f32.mrb[0].mxu0
        %v2401 = vadd.f32 %v2244, %v2400
        %v2402 = vpop.f32.mrb[0].mxu0
        %v2403 = vpop.f32.mrb[0].mxu0
        %v2404 = vadd.f32 %v2244, %v2403
        %v2405 = vpop.f32.mrb[0].mxu0
        %2406 = vmatprep.mubr.bf16.mxu0 0
        %2407 = vmatmul.mubr.bf16.gmra.mrb[0].mxu0 %v2199
        %v2408 = vpop.f32.mrb[0].mxu0
        %v2409 = vadd.f32 %v2244, %v2408
        %v2410 = vpop.f32.mrb[0].mxu0
        %v2411 = vpop.f32.mrb[0].mxu0
        %v2412 = vadd.f32 %v2244, %v2411
        %v2413 = vpop.f32.mrb[0].mxu0
        %2414 = vmatprep.mubr.bf16.mxu0 0
        %2415 = vmatmul.mubr.bf16.gmra.mrb[0].mxu0 %v2200
        %v2416 = vpop.f32.mrb[0].mxu0
        %v2417 = vadd.f32 %v2244, %v2416
        %v2418 = vpop.f32.mrb[0].mxu0
        %v2419 = vpop.f32.mrb[0].mxu0
        %v2420 = vadd.f32 %v2244, %v2419
        %v2421 = vpop.f32.mrb[0].mxu0
        %2422 = vmatprep.mubr.bf16.mxu0 0
        %2423 = vmatmul.mubr.bf16.gmra.mrb[0].mxu0 %v2201
        %v2424 = vpop.f32.mrb[0].mxu0
        %v2425 = vadd.f32 %v2244, %v2424
        %v2426 = vpop.f32.mrb[0].mxu0
        %v2427 = vpop.f32.mrb[0].mxu0
        %v2428 = vadd.f32 %v2244, %v2427
        %v2429 = vpop.f32.mrb[0].mxu0
        %2430 = vmatprep.mubr.bf16.mxu0 0
        %2431 = vmatmul.mubr.bf16.gmra.mrb[0].mxu0 %v2202
        %v2432 = vpop.f32.mrb[0].mxu0
        %v2433 = vadd.f32 %v2244, %v2432
        %v2434 = vpop.f32.mrb[0].mxu0
        %v2435 = vpop.f32.mrb[0].mxu0
        %v2436 = vadd.f32 %v2244, %v2435
        %v2437 = vpop.f32.mrb[0].mxu0
        %2438 = vmatprep.mubr.bf16.mxu0 0
        %2439 = vmatmul.mubr.bf16.gmra.mrb[0].mxu0 %v2203
        %v2440 = vpop.f32.mrb[0].mxu0
        %v2441 = vadd.f32 %v2244, %v2440
        %v2442 = vpop.f32.mrb[0].mxu0
        %v2443 = vpop.f32.mrb[0].mxu0
        %v2444 = vadd.f32 %v2244, %v2443
        %v2445 = vpop.f32.mrb[0].mxu0
        %2446 = vmatprep.mubr.bf16.mxu0 0
        %2447 = vmatmul.mubr.bf16.gmra.mrb[0].mxu0 %v2204
        %v2448 = vpop.f32.mrb[0].mxu0
        %v2449 = vadd.f32 %v2244, %v2448
        %v2450 = vpop.f32.mrb[0].mxu0
        %v2451 = vpop.f32.mrb[0].mxu0
        %v2452 = vadd.f32 %v2244, %v2451
        %v2453 = vpop.f32.mrb[0].mxu0
        %2454 = vmatprep.mubr.bf16.mxu0 0
        %2455 = vmatmul.mubr.bf16.gmra.mrb[0].mxu0 %v2205
        %v2456 = vpop.f32.mrb[0].mxu0
        %v2457 = vadd.f32 %v2244, %v2456
        %v2458 = vpop.f32.mrb[0].mxu0
        %v2459 = vpop.f32.mrb[0].mxu0
        %v2460 = vadd.f32 %v2244, %v2459
        %v2461 = vpop.f32.mrb[0].mxu0
        %2462 = vmatprep.mubr.bf16.mxu0 0
        %2463 = vmatmul.mubr.bf16.gmra.mrb[0].mxu0 %v2206
        %v2464 = vpop.f32.mrb[0].mxu0
        %v2465 = vadd.f32 %v2244, %v2464
        %v2466 = vpop.f32.mrb[0].mxu0
        %v2467 = vpop.f32.mrb[0].mxu0
        %v2468 = vadd.f32 %v2244, %v2467
        %v2469 = vpop.f32.mrb[0].mxu0
        %2470 = vmatprep.mubr.bf16.mxu0 0
        %2471 = vmatmul.mubr.bf16.gmra.mrb[0].mxu0 %v2207
        %v2472 = vpop.f32.mrb[0].mxu0
        %v2473 = vadd.f32 %v2244, %v2472
        %v2474 = vpop.f32.mrb[0].mxu0
        %v2475 = vpop.f32.mrb[0].mxu0
        %v2476 = vadd.f32 %v2244, %v2475
        %v2477 = vpop.f32.mrb[0].mxu0
        %2478 = vmatprep.mubr.bf16.mxu0 0
        %2479 = vmatmul.mubr.bf16.gmra.mrb[0].mxu0 %v2208
        %v2480 = vpop.f32.mrb[0].mxu0
        %v2481 = vadd.f32 %v2244, %v2480
        %v2482 = vpop.f32.mrb[0].mxu0
        %v2483 = vpop.f32.mrb[0].mxu0
        %v2484 = vadd.f32 %v2244, %v2483
        %v2485 = vpop.f32.mrb[0].mxu0
        %2486 = vmatprep.mubr.bf16.mxu0 0
        %2487 = vmatmul.mubr.bf16.gmra.mrb[0].mxu0 %v2209
        %v2488 = vpop.f32.mrb[0].mxu0
        %v2489 = vadd.f32 %v2244, %v2488
        %v2490 = vpop.f32.mrb[0].mxu0
        %v2491 = vpop.f32.mrb[0].mxu0
        %v2492 = vadd.f32 %v2244, %v2491
        %v2493 = vpop.f32.mrb[0].mxu0
        %2494 = vmatprep.mubr.bf16.mxu0 0
        %2495 = vmatmul.mubr.bf16.gmra.mrb[0].mxu0 %v2210
        %v2496 = vpop.f32.mrb[0].mxu0
        %v2497 = vadd.f32 %v2244, %v2496
        %v2498 = vpop.f32.mrb[0].mxu0
        %v2499 = vpop.f32.mrb[0].mxu0
        %v2500 = vadd.f32 %v2244, %v2499
        %v2501 = vpop.f32.mrb[0].mxu0
        %2502 = vmatprep.mubr.bf16.mxu0 0
        %2503 = vmatmul.mubr.bf16.gmra.mrb[0].mxu0 %v2211
        %v2504 = vpop.f32.mrb[0].mxu0
        %v2505 = vadd.f32 %v2244, %v2504
        %v2506 = vpop.f32.mrb[0].mxu0
        %v2507 = vpop.f32.mrb[0].mxu0
        %v2508 = vadd.f32 %v2244, %v2507
        %v2509 = vpop.f32.mrb[0].mxu0
        %2510 = vmatprep.mubr.bf16.mxu0 0
        %2511 = vmatmul.mubr.bf16.gmra.mrb[0].mxu0 %v2212
        %v2512 = vpop.f32.mrb[0].mxu0
        %v2513 = vadd.f32 %v2244, %v2512
        %v2514 = vpop.f32.mrb[0].mxu0
        %v2515 = vpop.f32.mrb[0].mxu0
        %v2516 = vadd.f32 %v2244, %v2515
        %v2517 = vpop.f32.mrb[0].mxu0
        %2518 = vmatprep.mubr.bf16.mxu0 0
        %2519 = vmatmul.mubr.bf16.gmra.mrb[0].mxu0 %v2213
        %v2520 = vpop.f32.mrb[0].mxu0
        %v2521 = vadd.f32 %v2244, %v2520
        %v2522 = vpop.f32.mrb[0].mxu0
        %v2523 = vpop.f32.mrb[0].mxu0
        %v2524 = vadd.f32 %v2244, %v2523
        %v2525 = vpop.f32.mrb[0].mxu0
        %2526 = vmatprep.mubr.bf16.mxu0 0
        %2527 = vmatmul.mubr.bf16.gmra.mrb[0].mxu0 %v2214
        %v2528 = vpop.f32.mrb[0].mxu0
        %v2529 = vadd.f32 %v2244, %v2528
        %v2530 = vpop.f32.mrb[0].mxu0
        %v2531 = vpop.f32.mrb[0].mxu0
        %v2532 = vadd.f32 %v2244, %v2531
        %v2533 = vpop.f32.mrb[0].mxu0
        %2534 = vmatprep.mubr.bf16.mxu0 0
        %2535 = vmatmul.mubr.bf16.gmra.mrb[0].mxu0 %v2215
        %v2536 = vpop.f32.mrb[0].mxu0
        %v2537 = vadd.f32 %v2244, %v2536
        %v2538 = vpop.f32.mrb[0].mxu0
        %v2539 = vpop.f32.mrb[0].mxu0
        %v2540 = vadd.f32 %v2244, %v2539
        %v2541 = vpop.f32.mrb[0].mxu0
        %2542 = vmatprep.mubr.bf16.mxu0 0
        %2543 = vmatmul.mubr.bf16.gmra.mrb[0].mxu0 %v2216
        %v2544 = vpop.f32.mrb[0].mxu0
        %v2545 = vadd.f32 %v2244, %v2544
        %v2546 = vpop.f32.mrb[0].mxu0
        %v2547 = vpop.f32.mrb[0].mxu0
        %v2548 = vadd.f32 %v2244, %v2547
        %v2549 = vpop.f32.mrb[0].mxu0
        %2550 = vmatprep.mubr.bf16.mxu0 0
        %2551 = vmatmul.mubr.bf16.gmra.mrb[0].mxu0 %v2217
        %v2552 = vpop.f32.mrb[0].mxu0
        %v2553 = vadd.f32 %v2244, %v2552
        %v2554 = vpop.f32.mrb[0].mxu0
        %v2555 = vpop.f32.mrb[0].mxu0
        %v2556 = vadd.f32 %v2244, %v2555
        %v2557 = vpop.f32.mrb[0].mxu0
        %2558 = vmatprep.mubr.bf16.mxu0 0
        %2559 = vmatmul.mubr.bf16.gmra.mrb[0].mxu0 %v2218
        %v2560 = vpop.f32.mrb[0].mxu0
        %v2561 = vadd.f32 %v2244, %v2560
        %v2562 = vpop.f32.mrb[0].mxu0
        %v2563 = vpop.f32.mrb[0].mxu0
        %v2564 = vadd.f32 %v2244, %v2563
        %v2565 = vpop.f32.mrb[0].mxu0
        %2566 = vmatprep.mubr.bf16.mxu0 0
        %2567 = vmatmul.mubr.bf16.gmra.mrb[0].mxu0 %v2219
        %v2568 = vpop.f32.mrb[0].mxu0
        %v2569 = vadd.f32 %v2244, %v2568
        %v2570 = vpop.f32.mrb[0].mxu0
        %v2571 = vpop.f32.mrb[0].mxu0
        %v2572 = vadd.f32 %v2244, %v2571
        %v2573 = vpop.f32.mrb[0].mxu0
        %2574 = vmatprep.mubr.bf16.mxu0 0
        %2575 = vmatmul.mubr.bf16.gmra.mrb[0].mxu0 %v2220
        %v2576 = vpop.f32.mrb[0].mxu0
        %v2577 = vadd.f32 %v2244, %v2576
        %v2578 = vpop.f32.mrb[0].mxu0
        %v2579 = vpop.f32.mrb[0].mxu0
        %v2580 = vadd.f32 %v2244, %v2579
        %v2581 = vpop.f32.mrb[0].mxu0
        %2582 = vdwg.mxu0
        %v2583 = vmax.f32 %v2329, 0.0
        %v2584 = vmax.f32 %v2332, 0.0
        %v2585 = vmax.f32 %v2337, 0.0
        %v2586 = vmax.f32 %v2340, 0.0
        %v2587 = vmax.f32 %v2345, 0.0
        %v2588 = vmax.f32 %v2348, 0.0
        %v2589 = vmax.f32 %v2353, 0.0
        %v2590 = vmax.f32 %v2356, 0.0
        %v2591 = vmax.f32 %v2361, 0.0
        %v2592 = vmax.f32 %v2364, 0.0
        %v2593 = vmax.f32 %v2369, 0.0
        %v2594 = vmax.f32 %v2372, 0.0
        %v2595 = vmax.f32 %v2377, 0.0
        %v2596 = vmax.f32 %v2380, 0.0
        %v2597 = vmax.f32 %v2385, 0.0
        %v2598 = vmax.f32 %v2388, 0.0
        %v2599 = vmax.f32 %v2393, 0.0
        %v2600 = vmax.f32 %v2396, 0.0
        %v2601 = vmax.f32 %v2401, 0.0
        %v2602 = vmax.f32 %v2404, 0.0
        %v2603 = vmax.f32 %v2409, 0.0
        %v2604 = vmax.f32 %v2412, 0.0
        %v2605 = vmax.f32 %v2417, 0.0
        %v2606 = vmax.f32 %v2420, 0.0
        %v2607 = vmax.f32 %v2425, 0.0
        %v2608 = vmax.f32 %v2428, 0.0
        %v2609 = vmax.f32 %v2433, 0.0
        %v2610 = vmax.f32 %v2436, 0.0
        %v2611 = vmax.f32 %v2441, 0.0
        %v2612 = vmax.f32 %v2444, 0.0
        %v2613 = vmax.f32 %v2449, 0.0
        %v2614 = vmax.f32 %v2452, 0.0
        %v2615 = vmax.f32 %v2457, 0.0
        %v2616 = vmax.f32 %v2460, 0.0
        %v2617 = vmax.f32 %v2465, 0.0
        %v2618 = vmax.f32 %v2468, 0.0
        %v2619 = vmax.f32 %v2473, 0.0
        %v2620 = vmax.f32 %v2476, 0.0
        %v2621 = vmax.f32 %v2481, 0.0
        %v2622 = vmax.f32 %v2484, 0.0
        %v2623 = vmax.f32 %v2489, 0.0
        %v2624 = vmax.f32 %v2492, 0.0
        %v2625 = vmax.f32 %v2497, 0.0
        %v2626 = vmax.f32 %v2500, 0.0
        %v2627 = vmax.f32 %v2505, 0.0
        %v2628 = vmax.f32 %v2508, 0.0
        %v2629 = vmax.f32 %v2513, 0.0
        %v2630 = vmax.f32 %v2516, 0.0
        %v2631 = vmax.f32 %v2521, 0.0
        %v2632 = vmax.f32 %v2524, 0.0
        %v2633 = vmax.f32 %v2529, 0.0
        %v2634 = vmax.f32 %v2532, 0.0
        %v2635 = vmax.f32 %v2537, 0.0
        %v2636 = vmax.f32 %v2540, 0.0
        %v2637 = vmax.f32 %v2545, 0.0
        %v2638 = vmax.f32 %v2548, 0.0
        %v2639 = vmax.f32 %v2553, 0.0
        %v2640 = vmax.f32 %v2556, 0.0
        %v2641 = vmax.f32 %v2561, 0.0
        %v2642 = vmax.f32 %v2564, 0.0
        %v2643 = vmax.f32 %v2569, 0.0
        %v2644 = vmax.f32 %v2572, 0.0
        %v2645 = vmax.f32 %v2577, 0.0
        %v2646 = vmax.f32 %v2580, 0.0
        %v2647 = vpack.c.bf16 %v2584, %v2583
        %v2648 = vpack.c.bf16 %v2586, %v2585
        %v2649 = vpack.c.bf16 %v2588, %v2587
        %v2650 = vpack.c.bf16 %v2590, %v2589
        %v2651 = vpack.c.bf16 %v2592, %v2591
        %v2652 = vpack.c.bf16 %v2594, %v2593
        %v2653 = vpack.c.bf16 %v2596, %v2595
        %v2654 = vpack.c.bf16 %v2598, %v2597
        %v2655 = vpack.c.bf16 %v2600, %v2599
        %v2656 = vpack.c.bf16 %v2602, %v2601
        %v2657 = vpack.c.bf16 %v2604, %v2603
        %v2658 = vpack.c.bf16 %v2606, %v2605
        %v2659 = vpack.c.bf16 %v2608, %v2607
        %v2660 = vpack.c.bf16 %v2610, %v2609
        %v2661 = vpack.c.bf16 %v2612, %v2611
        %v2662 = vpack.c.bf16 %v2614, %v2613
        %v2663 = vpack.c.bf16 %v2616, %v2615
        %v2664 = vpack.c.bf16 %v2618, %v2617
        %v2665 = vpack.c.bf16 %v2620, %v2619
        %v2666 = vpack.c.bf16 %v2622, %v2621
        %v2667 = vpack.c.bf16 %v2624, %v2623
        %v2668 = vpack.c.bf16 %v2626, %v2625
        %v2669 = vpack.c.bf16 %v2628, %v2627
        %v2670 = vpack.c.bf16 %v2630, %v2629
        %v2671 = vpack.c.bf16 %v2632, %v2631
        %v2672 = vpack.c.bf16 %v2634, %v2633
        %v2673 = vpack.c.bf16 %v2636, %v2635
        %v2674 = vpack.c.bf16 %v2638, %v2637
        %v2675 = vpack.c.bf16 %v2640, %v2639
        %v2676 = vpack.c.bf16 %v2642, %v2641
        %v2677 = vpack.c.bf16 %v2644, %v2643
        %v2678 = vpack.c.bf16 %v2646, %v2645
        %2679 = vmatprep.subr.bf16.mxu0 0
        %2680 = vmatpush1.bf16.msra.mxu0 %v2647
        %2681 = vmatprep.subr.bf16.mxu0 0
        %2682 = vmatpush1.bf16.msra.mxu0 %v2648
        %2683 = vmatprep.subr.bf16.mxu0 0
        %2684 = vmatpush1.bf16.msra.mxu0 %v2649
        %2685 = vmatprep.subr.bf16.mxu0 0
        %2686 = vmatpush1.bf16.msra.mxu0 %v2650
        %2687 = vmatprep.subr.bf16.mxu0 0
        %2688 = vmatpush1.bf16.msra.mxu0 %v2651
        %2689 = vmatprep.subr.bf16.mxu0 0
        %2690 = vmatpush1.bf16.msra.mxu0 %v2652
        %2691 = vmatprep.subr.bf16.mxu0 0
        %2692 = vmatpush1.bf16.msra.mxu0 %v2653
        %2693 = vmatprep.subr.bf16.mxu0 0
        %2694 = vmatpush1.bf16.msra.mxu0 %v2654
        %2695 = vmatprep.subr.bf16.mxu0 0
        %2696 = vmatpush1.bf16.msra.mxu0 0
        %2697 = vmatprep.subr.bf16.mxu0 0
        %2698 = vmatpush1.bf16.msra.mxu0 0
        %2699 = vmatprep.subr.bf16.mxu0 0
        %2700 = vmatpush1.bf16.msra.mxu0 0
        %2701 = vmatprep.subr.bf16.mxu0 0
        %2702 = vmatpush1.bf16.msra.mxu0 0
        %2703 = vmatprep.subr.bf16.mxu0 0
        %2704 = vmatpush1.bf16.msra.mxu0 0
        %2705 = vmatprep.subr.bf16.mxu0 0
        %2706 = vmatpush1.bf16.msra.mxu0 0
        %2707 = vmatprep.subr.bf16.mxu0 0
        %2708 = vmatpush1.bf16.msra.mxu0 0
        %2709 = vmatprep.subr.bf16.mxu0 0
        %2710 = vmatpush1.bf16.msra.mxu0 0
        %2711 = vmatprep.mubr.bf16.mxu0 0
        %2712 = vmatmul.mubr.bf16.gmra.mrb[0].mxu0 %v573
        %v2713 = vpop.f32.mrb[0].mxu0
        %v2714 = vadd.f32 0.0, %v2713
        %v2715 = vpop.f32.mrb[0].mxu0
        %v2716 = vpop.f32.mrb[0].mxu0
        %v2717 = vadd.f32 0.0, %v2716
        %v2718 = vpop.f32.mrb[0].mxu0
        %2719 = vmatprep.mubr.bf16.mxu0 0
        %2720 = vmatmul.mubr.bf16.gmra.mrb[0].mxu0 %v574
        %v2721 = vpop.f32.mrb[0].mxu0
        %v2722 = vadd.f32 0.0, %v2721
        %v2723 = vpop.f32.mrb[0].mxu0
        %v2724 = vpop.f32.mrb[0].mxu0
        %v2725 = vadd.f32 0.0, %v2724
        %v2726 = vpop.f32.mrb[0].mxu0
        %2727 = vmatprep.mubr.bf16.mxu0 0
        %2728 = vmatmul.mubr.bf16.gmra.mrb[0].mxu0 %v575
        %v2729 = vpop.f32.mrb[0].mxu0
        %v2730 = vadd.f32 0.0, %v2729
        %v2731 = vpop.f32.mrb[0].mxu0
        %v2732 = vpop.f32.mrb[0].mxu0
        %v2733 = vadd.f32 0.0, %v2732
        %v2734 = vpop.f32.mrb[0].mxu0
        %2735 = vmatprep.mubr.bf16.mxu0 0
        %2736 = vmatmul.mubr.bf16.gmra.mrb[0].mxu0 %v576
        %v2737 = vpop.f32.mrb[0].mxu0
        %v2738 = vadd.f32 0.0, %v2737
        %v2739 = vpop.f32.mrb[0].mxu0
        %v2740 = vpop.f32.mrb[0].mxu0
        %v2741 = vadd.f32 0.0, %v2740
        %v2742 = vpop.f32.mrb[0].mxu0
        %2743 = vmatprep.mubr.bf16.mxu0 0
        %2744 = vmatmul.mubr.bf16.gmra.mrb[0].mxu0 %v577
        %v2745 = vpop.f32.mrb[0].mxu0
        %v2746 = vadd.f32 0.0, %v2745
        %v2747 = vpop.f32.mrb[0].mxu0
        %v2748 = vpop.f32.mrb[0].mxu0
        %v2749 = vadd.f32 0.0, %v2748
        %v2750 = vpop.f32.mrb[0].mxu0
        %2751 = vmatprep.mubr.bf16.mxu0 0
        %2752 = vmatmul.mubr.bf16.gmra.mrb[0].mxu0 %v578
        %v2753 = vpop.f32.mrb[0].mxu0
        %v2754 = vadd.f32 0.0, %v2753
        %v2755 = vpop.f32.mrb[0].mxu0
        %v2756 = vpop.f32.mrb[0].mxu0
        %v2757 = vadd.f32 0.0, %v2756
        %v2758 = vpop.f32.mrb[0].mxu0
        %2759 = vmatprep.mubr.bf16.mxu0 0
        %2760 = vmatmul.mubr.bf16.gmra.mrb[0].mxu0 %v579
        %v2761 = vpop.f32.mrb[0].mxu0
        %v2762 = vadd.f32 0.0, %v2761
        %v2763 = vpop.f32.mrb[0].mxu0
        %v2764 = vpop.f32.mrb[0].mxu0
        %v2765 = vadd.f32 0.0, %v2764
        %v2766 = vpop.f32.mrb[0].mxu0
        %2767 = vmatprep.mubr.bf16.mxu0 0
        %2768 = vmatmul.mubr.bf16.gmra.mrb[0].mxu0 %v580
        %v2769 = vpop.f32.mrb[0].mxu0
        %v2770 = vadd.f32 0.0, %v2769
        %v2771 = vpop.f32.mrb[0].mxu0
        %v2772 = vpop.f32.mrb[0].mxu0
        %v2773 = vadd.f32 0.0, %v2772
        %v2774 = vpop.f32.mrb[0].mxu0
        %2775 = vdwg.mxu0
        %2776 = vmatprep.subr.bf16.mxu0 0
        %2777 = vmatpush1.bf16.msra.mxu0 %v2655
        %2778 = vmatprep.subr.bf16.mxu0 0
        %2779 = vmatpush1.bf16.msra.mxu0 %v2656
        %2780 = vmatprep.subr.bf16.mxu0 0
        %2781 = vmatpush1.bf16.msra.mxu0 %v2657
        %2782 = vmatprep.subr.bf16.mxu0 0
        %2783 = vmatpush1.bf16.msra.mxu0 %v2658
        %2784 = vmatprep.subr.bf16.mxu0 0
        %2785 = vmatpush1.bf16.msra.mxu0 %v2659
        %2786 = vmatprep.subr.bf16.mxu0 0
        %2787 = vmatpush1.bf16.msra.mxu0 %v2660
        %2788 = vmatprep.subr.bf16.mxu0 0
        %2789 = vmatpush1.bf16.msra.mxu0 %v2661
        %2790 = vmatprep.subr.bf16.mxu0 0
        %2791 = vmatpush1.bf16.msra.mxu0 %v2662
        %2792 = vmatprep.subr.bf16.mxu0 0
        %2793 = vmatpush1.bf16.msra.mxu0 0
        %2794 = vmatprep.subr.bf16.mxu0 0
        %2795 = vmatpush1.bf16.msra.mxu0 0
        %2796 = vmatprep.subr.bf16.mxu0 0
        %2797 = vmatpush1.bf16.msra.mxu0 0
        %2798 = vmatprep.subr.bf16.mxu0 0
        %2799 = vmatpush1.bf16.msra.mxu0 0
        %2800 = vmatprep.subr.bf16.mxu0 0
        %2801 = vmatpush1.bf16.msra.mxu0 0
        %2802 = vmatprep.subr.bf16.mxu0 0
        %2803 = vmatpush1.bf16.msra.mxu0 0
        %2804 = vmatprep.subr.bf16.mxu0 0
        %2805 = vmatpush1.bf16.msra.mxu0 0
        %2806 = vmatprep.subr.bf16.mxu0 0
        %2807 = vmatpush1.bf16.msra.mxu0 0
        %2808 = vmatprep.mubr.bf16.mxu0 0
        %2809 = vmatmul.mubr.bf16.gmra.mrb[0].mxu0 %v766
        %v2810 = vpop.f32.mrb[0].mxu0
        %v2811 = vadd.f32 0.0, %v2810
        %v2812 = vpop.f32.mrb[0].mxu0
        %v2813 = vpop.f32.mrb[0].mxu0
        %v2814 = vadd.f32 0.0, %v2813
        %v2815 = vpop.f32.mrb[0].mxu0
        %2816 = vmatprep.mubr.bf16.mxu0 0
        %2817 = vmatmul.mubr.bf16.gmra.mrb[0].mxu0 %v767
        %v2818 = vpop.f32.mrb[0].mxu0
        %v2819 = vadd.f32 0.0, %v2818
        %v2820 = vpop.f32.mrb[0].mxu0
        %v2821 = vpop.f32.mrb[0].mxu0
        %v2822 = vadd.f32 0.0, %v2821
        %v2823 = vpop.f32.mrb[0].mxu0
        %2824 = vmatprep.mubr.bf16.mxu0 0
        %2825 = vmatmul.mubr.bf16.gmra.mrb[0].mxu0 %v768
        %v2826 = vpop.f32.mrb[0].mxu0
        %v2827 = vadd.f32 0.0, %v2826
        %v2828 = vpop.f32.mrb[0].mxu0
        %v2829 = vpop.f32.mrb[0].mxu0
        %v2830 = vadd.f32 0.0, %v2829
        %v2831 = vpop.f32.mrb[0].mxu0
        %2832 = vmatprep.mubr.bf16.mxu0 0
        %2833 = vmatmul.mubr.bf16.gmra.mrb[0].mxu0 %v769
        %v2834 = vpop.f32.mrb[0].mxu0
        %v2835 = vadd.f32 0.0, %v2834
        %v2836 = vpop.f32.mrb[0].mxu0
        %v2837 = vpop.f32.mrb[0].mxu0
        %v2838 = vadd.f32 0.0, %v2837
        %v2839 = vpop.f32.mrb[0].mxu0
        %2840 = vmatprep.mubr.bf16.mxu0 0
        %2841 = vmatmul.mubr.bf16.gmra.mrb[0].mxu0 %v770
        %v2842 = vpop.f32.mrb[0].mxu0
        %v2843 = vadd.f32 0.0, %v2842
        %v2844 = vpop.f32.mrb[0].mxu0
        %v2845 = vpop.f32.mrb[0].mxu0
        %v2846 = vadd.f32 0.0, %v2845
        %v2847 = vpop.f32.mrb[0].mxu0
        %2848 = vmatprep.mubr.bf16.mxu0 0
        %2849 = vmatmul.mubr.bf16.gmra.mrb[0].mxu0 %v771
        %v2850 = vpop.f32.mrb[0].mxu0
        %v2851 = vadd.f32 0.0, %v2850
        %v2852 = vpop.f32.mrb[0].mxu0
        %v2853 = vpop.f32.mrb[0].mxu0
        %v2854 = vadd.f32 0.0, %v2853
        %v2855 = vpop.f32.mrb[0].mxu0
        %2856 = vmatprep.mubr.bf16.mxu0 0
        %2857 = vmatmul.mubr.bf16.gmra.mrb[0].mxu0 %v772
        %v2858 = vpop.f32.mrb[0].mxu0
        %v2859 = vadd.f32 0.0, %v2858
        %v2860 = vpop.f32.mrb[0].mxu0
        %v2861 = vpop.f32.mrb[0].mxu0
        %v2862 = vadd.f32 0.0, %v2861
        %v2863 = vpop.f32.mrb[0].mxu0
        %2864 = vmatprep.mubr.bf16.mxu0 0
        %2865 = vmatmul.mubr.bf16.gmra.mrb[0].mxu0 %v773
        %v2866 = vpop.f32.mrb[0].mxu0
        %v2867 = vadd.f32 0.0, %v2866
        %v2868 = vpop.f32.mrb[0].mxu0
        %v2869 = vpop.f32.mrb[0].mxu0
        %v2870 = vadd.f32 0.0, %v2869
        %v2871 = vpop.f32.mrb[0].mxu0
        %2872 = vdwg.mxu0
        %2873 = vmatprep.subr.bf16.mxu0 0
        %2874 = vmatpush1.bf16.msra.mxu0 %v2663
        %2875 = vmatprep.subr.bf16.mxu0 0
        %2876 = vmatpush1.bf16.msra.mxu0 %v2664
        %2877 = vmatprep.subr.bf16.mxu0 0
        %2878 = vmatpush1.bf16.msra.mxu0 %v2665
        %2879 = vmatprep.subr.bf16.mxu0 0
        %2880 = vmatpush1.bf16.msra.mxu0 %v2666
        %2881 = vmatprep.subr.bf16.mxu0 0
        %2882 = vmatpush1.bf16.msra.mxu0 %v2667
        %2883 = vmatprep.subr.bf16.mxu0 0
        %2884 = vmatpush1.bf16.msra.mxu0 %v2668
        %2885 = vmatprep.subr.bf16.mxu0 0
        %2886 = vmatpush1.bf16.msra.mxu0 %v2669
        %2887 = vmatprep.subr.bf16.mxu0 0
        %2888 = vmatpush1.bf16.msra.mxu0 %v2670
        %2889 = vmatprep.subr.bf16.mxu0 0
        %2890 = vmatpush1.bf16.msra.mxu0 0
        %2891 = vmatprep.subr.bf16.mxu0 0
        %2892 = vmatpush1.bf16.msra.mxu0 0
        %2893 = vmatprep.subr.bf16.mxu0 0
        %2894 = vmatpush1.bf16.msra.mxu0 0
        %2895 = vmatprep.subr.bf16.mxu0 0
        %2896 = vmatpush1.bf16.msra.mxu0 0
        %2897 = vmatprep.subr.bf16.mxu0 0
        %2898 = vmatpush1.bf16.msra.mxu0 0
        %2899 = vmatprep.subr.bf16.mxu0 0
        %2900 = vmatpush1.bf16.msra.mxu0 0
        %2901 = vmatprep.subr.bf16.mxu0 0
        %2902 = vmatpush1.bf16.msra.mxu0 0
        %2903 = vmatprep.subr.bf16.mxu0 0
        %2904 = vmatpush1.bf16.msra.mxu0 0
        %2905 = vmatprep.mubr.bf16.mxu0 0
        %2906 = vmatmul.mubr.bf16.gmra.mrb[0].mxu0 %v959
        %v2907 = vpop.f32.mrb[0].mxu0
        %v2908 = vadd.f32 0.0, %v2907
        %v2909 = vpop.f32.mrb[0].mxu0
        %v2910 = vpop.f32.mrb[0].mxu0
        %v2911 = vadd.f32 0.0, %v2910
        %v2912 = vpop.f32.mrb[0].mxu0
        %2913 = vmatprep.mubr.bf16.mxu0 0
        %2914 = vmatmul.mubr.bf16.gmra.mrb[0].mxu0 %v960
        %v2915 = vpop.f32.mrb[0].mxu0
        %v2916 = vadd.f32 0.0, %v2915
        %v2917 = vpop.f32.mrb[0].mxu0
        %v2918 = vpop.f32.mrb[0].mxu0
        %v2919 = vadd.f32 0.0, %v2918
        %v2920 = vpop.f32.mrb[0].mxu0
        %2921 = vmatprep.mubr.bf16.mxu0 0
        %2922 = vmatmul.mubr.bf16.gmra.mrb[0].mxu0 %v961
        %v2923 = vpop.f32.mrb[0].mxu0
        %v2924 = vadd.f32 0.0, %v2923
        %v2925 = vpop.f32.mrb[0].mxu0
        %v2926 = vpop.f32.mrb[0].mxu0
        %v2927 = vadd.f32 0.0, %v2926
        %v2928 = vpop.f32.mrb[0].mxu0
        %2929 = vmatprep.mubr.bf16.mxu0 0
        %2930 = vmatmul.mubr.bf16.gmra.mrb[0].mxu0 %v962
        %v2931 = vpop.f32.mrb[0].mxu0
        %v2932 = vadd.f32 0.0, %v2931
        %v2933 = vpop.f32.mrb[0].mxu0
        %v2934 = vpop.f32.mrb[0].mxu0
        %v2935 = vadd.f32 0.0, %v2934
        %v2936 = vpop.f32.mrb[0].mxu0
        %2937 = vmatprep.mubr.bf16.mxu0 0
        %2938 = vmatmul.mubr.bf16.gmra.mrb[0].mxu0 %v963
        %v2939 = vpop.f32.mrb[0].mxu0
        %v2940 = vadd.f32 0.0, %v2939
        %v2941 = vpop.f32.mrb[0].mxu0
        %v2942 = vpop.f32.mrb[0].mxu0
        %v2943 = vadd.f32 0.0, %v2942
        %v2944 = vpop.f32.mrb[0].mxu0
        %2945 = vmatprep.mubr.bf16.mxu0 0
        %2946 = vmatmul.mubr.bf16.gmra.mrb[0].mxu0 %v964
        %v2947 = vpop.f32.mrb[0].mxu0
        %v2948 = vadd.f32 0.0, %v2947
        %v2949 = vpop.f32.mrb[0].mxu0
        %v2950 = vpop.f32.mrb[0].mxu0
        %v2951 = vadd.f32 0.0, %v2950
        %v2952 = vpop.f32.mrb[0].mxu0
        %2953 = vmatprep.mubr.bf16.mxu0 0
        %2954 = vmatmul.mubr.bf16.gmra.mrb[0].mxu0 %v965
        %v2955 = vpop.f32.mrb[0].mxu0
        %v2956 = vadd.f32 0.0, %v2955
        %v2957 = vpop.f32.mrb[0].mxu0
        %v2958 = vpop.f32.mrb[0].mxu0
        %v2959 = vadd.f32 0.0, %v2958
        %v2960 = vpop.f32.mrb[0].mxu0
        %2961 = vmatprep.mubr.bf16.mxu0 0
        %2962 = vmatmul.mubr.bf16.gmra.mrb[0].mxu0 %v966
        %v2963 = vpop.f32.mrb[0].mxu0
        %v2964 = vadd.f32 0.0, %v2963
        %v2965 = vpop.f32.mrb[0].mxu0
        %v2966 = vpop.f32.mrb[0].mxu0
        %v2967 = vadd.f32 0.0, %v2966
        %v2968 = vpop.f32.mrb[0].mxu0
        %2969 = vdwg.mxu0
        %2970 = vmatprep.subr.bf16.mxu0 0
        %2971 = vmatpush1.bf16.msra.mxu0 %v2671
        %2972 = vmatprep.subr.bf16.mxu0 0
        %2973 = vmatpush1.bf16.msra.mxu0 %v2672
        %2974 = vmatprep.subr.bf16.mxu0 0
        %2975 = vmatpush1.bf16.msra.mxu0 %v2673
        %2976 = vmatprep.subr.bf16.mxu0 0
        %2977 = vmatpush1.bf16.msra.mxu0 %v2674
        %2978 = vmatprep.subr.bf16.mxu0 0
        %2979 = vmatpush1.bf16.msra.mxu0 %v2675
        %2980 = vmatprep.subr.bf16.mxu0 0
        %2981 = vmatpush1.bf16.msra.mxu0 %v2676
        %2982 = vmatprep.subr.bf16.mxu0 0
        %2983 = vmatpush1.bf16.msra.mxu0 %v2677
        %2984 = vmatprep.subr.bf16.mxu0 0
        %2985 = vmatpush1.bf16.msra.mxu0 %v2678
        %2986 = vmatprep.subr.bf16.mxu0 0
        %2987 = vmatpush1.bf16.msra.mxu0 0
        %2988 = vmatprep.subr.bf16.mxu0 0
        %2989 = vmatpush1.bf16.msra.mxu0 0
        %2990 = vmatprep.subr.bf16.mxu0 0
        %2991 = vmatpush1.bf16.msra.mxu0 0
        %2992 = vmatprep.subr.bf16.mxu0 0
        %2993 = vmatpush1.bf16.msra.mxu0 0
        %2994 = vmatprep.subr.bf16.mxu0 0
        %2995 = vmatpush1.bf16.msra.mxu0 0
        %2996 = vmatprep.subr.bf16.mxu0 0
        %2997 = vmatpush1.bf16.msra.mxu0 0
        %2998 = vmatprep.subr.bf16.mxu0 0
        %2999 = vmatpush1.bf16.msra.mxu0 0
        %3000 = vmatprep.subr.bf16.mxu0 0
        %3001 = vmatpush1.bf16.msra.mxu0 0
        %3002 = vmatprep.mubr.bf16.mxu0 0
        %3003 = vmatmul.mubr.bf16.gmra.mrb[0].mxu0 %v1152
        %v3004 = vpop.f32.mrb[0].mxu0
        %v3005 = vadd.f32 0.0, %v3004
        %v3006 = vpop.f32.mrb[0].mxu0
        %v3007 = vpop.f32.mrb[0].mxu0
        %v3008 = vadd.f32 0.0, %v3007
        %v3009 = vpop.f32.mrb[0].mxu0
        %3010 = vmatprep.mubr.bf16.mxu0 0
        %3011 = vmatmul.mubr.bf16.gmra.mrb[0].mxu0 %v1153
        %v3012 = vpop.f32.mrb[0].mxu0
        %v3013 = vadd.f32 0.0, %v3012
        %v3014 = vpop.f32.mrb[0].mxu0
        %v3015 = vpop.f32.mrb[0].mxu0
        %v3016 = vadd.f32 0.0, %v3015
        %v3017 = vpop.f32.mrb[0].mxu0
        %3018 = vmatprep.mubr.bf16.mxu0 0
        %3019 = vmatmul.mubr.bf16.gmra.mrb[0].mxu0 %v1154
        %v3020 = vpop.f32.mrb[0].mxu0
        %v3021 = vadd.f32 0.0, %v3020
        %v3022 = vpop.f32.mrb[0].mxu0
        %v3023 = vpop.f32.mrb[0].mxu0
        %v3024 = vadd.f32 0.0, %v3023
        %v3025 = vpop.f32.mrb[0].mxu0
        %3026 = vmatprep.mubr.bf16.mxu0 0
        %3027 = vmatmul.mubr.bf16.gmra.mrb[0].mxu0 %v1155
        %v3028 = vpop.f32.mrb[0].mxu0
        %v3029 = vadd.f32 0.0, %v3028
        %v3030 = vpop.f32.mrb[0].mxu0
        %v3031 = vpop.f32.mrb[0].mxu0
        %v3032 = vadd.f32 0.0, %v3031
        %v3033 = vpop.f32.mrb[0].mxu0
        %3034 = vmatprep.mubr.bf16.mxu0 0
        %3035 = vmatmul.mubr.bf16.gmra.mrb[0].mxu0 %v1156
        %v3036 = vpop.f32.mrb[0].mxu0
        %v3037 = vadd.f32 0.0, %v3036
        %v3038 = vpop.f32.mrb[0].mxu0
        %v3039 = vpop.f32.mrb[0].mxu0
        %v3040 = vadd.f32 0.0, %v3039
        %v3041 = vpop.f32.mrb[0].mxu0
        %3042 = vmatprep.mubr.bf16.mxu0 0
        %3043 = vmatmul.mubr.bf16.gmra.mrb[0].mxu0 %v1157
        %v3044 = vpop.f32.mrb[0].mxu0
        %v3045 = vadd.f32 0.0, %v3044
        %v3046 = vpop.f32.mrb[0].mxu0
        %v3047 = vpop.f32.mrb[0].mxu0
        %v3048 = vadd.f32 0.0, %v3047
        %v3049 = vpop.f32.mrb[0].mxu0
        %3050 = vmatprep.mubr.bf16.mxu0 0
        %3051 = vmatmul.mubr.bf16.gmra.mrb[0].mxu0 %v1158
        %v3052 = vpop.f32.mrb[0].mxu0
        %v3053 = vadd.f32 0.0, %v3052
        %v3054 = vpop.f32.mrb[0].mxu0
        %v3055 = vpop.f32.mrb[0].mxu0
        %v3056 = vadd.f32 0.0, %v3055
        %v3057 = vpop.f32.mrb[0].mxu0
        %3058 = vmatprep.mubr.bf16.mxu0 0
        %3059 = vmatmul.mubr.bf16.gmra.mrb[0].mxu0 %v1159
        %v3060 = vpop.f32.mrb[0].mxu0
        %v3061 = vadd.f32 0.0, %v3060
        %v3062 = vpop.f32.mrb[0].mxu0
        %v3063 = vpop.f32.mrb[0].mxu0
        %v3064 = vadd.f32 0.0, %v3063
        %v3065 = vpop.f32.mrb[0].mxu0
        %3066 = vdwg.mxu0
        %v3067 = vpack.c.bf16 %v2717, %v2714
        %v3068 = vpack.c.bf16 %v2725, %v2722
        %v3069 = vpack.c.bf16 %v2733, %v2730
        %v3070 = vpack.c.bf16 %v2741, %v2738
        %v3071 = vpack.c.bf16 %v2749, %v2746
        %v3072 = vpack.c.bf16 %v2757, %v2754
        %v3073 = vpack.c.bf16 %v2765, %v2762
        %v3074 = vpack.c.bf16 %v2773, %v2770
        %v3075 = vpack.c.bf16 %v2814, %v2811
        %v3076 = vpack.c.bf16 %v2822, %v2819
        %v3077 = vpack.c.bf16 %v2830, %v2827
        %v3078 = vpack.c.bf16 %v2838, %v2835
        %v3079 = vpack.c.bf16 %v2846, %v2843
        %v3080 = vpack.c.bf16 %v2854, %v2851
        %v3081 = vpack.c.bf16 %v2862, %v2859
        %v3082 = vpack.c.bf16 %v2870, %v2867
        %v3083 = vpack.c.bf16 %v2911, %v2908
        %v3084 = vpack.c.bf16 %v2919, %v2916
        %v3085 = vpack.c.bf16 %v2927, %v2924
        %v3086 = vpack.c.bf16 %v2935, %v2932
        %v3087 = vpack.c.bf16 %v2943, %v2940
        %v3088 = vpack.c.bf16 %v2951, %v2948
        %v3089 = vpack.c.bf16 %v2959, %v2956
        %v3090 = vpack.c.bf16 %v2967, %v2964
        %v3091 = vpack.c.bf16 %v3008, %v3005
        %v3092 = vpack.c.bf16 %v3016, %v3013
        %v3093 = vpack.c.bf16 %v3024, %v3021
        %v3094 = vpack.c.bf16 %v3032, %v3029
        %v3095 = vpack.c.bf16 %v3040, %v3037
        %v3096 = vpack.c.bf16 %v3048, %v3045
        %v3097 = vpack.c.bf16 %v3056, %v3053
        %v3098 = vpack.c.bf16 %v3064, %v3061
        %s3099 = scalar_lea.vmem [#allocation7], 128
        %v3100 = vld [vmem:[%s3099] sm:$0xf]
        %v3101 = vld [vmem:[%s3099 + $0x4] sm:$0xf]
        %v3102 = vld [vmem:[%s3099 + $0x8] sm:$0xf]
        %v3103 = vld [vmem:[%s3099 + $0xc] sm:$0xf]
        %v3104 = vld [vmem:[%s3099 + $0x10] sm:$0xf]
        %v3105 = vld [vmem:[%s3099 + $0x14] sm:$0xf]
        %v3106 = vld [vmem:[%s3099 + $0x18] sm:$0xf]
        %v3107 = vld [vmem:[%s3099 + $0x1c] sm:$0xf]
        %v3108 = vld [vmem:[%s3099 + $0x20] sm:$0xf]
        %v3109 = vld [vmem:[%s3099 + $0x24] sm:$0xf]
        %v3110 = vld [vmem:[%s3099 + $0x28] sm:$0xf]
        %v3111 = vld [vmem:[%s3099 + $0x2c] sm:$0xf]
        %v3112 = vld [vmem:[%s3099 + $0x30] sm:$0xf]
        %v3113 = vld [vmem:[%s3099 + $0x34] sm:$0xf]
        %v3114 = vld [vmem:[%s3099 + $0x38] sm:$0xf]
        %v3115 = vld [vmem:[%s3099 + $0x3c] sm:$0xf]
        %s3116 = scalar_lea.vmem %s3, 2
        %v3117 = vld [vmem:[%s3116] sm:$0x1]
        %v3119 = vlaneseq
        %v3120 = vshrl.u32 %v3119, 7
        %v3121 = vsub.s32 0, %v3120
        %v3122 = vrot.slane %v3117, %v3121
        %v3140 = vunpack.c.l.b16 %v3100
        %v3141 = vunpack.c.l.b16 %v3101
        %v3142 = vunpack.c.l.b16 %v3102
        %v3143 = vunpack.c.l.b16 %v3103
        %v3144 = vunpack.c.l.b16 %v3104
        %v3145 = vunpack.c.l.b16 %v3105
        %v3146 = vunpack.c.l.b16 %v3106
        %v3147 = vunpack.c.l.b16 %v3107
        %v3148 = vunpack.c.l.b16 %v3108
        %v3149 = vunpack.c.l.b16 %v3109
        %v3150 = vunpack.c.l.b16 %v3110
        %v3151 = vunpack.c.l.b16 %v3111
        %v3152 = vunpack.c.l.b16 %v3112
        %v3153 = vunpack.c.l.b16 %v3113
        %v3154 = vunpack.c.l.b16 %v3114
        %v3155 = vunpack.c.l.b16 %v3115
        %v3156 = vpack.c.b16 %v3141, %v3140
        %v3157 = vpack.c.b16 %v3143, %v3142
        %v3158 = vpack.c.b16 %v3145, %v3144
        %v3159 = vpack.c.b16 %v3147, %v3146
        %v3160 = vpack.c.b16 %v3149, %v3148
        %v3161 = vpack.c.b16 %v3151, %v3150
        %v3162 = vpack.c.b16 %v3153, %v3152
        %v3163 = vpack.c.b16 %v3155, %v3154
        %3172 = vmatprep.subr.bf16.mxu0 0
        %3173 = vmatpush1.bf16.msra.mxu0 %v3156
        %3174 = vmatprep.subr.bf16.mxu0 0
        %3175 = vmatpush1.bf16.msra.mxu0 %v3157
        %3176 = vmatprep.subr.bf16.mxu0 0
        %3177 = vmatpush1.bf16.msra.mxu0 %v3158
        %3178 = vmatprep.subr.bf16.mxu0 0
        %3179 = vmatpush1.bf16.msra.mxu0 %v3159
        %3180 = vmatprep.subr.bf16.mxu0 0
        %3181 = vmatpush1.bf16.msra.mxu0 %v3160
        %3182 = vmatprep.subr.bf16.mxu0 0
        %3183 = vmatpush1.bf16.msra.mxu0 %v3161
        %3184 = vmatprep.subr.bf16.mxu0 0
        %3185 = vmatpush1.bf16.msra.mxu0 %v3162
        %3186 = vmatprep.subr.bf16.mxu0 0
        %3187 = vmatpush1.bf16.msra.mxu0 %v3163
        %3188 = vmatprep.subr.bf16.mxu0 0
        %3189 = vmatpush1.bf16.msra.mxu0 0
        %3190 = vmatprep.subr.bf16.mxu0 0
        %3191 = vmatpush1.bf16.msra.mxu0 0
        %3192 = vmatprep.subr.bf16.mxu0 0
        %3193 = vmatpush1.bf16.msra.mxu0 0
        %3194 = vmatprep.subr.bf16.mxu0 0
        %3195 = vmatpush1.bf16.msra.mxu0 0
        %3196 = vmatprep.subr.bf16.mxu0 0
        %3197 = vmatpush1.bf16.msra.mxu0 0
        %3198 = vmatprep.subr.bf16.mxu0 0
        %3199 = vmatpush1.bf16.msra.mxu0 0
        %3200 = vmatprep.subr.bf16.mxu0 0
        %3201 = vmatpush1.bf16.msra.mxu0 0
        %3202 = vmatprep.subr.bf16.mxu0 0
        %3203 = vmatpush1.bf16.msra.mxu0 0
        %3204 = vmatprep.mubr.bf16.mxu0 0
        %3205 = vmatmul.mubr.bf16.gmra.mrb[0].mxu0 %v3067
        %v3206 = vpop.f32.mrb[0].mxu0
        %v3207 = vadd.f32 %v3122, %v3206
        %v3208 = vpop.f32.mrb[0].mxu0
        %v3209 = vpop.f32.mrb[0].mxu0
        %v3210 = vadd.f32 %v3122, %v3209
        %v3211 = vpop.f32.mrb[0].mxu0
        %3212 = vmatprep.mubr.bf16.mxu0 0
        %3213 = vmatmul.mubr.bf16.gmra.mrb[0].mxu0 %v3068
        %v3214 = vpop.f32.mrb[0].mxu0
        %v3215 = vadd.f32 %v3122, %v3214
        %v3216 = vpop.f32.mrb[0].mxu0
        %v3217 = vpop.f32.mrb[0].mxu0
        %v3218 = vadd.f32 %v3122, %v3217
        %v3219 = vpop.f32.mrb[0].mxu0
        %3220 = vmatprep.mubr.bf16.mxu0 0
        %3221 = vmatmul.mubr.bf16.gmra.mrb[0].mxu0 %v3069
        %v3222 = vpop.f32.mrb[0].mxu0
        %v3223 = vadd.f32 %v3122, %v3222
        %v3224 = vpop.f32.mrb[0].mxu0
        %v3225 = vpop.f32.mrb[0].mxu0
        %v3226 = vadd.f32 %v3122, %v3225
        %v3227 = vpop.f32.mrb[0].mxu0
        %3228 = vmatprep.mubr.bf16.mxu0 0
        %3229 = vmatmul.mubr.bf16.gmra.mrb[0].mxu0 %v3070
        %v3230 = vpop.f32.mrb[0].mxu0
        %v3231 = vadd.f32 %v3122, %v3230
        %v3232 = vpop.f32.mrb[0].mxu0
        %v3233 = vpop.f32.mrb[0].mxu0
        %v3234 = vadd.f32 %v3122, %v3233
        %v3235 = vpop.f32.mrb[0].mxu0
        %3236 = vmatprep.mubr.bf16.mxu0 0
        %3237 = vmatmul.mubr.bf16.gmra.mrb[0].mxu0 %v3071
        %v3238 = vpop.f32.mrb[0].mxu0
        %v3239 = vadd.f32 %v3122, %v3238
        %v3240 = vpop.f32.mrb[0].mxu0
        %v3241 = vpop.f32.mrb[0].mxu0
        %v3242 = vadd.f32 %v3122, %v3241
        %v3243 = vpop.f32.mrb[0].mxu0
        %3244 = vmatprep.mubr.bf16.mxu0 0
        %3245 = vmatmul.mubr.bf16.gmra.mrb[0].mxu0 %v3072
        %v3246 = vpop.f32.mrb[0].mxu0
        %v3247 = vadd.f32 %v3122, %v3246
        %v3248 = vpop.f32.mrb[0].mxu0
        %v3249 = vpop.f32.mrb[0].mxu0
        %v3250 = vadd.f32 %v3122, %v3249
        %v3251 = vpop.f32.mrb[0].mxu0
        %3252 = vmatprep.mubr.bf16.mxu0 0
        %3253 = vmatmul.mubr.bf16.gmra.mrb[0].mxu0 %v3073
        %v3254 = vpop.f32.mrb[0].mxu0
        %v3255 = vadd.f32 %v3122, %v3254
        %v3256 = vpop.f32.mrb[0].mxu0
        %v3257 = vpop.f32.mrb[0].mxu0
        %v3258 = vadd.f32 %v3122, %v3257
        %v3259 = vpop.f32.mrb[0].mxu0
        %3260 = vmatprep.mubr.bf16.mxu0 0
        %3261 = vmatmul.mubr.bf16.gmra.mrb[0].mxu0 %v3074
        %v3262 = vpop.f32.mrb[0].mxu0
        %v3263 = vadd.f32 %v3122, %v3262
        %v3264 = vpop.f32.mrb[0].mxu0
        %v3265 = vpop.f32.mrb[0].mxu0
        %v3266 = vadd.f32 %v3122, %v3265
        %v3267 = vpop.f32.mrb[0].mxu0
        %3268 = vmatprep.mubr.bf16.mxu0 0
        %3269 = vmatmul.mubr.bf16.gmra.mrb[0].mxu0 %v3075
        %v3270 = vpop.f32.mrb[0].mxu0
        %v3271 = vadd.f32 %v3122, %v3270
        %v3272 = vpop.f32.mrb[0].mxu0
        %v3273 = vpop.f32.mrb[0].mxu0
        %v3274 = vadd.f32 %v3122, %v3273
        %v3275 = vpop.f32.mrb[0].mxu0
        %3276 = vmatprep.mubr.bf16.mxu0 0
        %3277 = vmatmul.mubr.bf16.gmra.mrb[0].mxu0 %v3076
        %v3278 = vpop.f32.mrb[0].mxu0
        %v3279 = vadd.f32 %v3122, %v3278
        %v3280 = vpop.f32.mrb[0].mxu0
        %v3281 = vpop.f32.mrb[0].mxu0
        %v3282 = vadd.f32 %v3122, %v3281
        %v3283 = vpop.f32.mrb[0].mxu0
        %3284 = vmatprep.mubr.bf16.mxu0 0
        %3285 = vmatmul.mubr.bf16.gmra.mrb[0].mxu0 %v3077
        %v3286 = vpop.f32.mrb[0].mxu0
        %v3287 = vadd.f32 %v3122, %v3286
        %v3288 = vpop.f32.mrb[0].mxu0
        %v3289 = vpop.f32.mrb[0].mxu0
        %v3290 = vadd.f32 %v3122, %v3289
        %v3291 = vpop.f32.mrb[0].mxu0
        %3292 = vmatprep.mubr.bf16.mxu0 0
        %3293 = vmatmul.mubr.bf16.gmra.mrb[0].mxu0 %v3078
        %v3294 = vpop.f32.mrb[0].mxu0
        %v3295 = vadd.f32 %v3122, %v3294
        %v3296 = vpop.f32.mrb[0].mxu0
        %v3297 = vpop.f32.mrb[0].mxu0
        %v3298 = vadd.f32 %v3122, %v3297
        %v3299 = vpop.f32.mrb[0].mxu0
        %3300 = vmatprep.mubr.bf16.mxu0 0
        %3301 = vmatmul.mubr.bf16.gmra.mrb[0].mxu0 %v3079
        %v3302 = vpop.f32.mrb[0].mxu0
        %v3303 = vadd.f32 %v3122, %v3302
        %v3304 = vpop.f32.mrb[0].mxu0
        %v3305 = vpop.f32.mrb[0].mxu0
        %v3306 = vadd.f32 %v3122, %v3305
        %v3307 = vpop.f32.mrb[0].mxu0
        %3308 = vmatprep.mubr.bf16.mxu0 0
        %3309 = vmatmul.mubr.bf16.gmra.mrb[0].mxu0 %v3080
        %v3310 = vpop.f32.mrb[0].mxu0
        %v3311 = vadd.f32 %v3122, %v3310
        %v3312 = vpop.f32.mrb[0].mxu0
        %v3313 = vpop.f32.mrb[0].mxu0
        %v3314 = vadd.f32 %v3122, %v3313
        %v3315 = vpop.f32.mrb[0].mxu0
        %3316 = vmatprep.mubr.bf16.mxu0 0
        %3317 = vmatmul.mubr.bf16.gmra.mrb[0].mxu0 %v3081
        %v3318 = vpop.f32.mrb[0].mxu0
        %v3319 = vadd.f32 %v3122, %v3318
        %v3320 = vpop.f32.mrb[0].mxu0
        %v3321 = vpop.f32.mrb[0].mxu0
        %v3322 = vadd.f32 %v3122, %v3321
        %v3323 = vpop.f32.mrb[0].mxu0
        %3324 = vmatprep.mubr.bf16.mxu0 0
        %3325 = vmatmul.mubr.bf16.gmra.mrb[0].mxu0 %v3082
        %v3326 = vpop.f32.mrb[0].mxu0
        %v3327 = vadd.f32 %v3122, %v3326
        %v3328 = vpop.f32.mrb[0].mxu0
        %v3329 = vpop.f32.mrb[0].mxu0
        %v3330 = vadd.f32 %v3122, %v3329
        %v3331 = vpop.f32.mrb[0].mxu0
        %3332 = vmatprep.mubr.bf16.mxu0 0
        %3333 = vmatmul.mubr.bf16.gmra.mrb[0].mxu0 %v3083
        %v3334 = vpop.f32.mrb[0].mxu0
        %v3335 = vadd.f32 %v3122, %v3334
        %v3336 = vpop.f32.mrb[0].mxu0
        %v3337 = vpop.f32.mrb[0].mxu0
        %v3338 = vadd.f32 %v3122, %v3337
        %v3339 = vpop.f32.mrb[0].mxu0
        %3340 = vmatprep.mubr.bf16.mxu0 0
        %3341 = vmatmul.mubr.bf16.gmra.mrb[0].mxu0 %v3084
        %v3342 = vpop.f32.mrb[0].mxu0
        %v3343 = vadd.f32 %v3122, %v3342
        %v3344 = vpop.f32.mrb[0].mxu0
        %v3345 = vpop.f32.mrb[0].mxu0
        %v3346 = vadd.f32 %v3122, %v3345
        %v3347 = vpop.f32.mrb[0].mxu0
        %3348 = vmatprep.mubr.bf16.mxu0 0
        %3349 = vmatmul.mubr.bf16.gmra.mrb[0].mxu0 %v3085
        %v3350 = vpop.f32.mrb[0].mxu0
        %v3351 = vadd.f32 %v3122, %v3350
        %v3352 = vpop.f32.mrb[0].mxu0
        %v3353 = vpop.f32.mrb[0].mxu0
        %v3354 = vadd.f32 %v3122, %v3353
        %v3355 = vpop.f32.mrb[0].mxu0
        %3356 = vmatprep.mubr.bf16.mxu0 0
        %3357 = vmatmul.mubr.bf16.gmra.mrb[0].mxu0 %v3086
        %v3358 = vpop.f32.mrb[0].mxu0
        %v3359 = vadd.f32 %v3122, %v3358
        %v3360 = vpop.f32.mrb[0].mxu0
        %v3361 = vpop.f32.mrb[0].mxu0
        %v3362 = vadd.f32 %v3122, %v3361
        %v3363 = vpop.f32.mrb[0].mxu0
        %3364 = vmatprep.mubr.bf16.mxu0 0
        %3365 = vmatmul.mubr.bf16.gmra.mrb[0].mxu0 %v3087
        %v3366 = vpop.f32.mrb[0].mxu0
        %v3367 = vadd.f32 %v3122, %v3366
        %v3368 = vpop.f32.mrb[0].mxu0
        %v3369 = vpop.f32.mrb[0].mxu0
        %v3370 = vadd.f32 %v3122, %v3369
        %v3371 = vpop.f32.mrb[0].mxu0
        %3372 = vmatprep.mubr.bf16.mxu0 0
        %3373 = vmatmul.mubr.bf16.gmra.mrb[0].mxu0 %v3088
        %v3374 = vpop.f32.mrb[0].mxu0
        %v3375 = vadd.f32 %v3122, %v3374
        %v3376 = vpop.f32.mrb[0].mxu0
        %v3377 = vpop.f32.mrb[0].mxu0
        %v3378 = vadd.f32 %v3122, %v3377
        %v3379 = vpop.f32.mrb[0].mxu0
        %3380 = vmatprep.mubr.bf16.mxu0 0
        %3381 = vmatmul.mubr.bf16.gmra.mrb[0].mxu0 %v3089
        %v3382 = vpop.f32.mrb[0].mxu0
        %v3383 = vadd.f32 %v3122, %v3382
        %v3384 = vpop.f32.mrb[0].mxu0
        %v3385 = vpop.f32.mrb[0].mxu0
        %v3386 = vadd.f32 %v3122, %v3385
        %v3387 = vpop.f32.mrb[0].mxu0
        %3388 = vmatprep.mubr.bf16.mxu0 0
        %3389 = vmatmul.mubr.bf16.gmra.mrb[0].mxu0 %v3090
        %v3390 = vpop.f32.mrb[0].mxu0
        %v3391 = vadd.f32 %v3122, %v3390
        %v3392 = vpop.f32.mrb[0].mxu0
        %v3393 = vpop.f32.mrb[0].mxu0
        %v3394 = vadd.f32 %v3122, %v3393
        %v3395 = vpop.f32.mrb[0].mxu0
        %3396 = vmatprep.mubr.bf16.mxu0 0
        %3397 = vmatmul.mubr.bf16.gmra.mrb[0].mxu0 %v3091
        %v3398 = vpop.f32.mrb[0].mxu0
        %v3399 = vadd.f32 %v3122, %v3398
        %v3400 = vpop.f32.mrb[0].mxu0
        %v3401 = vpop.f32.mrb[0].mxu0
        %v3402 = vadd.f32 %v3122, %v3401
        %v3403 = vpop.f32.mrb[0].mxu0
        %3404 = vmatprep.mubr.bf16.mxu0 0
        %3405 = vmatmul.mubr.bf16.gmra.mrb[0].mxu0 %v3092
        %v3406 = vpop.f32.mrb[0].mxu0
        %v3407 = vadd.f32 %v3122, %v3406
        %v3408 = vpop.f32.mrb[0].mxu0
        %v3409 = vpop.f32.mrb[0].mxu0
        %v3410 = vadd.f32 %v3122, %v3409
        %v3411 = vpop.f32.mrb[0].mxu0
        %3412 = vmatprep.mubr.bf16.mxu0 0
        %3413 = vmatmul.mubr.bf16.gmra.mrb[0].mxu0 %v3093
        %v3414 = vpop.f32.mrb[0].mxu0
        %v3415 = vadd.f32 %v3122, %v3414
        %v3416 = vpop.f32.mrb[0].mxu0
        %v3417 = vpop.f32.mrb[0].mxu0
        %v3418 = vadd.f32 %v3122, %v3417
        %v3419 = vpop.f32.mrb[0].mxu0
        %3420 = vmatprep.mubr.bf16.mxu0 0
        %3421 = vmatmul.mubr.bf16.gmra.mrb[0].mxu0 %v3094
        %v3422 = vpop.f32.mrb[0].mxu0
        %v3423 = vadd.f32 %v3122, %v3422
        %v3424 = vpop.f32.mrb[0].mxu0
        %v3425 = vpop.f32.mrb[0].mxu0
        %v3426 = vadd.f32 %v3122, %v3425
        %v3427 = vpop.f32.mrb[0].mxu0
        %3428 = vmatprep.mubr.bf16.mxu0 0
        %3429 = vmatmul.mubr.bf16.gmra.mrb[0].mxu0 %v3095
        %v3430 = vpop.f32.mrb[0].mxu0
        %v3431 = vadd.f32 %v3122, %v3430
        %v3432 = vpop.f32.mrb[0].mxu0
        %v3433 = vpop.f32.mrb[0].mxu0
        %v3434 = vadd.f32 %v3122, %v3433
        %v3435 = vpop.f32.mrb[0].mxu0
        %3436 = vmatprep.mubr.bf16.mxu0 0
        %3437 = vmatmul.mubr.bf16.gmra.mrb[0].mxu0 %v3096
        %v3438 = vpop.f32.mrb[0].mxu0
        %v3439 = vadd.f32 %v3122, %v3438
        %v3440 = vpop.f32.mrb[0].mxu0
        %v3441 = vpop.f32.mrb[0].mxu0
        %v3442 = vadd.f32 %v3122, %v3441
        %v3443 = vpop.f32.mrb[0].mxu0
        %3444 = vmatprep.mubr.bf16.mxu0 0
        %3445 = vmatmul.mubr.bf16.gmra.mrb[0].mxu0 %v3097
        %v3446 = vpop.f32.mrb[0].mxu0
        %v3447 = vadd.f32 %v3122, %v3446
        %v3448 = vpop.f32.mrb[0].mxu0
        %v3449 = vpop.f32.mrb[0].mxu0
        %v3450 = vadd.f32 %v3122, %v3449
        %v3451 = vpop.f32.mrb[0].mxu0
        %3452 = vmatprep.mubr.bf16.mxu0 0
        %3453 = vmatmul.mubr.bf16.gmra.mrb[0].mxu0 %v3098
        %v3454 = vpop.f32.mrb[0].mxu0
        %v3455 = vadd.f32 %v3122, %v3454
        %v3456 = vpop.f32.mrb[0].mxu0
        %v3457 = vpop.f32.mrb[0].mxu0
        %v3458 = vadd.f32 %v3122, %v3457
        %v3459 = vpop.f32.mrb[0].mxu0
        %3460 = vdwg.mxu0
        %v3461 = vmax.f32 %v3207, 0.0
        %v3462 = vmax.f32 %v3210, 0.0
        %v3463 = vmax.f32 %v3215, 0.0
        %v3464 = vmax.f32 %v3218, 0.0
        %v3465 = vmax.f32 %v3223, 0.0
        %v3466 = vmax.f32 %v3226, 0.0
        %v3467 = vmax.f32 %v3231, 0.0
        %v3468 = vmax.f32 %v3234, 0.0
        %v3469 = vmax.f32 %v3239, 0.0
        %v3470 = vmax.f32 %v3242, 0.0
        %v3471 = vmax.f32 %v3247, 0.0
        %v3472 = vmax.f32 %v3250, 0.0
        %v3473 = vmax.f32 %v3255, 0.0
        %v3474 = vmax.f32 %v3258, 0.0
        %v3475 = vmax.f32 %v3263, 0.0
        %v3476 = vmax.f32 %v3266, 0.0
        %v3477 = vmax.f32 %v3271, 0.0
        %v3478 = vmax.f32 %v3274, 0.0
        %v3479 = vmax.f32 %v3279, 0.0
        %v3480 = vmax.f32 %v3282, 0.0
        %v3481 = vmax.f32 %v3287, 0.0
        %v3482 = vmax.f32 %v3290, 0.0
        %v3483 = vmax.f32 %v3295, 0.0
        %v3484 = vmax.f32 %v3298, 0.0
        %v3485 = vmax.f32 %v3303, 0.0
        %v3486 = vmax.f32 %v3306, 0.0
        %v3487 = vmax.f32 %v3311, 0.0
        %v3488 = vmax.f32 %v3314, 0.0
        %v3489 = vmax.f32 %v3319, 0.0
        %v3490 = vmax.f32 %v3322, 0.0
        %v3491 = vmax.f32 %v3327, 0.0
        %v3492 = vmax.f32 %v3330, 0.0
        %v3493 = vmax.f32 %v3335, 0.0
        %v3494 = vmax.f32 %v3338, 0.0
        %v3495 = vmax.f32 %v3343, 0.0
        %v3496 = vmax.f32 %v3346, 0.0
        %v3497 = vmax.f32 %v3351, 0.0
        %v3498 = vmax.f32 %v3354, 0.0
        %v3499 = vmax.f32 %v3359, 0.0
        %v3500 = vmax.f32 %v3362, 0.0
        %v3501 = vmax.f32 %v3367, 0.0
        %v3502 = vmax.f32 %v3370, 0.0
        %v3503 = vmax.f32 %v3375, 0.0
        %v3504 = vmax.f32 %v3378, 0.0
        %v3505 = vmax.f32 %v3383, 0.0
        %v3506 = vmax.f32 %v3386, 0.0
        %v3507 = vmax.f32 %v3391, 0.0
        %v3508 = vmax.f32 %v3394, 0.0
        %v3509 = vmax.f32 %v3399, 0.0
        %v3510 = vmax.f32 %v3402, 0.0
        %v3511 = vmax.f32 %v3407, 0.0
        %v3512 = vmax.f32 %v3410, 0.0
        %v3513 = vmax.f32 %v3415, 0.0
        %v3514 = vmax.f32 %v3418, 0.0
        %v3515 = vmax.f32 %v3423, 0.0
        %v3516 = vmax.f32 %v3426, 0.0
        %v3517 = vmax.f32 %v3431, 0.0
        %v3518 = vmax.f32 %v3434, 0.0
        %v3519 = vmax.f32 %v3439, 0.0
        %v3520 = vmax.f32 %v3442, 0.0
        %v3521 = vmax.f32 %v3447, 0.0
        %v3522 = vmax.f32 %v3450, 0.0
        %v3523 = vmax.f32 %v3455, 0.0
        %v3524 = vmax.f32 %v3458, 0.0
        %v3525 = vpack.c.bf16 %v3462, %v3461
        %v3526 = vpack.c.bf16 %v3464, %v3463
        %v3527 = vpack.c.bf16 %v3466, %v3465
        %v3528 = vpack.c.bf16 %v3468, %v3467
        %v3529 = vpack.c.bf16 %v3470, %v3469
        %v3530 = vpack.c.bf16 %v3472, %v3471
        %v3531 = vpack.c.bf16 %v3474, %v3473
        %v3532 = vpack.c.bf16 %v3476, %v3475
        %v3533 = vpack.c.bf16 %v3478, %v3477
        %v3534 = vpack.c.bf16 %v3480, %v3479
        %v3535 = vpack.c.bf16 %v3482, %v3481
        %v3536 = vpack.c.bf16 %v3484, %v3483
        %v3537 = vpack.c.bf16 %v3486, %v3485
        %v3538 = vpack.c.bf16 %v3488, %v3487
        %v3539 = vpack.c.bf16 %v3490, %v3489
        %v3540 = vpack.c.bf16 %v3492, %v3491
        %v3541 = vpack.c.bf16 %v3494, %v3493
        %v3542 = vpack.c.bf16 %v3496, %v3495
        %v3543 = vpack.c.bf16 %v3498, %v3497
        %v3544 = vpack.c.bf16 %v3500, %v3499
        %v3545 = vpack.c.bf16 %v3502, %v3501
        %v3546 = vpack.c.bf16 %v3504, %v3503
        %v3547 = vpack.c.bf16 %v3506, %v3505
        %v3548 = vpack.c.bf16 %v3508, %v3507
        %v3549 = vpack.c.bf16 %v3510, %v3509
        %v3550 = vpack.c.bf16 %v3512, %v3511
        %v3551 = vpack.c.bf16 %v3514, %v3513
        %v3552 = vpack.c.bf16 %v3516, %v3515
        %v3553 = vpack.c.bf16 %v3518, %v3517
        %v3554 = vpack.c.bf16 %v3520, %v3519
        %v3555 = vpack.c.bf16 %v3522, %v3521
        %v3556 = vpack.c.bf16 %v3524, %v3523
        %v3557 = vld [vmem:[#allocation8] sm:$0xf]
        %v3558 = vld [vmem:[#allocation8 + $0x4] sm:$0xf]
        %v3559 = vld [vmem:[#allocation8 + $0x8] sm:$0xf]
        %v3560 = vld [vmem:[#allocation8 + $0xc] sm:$0xf]
        %v3561 = vld [vmem:[#allocation8 + $0x10] sm:$0xf]
        %v3562 = vld [vmem:[#allocation8 + $0x14] sm:$0xf]
        %v3563 = vld [vmem:[#allocation8 + $0x18] sm:$0xf]
        %v3564 = vld [vmem:[#allocation8 + $0x1c] sm:$0xf]
        %v3565 = vld [vmem:[#allocation8 + $0x20] sm:$0xf]
        %v3566 = vld [vmem:[#allocation8 + $0x24] sm:$0xf]
        %v3567 = vld [vmem:[#allocation8 + $0x28] sm:$0xf]
        %v3568 = vld [vmem:[#allocation8 + $0x2c] sm:$0xf]
        %v3569 = vld [vmem:[#allocation8 + $0x30] sm:$0xf]
        %v3570 = vld [vmem:[#allocation8 + $0x34] sm:$0xf]
        %v3571 = vld [vmem:[#allocation8 + $0x38] sm:$0xf]
        %v3572 = vld [vmem:[#allocation8 + $0x3c] sm:$0xf]
        %v3573 = vld [vmem:[%s5] sm:$0x1]
        %v3575 = vlaneseq
        %v3576 = vshrl.u32 %v3575, 7
        %v3577 = vsub.s32 0, %v3576
        %v3578 = vrot.slane %v3573, %v3577
        %v3596 = vunpack.c.l.b16 %v3557
        %v3597 = vunpack.c.l.b16 %v3558
        %v3598 = vunpack.c.l.b16 %v3559
        %v3599 = vunpack.c.l.b16 %v3560
        %v3600 = vunpack.c.l.b16 %v3561
        %v3601 = vunpack.c.l.b16 %v3562
        %v3602 = vunpack.c.l.b16 %v3563
        %v3603 = vunpack.c.l.b16 %v3564
        %v3604 = vunpack.c.l.b16 %v3565
        %v3605 = vunpack.c.l.b16 %v3566
        %v3606 = vunpack.c.l.b16 %v3567
        %v3607 = vunpack.c.l.b16 %v3568
        %v3608 = vunpack.c.l.b16 %v3569
        %v3609 = vunpack.c.l.b16 %v3570
        %v3610 = vunpack.c.l.b16 %v3571
        %v3611 = vunpack.c.l.b16 %v3572
        %v3612 = vpack.c.b16 %v3597, %v3596
        %v3613 = vpack.c.b16 %v3599, %v3598
        %v3614 = vpack.c.b16 %v3601, %v3600
        %v3615 = vpack.c.b16 %v3603, %v3602
        %v3616 = vpack.c.b16 %v3605, %v3604
        %v3617 = vpack.c.b16 %v3607, %v3606
        %v3618 = vpack.c.b16 %v3609, %v3608
        %v3619 = vpack.c.b16 %v3611, %v3610
        %3628 = vmatprep.subr.bf16.mxu0 0
        %3629 = vmatpush1.bf16.msra.mxu0 %v3612
        %3630 = vmatprep.subr.bf16.mxu0 0
        %3631 = vmatpush1.bf16.msra.mxu0 %v3613
        %3632 = vmatprep.subr.bf16.mxu0 0
        %3633 = vmatpush1.bf16.msra.mxu0 %v3614
        %3634 = vmatprep.subr.bf16.mxu0 0
        %3635 = vmatpush1.bf16.msra.mxu0 %v3615
        %3636 = vmatprep.subr.bf16.mxu0 0
        %3637 = vmatpush1.bf16.msra.mxu0 %v3616
        %3638 = vmatprep.subr.bf16.mxu0 0
        %3639 = vmatpush1.bf16.msra.mxu0 %v3617
        %3640 = vmatprep.subr.bf16.mxu0 0
        %3641 = vmatpush1.bf16.msra.mxu0 %v3618
        %3642 = vmatprep.subr.bf16.mxu0 0
        %3643 = vmatpush1.bf16.msra.mxu0 %v3619
        %3644 = vmatprep.subr.bf16.mxu0 0
        %3645 = vmatpush1.bf16.msra.mxu0 0
        %3646 = vmatprep.subr.bf16.mxu0 0
        %3647 = vmatpush1.bf16.msra.mxu0 0
        %3648 = vmatprep.subr.bf16.mxu0 0
        %3649 = vmatpush1.bf16.msra.mxu0 0
        %3650 = vmatprep.subr.bf16.mxu0 0
        %3651 = vmatpush1.bf16.msra.mxu0 0
        %3652 = vmatprep.subr.bf16.mxu0 0
        %3653 = vmatpush1.bf16.msra.mxu0 0
        %3654 = vmatprep.subr.bf16.mxu0 0
        %3655 = vmatpush1.bf16.msra.mxu0 0
        %3656 = vmatprep.subr.bf16.mxu0 0
        %3657 = vmatpush1.bf16.msra.mxu0 0
        %3658 = vmatprep.subr.bf16.mxu0 0
        %3659 = vmatpush1.bf16.msra.mxu0 0
        %3660 = vmatprep.mubr.bf16.mxu0 0
        %3661 = vmatmul.mubr.bf16.gmra.mrb[0].mxu0 %v3525
        %v3662 = vpop.f32.mrb[0].mxu0
        %v3663 = vadd.f32 %v3578, %v3662
        %v3664 = vpop.f32.mrb[0].mxu0
        %v3665 = vpop.f32.mrb[0].mxu0
        %v3666 = vadd.f32 %v3578, %v3665
        %v3667 = vpop.f32.mrb[0].mxu0
        %3668 = vmatprep.mubr.bf16.mxu0 0
        %3669 = vmatmul.mubr.bf16.gmra.mrb[0].mxu0 %v3526
        %v3670 = vpop.f32.mrb[0].mxu0
        %v3671 = vadd.f32 %v3578, %v3670
        %v3672 = vpop.f32.mrb[0].mxu0
        %v3673 = vpop.f32.mrb[0].mxu0
        %v3674 = vadd.f32 %v3578, %v3673
        %v3675 = vpop.f32.mrb[0].mxu0
        %3676 = vmatprep.mubr.bf16.mxu0 0
        %3677 = vmatmul.mubr.bf16.gmra.mrb[0].mxu0 %v3527
        %v3678 = vpop.f32.mrb[0].mxu0
        %v3679 = vadd.f32 %v3578, %v3678
        %v3680 = vpop.f32.mrb[0].mxu0
        %v3681 = vpop.f32.mrb[0].mxu0
        %v3682 = vadd.f32 %v3578, %v3681
        %v3683 = vpop.f32.mrb[0].mxu0
        %3684 = vmatprep.mubr.bf16.mxu0 0
        %3685 = vmatmul.mubr.bf16.gmra.mrb[0].mxu0 %v3528
        %v3686 = vpop.f32.mrb[0].mxu0
        %v3687 = vadd.f32 %v3578, %v3686
        %v3688 = vpop.f32.mrb[0].mxu0
        %v3689 = vpop.f32.mrb[0].mxu0
        %v3690 = vadd.f32 %v3578, %v3689
        %v3691 = vpop.f32.mrb[0].mxu0
        %3692 = vmatprep.mubr.bf16.mxu0 0
        %3693 = vmatmul.mubr.bf16.gmra.mrb[0].mxu0 %v3529
        %v3694 = vpop.f32.mrb[0].mxu0
        %v3695 = vadd.f32 %v3578, %v3694
        %v3696 = vpop.f32.mrb[0].mxu0
        %v3697 = vpop.f32.mrb[0].mxu0
        %v3698 = vadd.f32 %v3578, %v3697
        %v3699 = vpop.f32.mrb[0].mxu0
        %3700 = vmatprep.mubr.bf16.mxu0 0
        %3701 = vmatmul.mubr.bf16.gmra.mrb[0].mxu0 %v3530
        %v3702 = vpop.f32.mrb[0].mxu0
        %v3703 = vadd.f32 %v3578, %v3702
        %v3704 = vpop.f32.mrb[0].mxu0
        %v3705 = vpop.f32.mrb[0].mxu0
        %v3706 = vadd.f32 %v3578, %v3705
        %v3707 = vpop.f32.mrb[0].mxu0
        %3708 = vmatprep.mubr.bf16.mxu0 0
        %3709 = vmatmul.mubr.bf16.gmra.mrb[0].mxu0 %v3531
        %v3710 = vpop.f32.mrb[0].mxu0
        %v3711 = vadd.f32 %v3578, %v3710
        %v3712 = vpop.f32.mrb[0].mxu0
        %v3713 = vpop.f32.mrb[0].mxu0
        %v3714 = vadd.f32 %v3578, %v3713
        %v3715 = vpop.f32.mrb[0].mxu0
        %3716 = vmatprep.mubr.bf16.mxu0 0
        %3717 = vmatmul.mubr.bf16.gmra.mrb[0].mxu0 %v3532
        %v3718 = vpop.f32.mrb[0].mxu0
        %v3719 = vadd.f32 %v3578, %v3718
        %v3720 = vpop.f32.mrb[0].mxu0
        %v3721 = vpop.f32.mrb[0].mxu0
        %v3722 = vadd.f32 %v3578, %v3721
        %v3723 = vpop.f32.mrb[0].mxu0
        %3724 = vmatprep.mubr.bf16.mxu0 0
        %3725 = vmatmul.mubr.bf16.gmra.mrb[0].mxu0 %v3533
        %v3726 = vpop.f32.mrb[0].mxu0
        %v3727 = vadd.f32 %v3578, %v3726
        %v3728 = vpop.f32.mrb[0].mxu0
        %v3729 = vpop.f32.mrb[0].mxu0
        %v3730 = vadd.f32 %v3578, %v3729
        %v3731 = vpop.f32.mrb[0].mxu0
        %3732 = vmatprep.mubr.bf16.mxu0 0
        %3733 = vmatmul.mubr.bf16.gmra.mrb[0].mxu0 %v3534
        %v3734 = vpop.f32.mrb[0].mxu0
        %v3735 = vadd.f32 %v3578, %v3734
        %v3736 = vpop.f32.mrb[0].mxu0
        %v3737 = vpop.f32.mrb[0].mxu0
        %v3738 = vadd.f32 %v3578, %v3737
        %v3739 = vpop.f32.mrb[0].mxu0
        %3740 = vmatprep.mubr.bf16.mxu0 0
        %3741 = vmatmul.mubr.bf16.gmra.mrb[0].mxu0 %v3535
        %v3742 = vpop.f32.mrb[0].mxu0
        %v3743 = vadd.f32 %v3578, %v3742
        %v3744 = vpop.f32.mrb[0].mxu0
        %v3745 = vpop.f32.mrb[0].mxu0
        %v3746 = vadd.f32 %v3578, %v3745
        %v3747 = vpop.f32.mrb[0].mxu0
        %3748 = vmatprep.mubr.bf16.mxu0 0
        %3749 = vmatmul.mubr.bf16.gmra.mrb[0].mxu0 %v3536
        %v3750 = vpop.f32.mrb[0].mxu0
        %v3751 = vadd.f32 %v3578, %v3750
        %v3752 = vpop.f32.mrb[0].mxu0
        %v3753 = vpop.f32.mrb[0].mxu0
        %v3754 = vadd.f32 %v3578, %v3753
        %v3755 = vpop.f32.mrb[0].mxu0
        %3756 = vmatprep.mubr.bf16.mxu0 0
        %3757 = vmatmul.mubr.bf16.gmra.mrb[0].mxu0 %v3537
        %v3758 = vpop.f32.mrb[0].mxu0
        %v3759 = vadd.f32 %v3578, %v3758
        %v3760 = vpop.f32.mrb[0].mxu0
        %v3761 = vpop.f32.mrb[0].mxu0
        %v3762 = vadd.f32 %v3578, %v3761
        %v3763 = vpop.f32.mrb[0].mxu0
        %3764 = vmatprep.mubr.bf16.mxu0 0
        %3765 = vmatmul.mubr.bf16.gmra.mrb[0].mxu0 %v3538
        %v3766 = vpop.f32.mrb[0].mxu0
        %v3767 = vadd.f32 %v3578, %v3766
        %v3768 = vpop.f32.mrb[0].mxu0
        %v3769 = vpop.f32.mrb[0].mxu0
        %v3770 = vadd.f32 %v3578, %v3769
        %v3771 = vpop.f32.mrb[0].mxu0
        %3772 = vmatprep.mubr.bf16.mxu0 0
        %3773 = vmatmul.mubr.bf16.gmra.mrb[0].mxu0 %v3539
        %v3774 = vpop.f32.mrb[0].mxu0
        %v3775 = vadd.f32 %v3578, %v3774
        %v3776 = vpop.f32.mrb[0].mxu0
        %v3777 = vpop.f32.mrb[0].mxu0
        %v3778 = vadd.f32 %v3578, %v3777
        %v3779 = vpop.f32.mrb[0].mxu0
        %3780 = vmatprep.mubr.bf16.mxu0 0
        %3781 = vmatmul.mubr.bf16.gmra.mrb[0].mxu0 %v3540
        %v3782 = vpop.f32.mrb[0].mxu0
        %v3783 = vadd.f32 %v3578, %v3782
        %v3784 = vpop.f32.mrb[0].mxu0
        %v3785 = vpop.f32.mrb[0].mxu0
        %v3786 = vadd.f32 %v3578, %v3785
        %v3787 = vpop.f32.mrb[0].mxu0
        %3788 = vmatprep.mubr.bf16.mxu0 0
        %3789 = vmatmul.mubr.bf16.gmra.mrb[0].mxu0 %v3541
        %v3790 = vpop.f32.mrb[0].mxu0
        %v3791 = vadd.f32 %v3578, %v3790
        %v3792 = vpop.f32.mrb[0].mxu0
        %v3793 = vpop.f32.mrb[0].mxu0
        %v3794 = vadd.f32 %v3578, %v3793
        %v3795 = vpop.f32.mrb[0].mxu0
        %3796 = vmatprep.mubr.bf16.mxu0 0
        %3797 = vmatmul.mubr.bf16.gmra.mrb[0].mxu0 %v3542
        %v3798 = vpop.f32.mrb[0].mxu0
        %v3799 = vadd.f32 %v3578, %v3798
        %v3800 = vpop.f32.mrb[0].mxu0
        %v3801 = vpop.f32.mrb[0].mxu0
        %v3802 = vadd.f32 %v3578, %v3801
        %v3803 = vpop.f32.mrb[0].mxu0
        %3804 = vmatprep.mubr.bf16.mxu0 0
        %3805 = vmatmul.mubr.bf16.gmra.mrb[0].mxu0 %v3543
        %v3806 = vpop.f32.mrb[0].mxu0
        %v3807 = vadd.f32 %v3578, %v3806
        %v3808 = vpop.f32.mrb[0].mxu0
        %v3809 = vpop.f32.mrb[0].mxu0
        %v3810 = vadd.f32 %v3578, %v3809
        %v3811 = vpop.f32.mrb[0].mxu0
        %3812 = vmatprep.mubr.bf16.mxu0 0
        %3813 = vmatmul.mubr.bf16.gmra.mrb[0].mxu0 %v3544
        %v3814 = vpop.f32.mrb[0].mxu0
        %v3815 = vadd.f32 %v3578, %v3814
        %v3816 = vpop.f32.mrb[0].mxu0
        %v3817 = vpop.f32.mrb[0].mxu0
        %v3818 = vadd.f32 %v3578, %v3817
        %v3819 = vpop.f32.mrb[0].mxu0
        %3820 = vmatprep.mubr.bf16.mxu0 0
        %3821 = vmatmul.mubr.bf16.gmra.mrb[0].mxu0 %v3545
        %v3822 = vpop.f32.mrb[0].mxu0
        %v3823 = vadd.f32 %v3578, %v3822
        %v3824 = vpop.f32.mrb[0].mxu0
        %v3825 = vpop.f32.mrb[0].mxu0
        %v3826 = vadd.f32 %v3578, %v3825
        %v3827 = vpop.f32.mrb[0].mxu0
        %3828 = vmatprep.mubr.bf16.mxu0 0
        %3829 = vmatmul.mubr.bf16.gmra.mrb[0].mxu0 %v3546
        %v3830 = vpop.f32.mrb[0].mxu0
        %v3831 = vadd.f32 %v3578, %v3830
        %v3832 = vpop.f32.mrb[0].mxu0
        %v3833 = vpop.f32.mrb[0].mxu0
        %v3834 = vadd.f32 %v3578, %v3833
        %v3835 = vpop.f32.mrb[0].mxu0
        %3836 = vmatprep.mubr.bf16.mxu0 0
        %3837 = vmatmul.mubr.bf16.gmra.mrb[0].mxu0 %v3547
        %v3838 = vpop.f32.mrb[0].mxu0
        %v3839 = vadd.f32 %v3578, %v3838
        %v3840 = vpop.f32.mrb[0].mxu0
        %v3841 = vpop.f32.mrb[0].mxu0
        %v3842 = vadd.f32 %v3578, %v3841
        %v3843 = vpop.f32.mrb[0].mxu0
        %3844 = vmatprep.mubr.bf16.mxu0 0
        %3845 = vmatmul.mubr.bf16.gmra.mrb[0].mxu0 %v3548
        %v3846 = vpop.f32.mrb[0].mxu0
        %v3847 = vadd.f32 %v3578, %v3846
        %v3848 = vpop.f32.mrb[0].mxu0
        %v3849 = vpop.f32.mrb[0].mxu0
        %v3850 = vadd.f32 %v3578, %v3849
        %v3851 = vpop.f32.mrb[0].mxu0
        %3852 = vmatprep.mubr.bf16.mxu0 0
        %3853 = vmatmul.mubr.bf16.gmra.mrb[0].mxu0 %v3549
        %v3854 = vpop.f32.mrb[0].mxu0
        %v3855 = vadd.f32 %v3578, %v3854
        %v3856 = vpop.f32.mrb[0].mxu0
        %v3857 = vpop.f32.mrb[0].mxu0
        %v3858 = vadd.f32 %v3578, %v3857
        %v3859 = vpop.f32.mrb[0].mxu0
        %3860 = vmatprep.mubr.bf16.mxu0 0
        %3861 = vmatmul.mubr.bf16.gmra.mrb[0].mxu0 %v3550
        %v3862 = vpop.f32.mrb[0].mxu0
        %v3863 = vadd.f32 %v3578, %v3862
        %v3864 = vpop.f32.mrb[0].mxu0
        %v3865 = vpop.f32.mrb[0].mxu0
        %v3866 = vadd.f32 %v3578, %v3865
        %v3867 = vpop.f32.mrb[0].mxu0
        %3868 = vmatprep.mubr.bf16.mxu0 0
        %3869 = vmatmul.mubr.bf16.gmra.mrb[0].mxu0 %v3551
        %v3870 = vpop.f32.mrb[0].mxu0
        %v3871 = vadd.f32 %v3578, %v3870
        %v3872 = vpop.f32.mrb[0].mxu0
        %v3873 = vpop.f32.mrb[0].mxu0
        %v3874 = vadd.f32 %v3578, %v3873
        %v3875 = vpop.f32.mrb[0].mxu0
        %3876 = vmatprep.mubr.bf16.mxu0 0
        %3877 = vmatmul.mubr.bf16.gmra.mrb[0].mxu0 %v3552
        %v3878 = vpop.f32.mrb[0].mxu0
        %v3879 = vadd.f32 %v3578, %v3878
        %v3880 = vpop.f32.mrb[0].mxu0
        %v3881 = vpop.f32.mrb[0].mxu0
        %v3882 = vadd.f32 %v3578, %v3881
        %v3883 = vpop.f32.mrb[0].mxu0
        %3884 = vmatprep.mubr.bf16.mxu0 0
        %3885 = vmatmul.mubr.bf16.gmra.mrb[0].mxu0 %v3553
        %v3886 = vpop.f32.mrb[0].mxu0
        %v3887 = vadd.f32 %v3578, %v3886
        %v3888 = vpop.f32.mrb[0].mxu0
        %v3889 = vpop.f32.mrb[0].mxu0
        %v3890 = vadd.f32 %v3578, %v3889
        %v3891 = vpop.f32.mrb[0].mxu0
        %3892 = vmatprep.mubr.bf16.mxu0 0
        %3893 = vmatmul.mubr.bf16.gmra.mrb[0].mxu0 %v3554
        %v3894 = vpop.f32.mrb[0].mxu0
        %v3895 = vadd.f32 %v3578, %v3894
        %v3896 = vpop.f32.mrb[0].mxu0
        %v3897 = vpop.f32.mrb[0].mxu0
        %v3898 = vadd.f32 %v3578, %v3897
        %v3899 = vpop.f32.mrb[0].mxu0
        %3900 = vmatprep.mubr.bf16.mxu0 0
        %3901 = vmatmul.mubr.bf16.gmra.mrb[0].mxu0 %v3555
        %v3902 = vpop.f32.mrb[0].mxu0
        %v3903 = vadd.f32 %v3578, %v3902
        %v3904 = vpop.f32.mrb[0].mxu0
        %v3905 = vpop.f32.mrb[0].mxu0
        %v3906 = vadd.f32 %v3578, %v3905
        %v3907 = vpop.f32.mrb[0].mxu0
        %3908 = vmatprep.mubr.bf16.mxu0 0
        %3909 = vmatmul.mubr.bf16.gmra.mrb[0].mxu0 %v3556
        %v3910 = vpop.f32.mrb[0].mxu0
        %v3911 = vadd.f32 %v3578, %v3910
        %v3912 = vpop.f32.mrb[0].mxu0
        %v3913 = vpop.f32.mrb[0].mxu0
        %v3914 = vadd.f32 %v3578, %v3913
        %v3915 = vpop.f32.mrb[0].mxu0
        %3916 = vdwg.mxu0
        %v3917 = vmax.f32 %v3663, 0.0
        %v3918 = vmax.f32 %v3666, 0.0
        %v3919 = vmax.f32 %v3671, 0.0
        %v3920 = vmax.f32 %v3674, 0.0
        %v3921 = vmax.f32 %v3679, 0.0
        %v3922 = vmax.f32 %v3682, 0.0
        %v3923 = vmax.f32 %v3687, 0.0
        %v3924 = vmax.f32 %v3690, 0.0
        %v3925 = vmax.f32 %v3695, 0.0
        %v3926 = vmax.f32 %v3698, 0.0
        %v3927 = vmax.f32 %v3703, 0.0
        %v3928 = vmax.f32 %v3706, 0.0
        %v3929 = vmax.f32 %v3711, 0.0
        %v3930 = vmax.f32 %v3714, 0.0
        %v3931 = vmax.f32 %v3719, 0.0
        %v3932 = vmax.f32 %v3722, 0.0
        %v3933 = vmax.f32 %v3727, 0.0
        %v3934 = vmax.f32 %v3730, 0.0
        %v3935 = vmax.f32 %v3735, 0.0
        %v3936 = vmax.f32 %v3738, 0.0
        %v3937 = vmax.f32 %v3743, 0.0
        %v3938 = vmax.f32 %v3746, 0.0
        %v3939 = vmax.f32 %v3751, 0.0
        %v3940 = vmax.f32 %v3754, 0.0
        %v3941 = vmax.f32 %v3759, 0.0
        %v3942 = vmax.f32 %v3762, 0.0
        %v3943 = vmax.f32 %v3767, 0.0
        %v3944 = vmax.f32 %v3770, 0.0
        %v3945 = vmax.f32 %v3775, 0.0
        %v3946 = vmax.f32 %v3778, 0.0
        %v3947 = vmax.f32 %v3783, 0.0
        %v3948 = vmax.f32 %v3786, 0.0
        %v3949 = vmax.f32 %v3791, 0.0
        %v3950 = vmax.f32 %v3794, 0.0
        %v3951 = vmax.f32 %v3799, 0.0
        %v3952 = vmax.f32 %v3802, 0.0
        %v3953 = vmax.f32 %v3807, 0.0
        %v3954 = vmax.f32 %v3810, 0.0
        %v3955 = vmax.f32 %v3815, 0.0
        %v3956 = vmax.f32 %v3818, 0.0
        %v3957 = vmax.f32 %v3823, 0.0
        %v3958 = vmax.f32 %v3826, 0.0
        %v3959 = vmax.f32 %v3831, 0.0
        %v3960 = vmax.f32 %v3834, 0.0
        %v3961 = vmax.f32 %v3839, 0.0
        %v3962 = vmax.f32 %v3842, 0.0
        %v3963 = vmax.f32 %v3847, 0.0
        %v3964 = vmax.f32 %v3850, 0.0
        %v3965 = vmax.f32 %v3855, 0.0
        %v3966 = vmax.f32 %v3858, 0.0
        %v3967 = vmax.f32 %v3863, 0.0
        %v3968 = vmax.f32 %v3866, 0.0
        %v3969 = vmax.f32 %v3871, 0.0
        %v3970 = vmax.f32 %v3874, 0.0
        %v3971 = vmax.f32 %v3879, 0.0
        %v3972 = vmax.f32 %v3882, 0.0
        %v3973 = vmax.f32 %v3887, 0.0
        %v3974 = vmax.f32 %v3890, 0.0
        %v3975 = vmax.f32 %v3895, 0.0
        %v3976 = vmax.f32 %v3898, 0.0
        %v3977 = vmax.f32 %v3903, 0.0
        %v3978 = vmax.f32 %v3906, 0.0
        %v3979 = vmax.f32 %v3911, 0.0
        %v3980 = vmax.f32 %v3914, 0.0
        %v3981 = vpack.c.bf16 %v3918, %v3917
        %v3982 = vpack.c.bf16 %v3920, %v3919
        %v3983 = vpack.c.bf16 %v3922, %v3921
        %v3984 = vpack.c.bf16 %v3924, %v3923
        %v3985 = vpack.c.bf16 %v3926, %v3925
        %v3986 = vpack.c.bf16 %v3928, %v3927
        %v3987 = vpack.c.bf16 %v3930, %v3929
        %v3988 = vpack.c.bf16 %v3932, %v3931
        %v3989 = vpack.c.bf16 %v3934, %v3933
        %v3990 = vpack.c.bf16 %v3936, %v3935
        %v3991 = vpack.c.bf16 %v3938, %v3937
        %v3992 = vpack.c.bf16 %v3940, %v3939
        %v3993 = vpack.c.bf16 %v3942, %v3941
        %v3994 = vpack.c.bf16 %v3944, %v3943
        %v3995 = vpack.c.bf16 %v3946, %v3945
        %v3996 = vpack.c.bf16 %v3948, %v3947
        %v3997 = vpack.c.bf16 %v3950, %v3949
        %v3998 = vpack.c.bf16 %v3952, %v3951
        %v3999 = vpack.c.bf16 %v3954, %v3953
        %v4000 = vpack.c.bf16 %v3956, %v3955
        %v4001 = vpack.c.bf16 %v3958, %v3957
        %v4002 = vpack.c.bf16 %v3960, %v3959
        %v4003 = vpack.c.bf16 %v3962, %v3961
        %v4004 = vpack.c.bf16 %v3964, %v3963
        %v4005 = vpack.c.bf16 %v3966, %v3965
        %v4006 = vpack.c.bf16 %v3968, %v3967
        %v4007 = vpack.c.bf16 %v3970, %v3969
        %v4008 = vpack.c.bf16 %v3972, %v3971
        %v4009 = vpack.c.bf16 %v3974, %v3973
        %v4010 = vpack.c.bf16 %v3976, %v3975
        %v4011 = vpack.c.bf16 %v3978, %v3977
        %v4012 = vpack.c.bf16 %v3980, %v3979
        %v4013 = vld [vmem:[#allocation10] sm:$0xf]
        %v4014 = vld [vmem:[#allocation10 + $0x4] sm:$0xf]
        %v4015 = vld [vmem:[#allocation10 + $0x8] sm:$0xf]
        %v4016 = vld [vmem:[#allocation10 + $0xc] sm:$0xf]
        %v4017 = vld [vmem:[#allocation10 + $0x10] sm:$0xf]
        %v4018 = vld [vmem:[#allocation10 + $0x14] sm:$0xf]
        %v4019 = vld [vmem:[#allocation10 + $0x18] sm:$0xf]
        %v4020 = vld [vmem:[#allocation10 + $0x1c] sm:$0xf]
        %v4021 = vld [vmem:[#allocation10 + $0x20] sm:$0xf]
        %v4022 = vld [vmem:[#allocation10 + $0x24] sm:$0xf]
        %v4023 = vld [vmem:[#allocation10 + $0x28] sm:$0xf]
        %v4024 = vld [vmem:[#allocation10 + $0x2c] sm:$0xf]
        %v4025 = vld [vmem:[#allocation10 + $0x30] sm:$0xf]
        %v4026 = vld [vmem:[#allocation10 + $0x34] sm:$0xf]
        %v4027 = vld [vmem:[#allocation10 + $0x38] sm:$0xf]
        %v4028 = vld [vmem:[#allocation10 + $0x3c] sm:$0xf]
        %v4029 = vld [vmem:[%s7] sm:$0x1]
        %v4031 = vlaneseq
        %v4032 = vshrl.u32 %v4031, 7
        %v4033 = vsub.s32 0, %v4032
        %v4034 = vrot.slane %v4029, %v4033
        %v4052 = vunpack.c.l.b16 %v4013
        %v4053 = vunpack.c.l.b16 %v4014
        %v4054 = vunpack.c.l.b16 %v4015
        %v4055 = vunpack.c.l.b16 %v4016
        %v4056 = vunpack.c.l.b16 %v4017
        %v4057 = vunpack.c.l.b16 %v4018
        %v4058 = vunpack.c.l.b16 %v4019
        %v4059 = vunpack.c.l.b16 %v4020
        %v4060 = vunpack.c.l.b16 %v4021
        %v4061 = vunpack.c.l.b16 %v4022
        %v4062 = vunpack.c.l.b16 %v4023
        %v4063 = vunpack.c.l.b16 %v4024
        %v4064 = vunpack.c.l.b16 %v4025
        %v4065 = vunpack.c.l.b16 %v4026
        %v4066 = vunpack.c.l.b16 %v4027
        %v4067 = vunpack.c.l.b16 %v4028
        %v4068 = vpack.c.b16 %v4053, %v4052
        %v4069 = vpack.c.b16 %v4055, %v4054
        %v4070 = vpack.c.b16 %v4057, %v4056
        %v4071 = vpack.c.b16 %v4059, %v4058
        %v4072 = vpack.c.b16 %v4061, %v4060
        %v4073 = vpack.c.b16 %v4063, %v4062
        %v4074 = vpack.c.b16 %v4065, %v4064
        %v4075 = vpack.c.b16 %v4067, %v4066
        %4084 = vmatprep.subr.bf16.mxu0 0
        %4085 = vmatpush1.bf16.msra.mxu0 %v4068
        %4086 = vmatprep.subr.bf16.mxu0 0
        %4087 = vmatpush1.bf16.msra.mxu0 %v4069
        %4088 = vmatprep.subr.bf16.mxu0 0
        %4089 = vmatpush1.bf16.msra.mxu0 %v4070
        %4090 = vmatprep.subr.bf16.mxu0 0
        %4091 = vmatpush1.bf16.msra.mxu0 %v4071
        %4092 = vmatprep.subr.bf16.mxu0 0
        %4093 = vmatpush1.bf16.msra.mxu0 %v4072
        %4094 = vmatprep.subr.bf16.mxu0 0
        %4095 = vmatpush1.bf16.msra.mxu0 %v4073
        %4096 = vmatprep.subr.bf16.mxu0 0
        %4097 = vmatpush1.bf16.msra.mxu0 %v4074
        %4098 = vmatprep.subr.bf16.mxu0 0
        %4099 = vmatpush1.bf16.msra.mxu0 %v4075
        %4100 = vmatprep.subr.bf16.mxu0 0
        %4101 = vmatpush1.bf16.msra.mxu0 0
        %4102 = vmatprep.subr.bf16.mxu0 0
        %4103 = vmatpush1.bf16.msra.mxu0 0
        %4104 = vmatprep.subr.bf16.mxu0 0
        %4105 = vmatpush1.bf16.msra.mxu0 0
        %4106 = vmatprep.subr.bf16.mxu0 0
        %4107 = vmatpush1.bf16.msra.mxu0 0
        %4108 = vmatprep.subr.bf16.mxu0 0
        %4109 = vmatpush1.bf16.msra.mxu0 0
        %4110 = vmatprep.subr.bf16.mxu0 0
        %4111 = vmatpush1.bf16.msra.mxu0 0
        %4112 = vmatprep.subr.bf16.mxu0 0
        %4113 = vmatpush1.bf16.msra.mxu0 0
        %4114 = vmatprep.subr.bf16.mxu0 0
        %4115 = vmatpush1.bf16.msra.mxu0 0
        %4116 = vmatprep.mubr.bf16.mxu0 0
        %4117 = vmatmul.mubr.bf16.gmra.mrb[0].mxu0 %v3981
        %v4118 = vpop.f32.mrb[0].mxu0
        %v4119 = vadd.f32 %v4034, %v4118
        %v4120 = vpop.f32.mrb[0].mxu0
        %v4121 = vpop.f32.mrb[0].mxu0
        %v4122 = vadd.f32 %v4034, %v4121
        %v4123 = vpop.f32.mrb[0].mxu0
        %4124 = vmatprep.mubr.bf16.mxu0 0
        %4125 = vmatmul.mubr.bf16.gmra.mrb[0].mxu0 %v3982
        %v4126 = vpop.f32.mrb[0].mxu0
        %v4127 = vadd.f32 %v4034, %v4126
        %v4128 = vpop.f32.mrb[0].mxu0
        %v4129 = vpop.f32.mrb[0].mxu0
        %v4130 = vadd.f32 %v4034, %v4129
        %v4131 = vpop.f32.mrb[0].mxu0
        %4132 = vmatprep.mubr.bf16.mxu0 0
        %4133 = vmatmul.mubr.bf16.gmra.mrb[0].mxu0 %v3983
        %v4134 = vpop.f32.mrb[0].mxu0
        %v4135 = vadd.f32 %v4034, %v4134
        %v4136 = vpop.f32.mrb[0].mxu0
        %v4137 = vpop.f32.mrb[0].mxu0
        %v4138 = vadd.f32 %v4034, %v4137
        %v4139 = vpop.f32.mrb[0].mxu0
        %4140 = vmatprep.mubr.bf16.mxu0 0
        %4141 = vmatmul.mubr.bf16.gmra.mrb[0].mxu0 %v3984
        %v4142 = vpop.f32.mrb[0].mxu0
        %v4143 = vadd.f32 %v4034, %v4142
        %v4144 = vpop.f32.mrb[0].mxu0
        %v4145 = vpop.f32.mrb[0].mxu0
        %v4146 = vadd.f32 %v4034, %v4145
        %v4147 = vpop.f32.mrb[0].mxu0
        %4148 = vmatprep.mubr.bf16.mxu0 0
        %4149 = vmatmul.mubr.bf16.gmra.mrb[0].mxu0 %v3985
        %v4150 = vpop.f32.mrb[0].mxu0
        %v4151 = vadd.f32 %v4034, %v4150
        %v4152 = vpop.f32.mrb[0].mxu0
        %v4153 = vpop.f32.mrb[0].mxu0
        %v4154 = vadd.f32 %v4034, %v4153
        %v4155 = vpop.f32.mrb[0].mxu0
        %4156 = vmatprep.mubr.bf16.mxu0 0
        %4157 = vmatmul.mubr.bf16.gmra.mrb[0].mxu0 %v3986
        %v4158 = vpop.f32.mrb[0].mxu0
        %v4159 = vadd.f32 %v4034, %v4158
        %v4160 = vpop.f32.mrb[0].mxu0
        %v4161 = vpop.f32.mrb[0].mxu0
        %v4162 = vadd.f32 %v4034, %v4161
        %v4163 = vpop.f32.mrb[0].mxu0
        %4164 = vmatprep.mubr.bf16.mxu0 0
        %4165 = vmatmul.mubr.bf16.gmra.mrb[0].mxu0 %v3987
        %v4166 = vpop.f32.mrb[0].mxu0
        %v4167 = vadd.f32 %v4034, %v4166
        %v4168 = vpop.f32.mrb[0].mxu0
        %v4169 = vpop.f32.mrb[0].mxu0
        %v4170 = vadd.f32 %v4034, %v4169
        %v4171 = vpop.f32.mrb[0].mxu0
        %4172 = vmatprep.mubr.bf16.mxu0 0
        %4173 = vmatmul.mubr.bf16.gmra.mrb[0].mxu0 %v3988
        %v4174 = vpop.f32.mrb[0].mxu0
        %v4175 = vadd.f32 %v4034, %v4174
        %v4176 = vpop.f32.mrb[0].mxu0
        %v4177 = vpop.f32.mrb[0].mxu0
        %v4178 = vadd.f32 %v4034, %v4177
        %v4179 = vpop.f32.mrb[0].mxu0
        %4180 = vmatprep.mubr.bf16.mxu0 0
        %4181 = vmatmul.mubr.bf16.gmra.mrb[0].mxu0 %v3989
        %v4182 = vpop.f32.mrb[0].mxu0
        %v4183 = vadd.f32 %v4034, %v4182
        %v4184 = vpop.f32.mrb[0].mxu0
        %v4185 = vpop.f32.mrb[0].mxu0
        %v4186 = vadd.f32 %v4034, %v4185
        %v4187 = vpop.f32.mrb[0].mxu0
        %4188 = vmatprep.mubr.bf16.mxu0 0
        %4189 = vmatmul.mubr.bf16.gmra.mrb[0].mxu0 %v3990
        %v4190 = vpop.f32.mrb[0].mxu0
        %v4191 = vadd.f32 %v4034, %v4190
        %v4192 = vpop.f32.mrb[0].mxu0
        %v4193 = vpop.f32.mrb[0].mxu0
        %v4194 = vadd.f32 %v4034, %v4193
        %v4195 = vpop.f32.mrb[0].mxu0
        %4196 = vmatprep.mubr.bf16.mxu0 0
        %4197 = vmatmul.mubr.bf16.gmra.mrb[0].mxu0 %v3991
        %v4198 = vpop.f32.mrb[0].mxu0
        %v4199 = vadd.f32 %v4034, %v4198
        %v4200 = vpop.f32.mrb[0].mxu0
        %v4201 = vpop.f32.mrb[0].mxu0
        %v4202 = vadd.f32 %v4034, %v4201
        %v4203 = vpop.f32.mrb[0].mxu0
        %4204 = vmatprep.mubr.bf16.mxu0 0
        %4205 = vmatmul.mubr.bf16.gmra.mrb[0].mxu0 %v3992
        %v4206 = vpop.f32.mrb[0].mxu0
        %v4207 = vadd.f32 %v4034, %v4206
        %v4208 = vpop.f32.mrb[0].mxu0
        %v4209 = vpop.f32.mrb[0].mxu0
        %v4210 = vadd.f32 %v4034, %v4209
        %v4211 = vpop.f32.mrb[0].mxu0
        %4212 = vmatprep.mubr.bf16.mxu0 0
        %4213 = vmatmul.mubr.bf16.gmra.mrb[0].mxu0 %v3993
        %v4214 = vpop.f32.mrb[0].mxu0
        %v4215 = vadd.f32 %v4034, %v4214
        %v4216 = vpop.f32.mrb[0].mxu0
        %v4217 = vpop.f32.mrb[0].mxu0
        %v4218 = vadd.f32 %v4034, %v4217
        %v4219 = vpop.f32.mrb[0].mxu0
        %4220 = vmatprep.mubr.bf16.mxu0 0
        %4221 = vmatmul.mubr.bf16.gmra.mrb[0].mxu0 %v3994
        %v4222 = vpop.f32.mrb[0].mxu0
        %v4223 = vadd.f32 %v4034, %v4222
        %v4224 = vpop.f32.mrb[0].mxu0
        %v4225 = vpop.f32.mrb[0].mxu0
        %v4226 = vadd.f32 %v4034, %v4225
        %v4227 = vpop.f32.mrb[0].mxu0
        %4228 = vmatprep.mubr.bf16.mxu0 0
        %4229 = vmatmul.mubr.bf16.gmra.mrb[0].mxu0 %v3995
        %v4230 = vpop.f32.mrb[0].mxu0
        %v4231 = vadd.f32 %v4034, %v4230
        %v4232 = vpop.f32.mrb[0].mxu0
        %v4233 = vpop.f32.mrb[0].mxu0
        %v4234 = vadd.f32 %v4034, %v4233
        %v4235 = vpop.f32.mrb[0].mxu0
        %4236 = vmatprep.mubr.bf16.mxu0 0
        %4237 = vmatmul.mubr.bf16.gmra.mrb[0].mxu0 %v3996
        %v4238 = vpop.f32.mrb[0].mxu0
        %v4239 = vadd.f32 %v4034, %v4238
        %v4240 = vpop.f32.mrb[0].mxu0
        %v4241 = vpop.f32.mrb[0].mxu0
        %v4242 = vadd.f32 %v4034, %v4241
        %v4243 = vpop.f32.mrb[0].mxu0
        %4244 = vmatprep.mubr.bf16.mxu0 0
        %4245 = vmatmul.mubr.bf16.gmra.mrb[0].mxu0 %v3997
        %v4246 = vpop.f32.mrb[0].mxu0
        %v4247 = vadd.f32 %v4034, %v4246
        %v4248 = vpop.f32.mrb[0].mxu0
        %v4249 = vpop.f32.mrb[0].mxu0
        %v4250 = vadd.f32 %v4034, %v4249
        %v4251 = vpop.f32.mrb[0].mxu0
        %4252 = vmatprep.mubr.bf16.mxu0 0
        %4253 = vmatmul.mubr.bf16.gmra.mrb[0].mxu0 %v3998
        %v4254 = vpop.f32.mrb[0].mxu0
        %v4255 = vadd.f32 %v4034, %v4254
        %v4256 = vpop.f32.mrb[0].mxu0
        %v4257 = vpop.f32.mrb[0].mxu0
        %v4258 = vadd.f32 %v4034, %v4257
        %v4259 = vpop.f32.mrb[0].mxu0
        %4260 = vmatprep.mubr.bf16.mxu0 0
        %4261 = vmatmul.mubr.bf16.gmra.mrb[0].mxu0 %v3999
        %v4262 = vpop.f32.mrb[0].mxu0
        %v4263 = vadd.f32 %v4034, %v4262
        %v4264 = vpop.f32.mrb[0].mxu0
        %v4265 = vpop.f32.mrb[0].mxu0
        %v4266 = vadd.f32 %v4034, %v4265
        %v4267 = vpop.f32.mrb[0].mxu0
        %4268 = vmatprep.mubr.bf16.mxu0 0
        %4269 = vmatmul.mubr.bf16.gmra.mrb[0].mxu0 %v4000
        %v4270 = vpop.f32.mrb[0].mxu0
        %v4271 = vadd.f32 %v4034, %v4270
        %v4272 = vpop.f32.mrb[0].mxu0
        %v4273 = vpop.f32.mrb[0].mxu0
        %v4274 = vadd.f32 %v4034, %v4273
        %v4275 = vpop.f32.mrb[0].mxu0
        %4276 = vmatprep.mubr.bf16.mxu0 0
        %4277 = vmatmul.mubr.bf16.gmra.mrb[0].mxu0 %v4001
        %v4278 = vpop.f32.mrb[0].mxu0
        %v4279 = vadd.f32 %v4034, %v4278
        %v4280 = vpop.f32.mrb[0].mxu0
        %v4281 = vpop.f32.mrb[0].mxu0
        %v4282 = vadd.f32 %v4034, %v4281
        %v4283 = vpop.f32.mrb[0].mxu0
        %4284 = vmatprep.mubr.bf16.mxu0 0
        %4285 = vmatmul.mubr.bf16.gmra.mrb[0].mxu0 %v4002
        %v4286 = vpop.f32.mrb[0].mxu0
        %v4287 = vadd.f32 %v4034, %v4286
        %v4288 = vpop.f32.mrb[0].mxu0
        %v4289 = vpop.f32.mrb[0].mxu0
        %v4290 = vadd.f32 %v4034, %v4289
        %v4291 = vpop.f32.mrb[0].mxu0
        %4292 = vmatprep.mubr.bf16.mxu0 0
        %4293 = vmatmul.mubr.bf16.gmra.mrb[0].mxu0 %v4003
        %v4294 = vpop.f32.mrb[0].mxu0
        %v4295 = vadd.f32 %v4034, %v4294
        %v4296 = vpop.f32.mrb[0].mxu0
        %v4297 = vpop.f32.mrb[0].mxu0
        %v4298 = vadd.f32 %v4034, %v4297
        %v4299 = vpop.f32.mrb[0].mxu0
        %4300 = vmatprep.mubr.bf16.mxu0 0
        %4301 = vmatmul.mubr.bf16.gmra.mrb[0].mxu0 %v4004
        %v4302 = vpop.f32.mrb[0].mxu0
        %v4303 = vadd.f32 %v4034, %v4302
        %v4304 = vpop.f32.mrb[0].mxu0
        %v4305 = vpop.f32.mrb[0].mxu0
        %v4306 = vadd.f32 %v4034, %v4305
        %v4307 = vpop.f32.mrb[0].mxu0
        %4308 = vmatprep.mubr.bf16.mxu0 0
        %4309 = vmatmul.mubr.bf16.gmra.mrb[0].mxu0 %v4005
        %v4310 = vpop.f32.mrb[0].mxu0
        %v4311 = vadd.f32 %v4034, %v4310
        %v4312 = vpop.f32.mrb[0].mxu0
        %v4313 = vpop.f32.mrb[0].mxu0
        %v4314 = vadd.f32 %v4034, %v4313
        %v4315 = vpop.f32.mrb[0].mxu0
        %4316 = vmatprep.mubr.bf16.mxu0 0
        %4317 = vmatmul.mubr.bf16.gmra.mrb[0].mxu0 %v4006
        %v4318 = vpop.f32.mrb[0].mxu0
        %v4319 = vadd.f32 %v4034, %v4318
        %v4320 = vpop.f32.mrb[0].mxu0
        %v4321 = vpop.f32.mrb[0].mxu0
        %v4322 = vadd.f32 %v4034, %v4321
        %v4323 = vpop.f32.mrb[0].mxu0
        %4324 = vmatprep.mubr.bf16.mxu0 0
        %4325 = vmatmul.mubr.bf16.gmra.mrb[0].mxu0 %v4007
        %v4326 = vpop.f32.mrb[0].mxu0
        %v4327 = vadd.f32 %v4034, %v4326
        %v4328 = vpop.f32.mrb[0].mxu0
        %v4329 = vpop.f32.mrb[0].mxu0
        %v4330 = vadd.f32 %v4034, %v4329
        %v4331 = vpop.f32.mrb[0].mxu0
        %4332 = vmatprep.mubr.bf16.mxu0 0
        %4333 = vmatmul.mubr.bf16.gmra.mrb[0].mxu0 %v4008
        %v4334 = vpop.f32.mrb[0].mxu0
        %v4335 = vadd.f32 %v4034, %v4334
        %v4336 = vpop.f32.mrb[0].mxu0
        %v4337 = vpop.f32.mrb[0].mxu0
        %v4338 = vadd.f32 %v4034, %v4337
        %v4339 = vpop.f32.mrb[0].mxu0
        %4340 = vmatprep.mubr.bf16.mxu0 0
        %4341 = vmatmul.mubr.bf16.gmra.mrb[0].mxu0 %v4009
        %v4342 = vpop.f32.mrb[0].mxu0
        %v4343 = vadd.f32 %v4034, %v4342
        %v4344 = vpop.f32.mrb[0].mxu0
        %v4345 = vpop.f32.mrb[0].mxu0
        %v4346 = vadd.f32 %v4034, %v4345
        %v4347 = vpop.f32.mrb[0].mxu0
        %4348 = vmatprep.mubr.bf16.mxu0 0
        %4349 = vmatmul.mubr.bf16.gmra.mrb[0].mxu0 %v4010
        %v4350 = vpop.f32.mrb[0].mxu0
        %v4351 = vadd.f32 %v4034, %v4350
        %v4352 = vpop.f32.mrb[0].mxu0
        %v4353 = vpop.f32.mrb[0].mxu0
        %v4354 = vadd.f32 %v4034, %v4353
        %v4355 = vpop.f32.mrb[0].mxu0
        %4356 = vmatprep.mubr.bf16.mxu0 0
        %4357 = vmatmul.mubr.bf16.gmra.mrb[0].mxu0 %v4011
        %v4358 = vpop.f32.mrb[0].mxu0
        %v4359 = vadd.f32 %v4034, %v4358
        %v4360 = vpop.f32.mrb[0].mxu0
        %v4361 = vpop.f32.mrb[0].mxu0
        %v4362 = vadd.f32 %v4034, %v4361
        %v4363 = vpop.f32.mrb[0].mxu0
        %4364 = vmatprep.mubr.bf16.mxu0 0
        %4365 = vmatmul.mubr.bf16.gmra.mrb[0].mxu0 %v4012
        %v4366 = vpop.f32.mrb[0].mxu0
        %v4367 = vadd.f32 %v4034, %v4366
        %v4368 = vpop.f32.mrb[0].mxu0
        %v4369 = vpop.f32.mrb[0].mxu0
        %v4370 = vadd.f32 %v4034, %v4369
        %v4371 = vpop.f32.mrb[0].mxu0
        %4372 = vdwg.mxu0
        %v4373 = vlaneseq
        %v4374 = vand.u32 %v4373, 127
        %vm4375 = vcmp.lt.s32.totalorder %v4374, 8
        %v4376 = vsel %vm4375, %v4119, -1e+30
        %v4377 = vsel %vm4375, %v4122, -1e+30
        %v4378 = vsel %vm4375, %v4127, -1e+30
        %v4379 = vsel %vm4375, %v4130, -1e+30
        %v4380 = vsel %vm4375, %v4135, -1e+30
        %v4381 = vsel %vm4375, %v4138, -1e+30
        %v4382 = vsel %vm4375, %v4143, -1e+30
        %v4383 = vsel %vm4375, %v4146, -1e+30
        %v4384 = vsel %vm4375, %v4151, -1e+30
        %v4385 = vsel %vm4375, %v4154, -1e+30
        %v4386 = vsel %vm4375, %v4159, -1e+30
        %v4387 = vsel %vm4375, %v4162, -1e+30
        %v4388 = vsel %vm4375, %v4167, -1e+30
        %v4389 = vsel %vm4375, %v4170, -1e+30
        %v4390 = vsel %vm4375, %v4175, -1e+30
        %v4391 = vsel %vm4375, %v4178, -1e+30
        %v4392 = vsel %vm4375, %v4183, -1e+30
        %v4393 = vsel %vm4375, %v4186, -1e+30
        %v4394 = vsel %vm4375, %v4191, -1e+30
        %v4395 = vsel %vm4375, %v4194, -1e+30
        %v4396 = vsel %vm4375, %v4199, -1e+30
        %v4397 = vsel %vm4375, %v4202, -1e+30
        %v4398 = vsel %vm4375, %v4207, -1e+30
        %v4399 = vsel %vm4375, %v4210, -1e+30
        %v4400 = vsel %vm4375, %v4215, -1e+30
        %v4401 = vsel %vm4375, %v4218, -1e+30
        %v4402 = vsel %vm4375, %v4223, -1e+30
        %v4403 = vsel %vm4375, %v4226, -1e+30
        %v4404 = vsel %vm4375, %v4231, -1e+30
        %v4405 = vsel %vm4375, %v4234, -1e+30
        %v4406 = vsel %vm4375, %v4239, -1e+30
        %v4407 = vsel %vm4375, %v4242, -1e+30
        %v4408 = vsel %vm4375, %v4247, -1e+30
        %v4409 = vsel %vm4375, %v4250, -1e+30
        %v4410 = vsel %vm4375, %v4255, -1e+30
        %v4411 = vsel %vm4375, %v4258, -1e+30
        %v4412 = vsel %vm4375, %v4263, -1e+30
        %v4413 = vsel %vm4375, %v4266, -1e+30
        %v4414 = vsel %vm4375, %v4271, -1e+30
        %v4415 = vsel %vm4375, %v4274, -1e+30
        %v4416 = vsel %vm4375, %v4279, -1e+30
        %v4417 = vsel %vm4375, %v4282, -1e+30
        %v4418 = vsel %vm4375, %v4287, -1e+30
        %v4419 = vsel %vm4375, %v4290, -1e+30
        %v4420 = vsel %vm4375, %v4295, -1e+30
        %v4421 = vsel %vm4375, %v4298, -1e+30
        %v4422 = vsel %vm4375, %v4303, -1e+30
        %v4423 = vsel %vm4375, %v4306, -1e+30
        %v4424 = vsel %vm4375, %v4311, -1e+30
        %v4425 = vsel %vm4375, %v4314, -1e+30
        %v4426 = vsel %vm4375, %v4319, -1e+30
        %v4427 = vsel %vm4375, %v4322, -1e+30
        %v4428 = vsel %vm4375, %v4327, -1e+30
        %v4429 = vsel %vm4375, %v4330, -1e+30
        %v4430 = vsel %vm4375, %v4335, -1e+30
        %v4431 = vsel %vm4375, %v4338, -1e+30
        %v4432 = vsel %vm4375, %v4343, -1e+30
        %v4433 = vsel %vm4375, %v4346, -1e+30
        %v4434 = vsel %vm4375, %v4351, -1e+30
        %v4435 = vsel %vm4375, %v4354, -1e+30
        %v4436 = vsel %vm4375, %v4359, -1e+30
        %v4437 = vsel %vm4375, %v4362, -1e+30
        %v4438 = vsel %vm4375, %v4367, -1e+30
        %v4439 = vsel %vm4375, %v4370, -1e+30
        %4440 = vmax.xlane.f32.xlu0 %v4376
        %v4441 = vpop.xlane.xlu0 %4440
        %4442 = vmax.xlane.f32.xlu0 %v4377
        %v4443 = vpop.xlane.xlu0 %4442
        %4444 = vmax.xlane.f32.xlu0 %v4378
        %v4445 = vpop.xlane.xlu0 %4444
        %4446 = vmax.xlane.f32.xlu0 %v4379
        %v4447 = vpop.xlane.xlu0 %4446
        %4448 = vmax.xlane.f32.xlu0 %v4380
        %v4449 = vpop.xlane.xlu0 %4448
        %4450 = vmax.xlane.f32.xlu0 %v4381
        %v4451 = vpop.xlane.xlu0 %4450
        %4452 = vmax.xlane.f32.xlu0 %v4382
        %v4453 = vpop.xlane.xlu0 %4452
        %4454 = vmax.xlane.f32.xlu0 %v4383
        %v4455 = vpop.xlane.xlu0 %4454
        %4456 = vmax.xlane.f32.xlu0 %v4384
        %v4457 = vpop.xlane.xlu0 %4456
        %4458 = vmax.xlane.f32.xlu0 %v4385
        %v4459 = vpop.xlane.xlu0 %4458
        %4460 = vmax.xlane.f32.xlu0 %v4386
        %v4461 = vpop.xlane.xlu0 %4460
        %4462 = vmax.xlane.f32.xlu0 %v4387
        %v4463 = vpop.xlane.xlu0 %4462
        %4464 = vmax.xlane.f32.xlu0 %v4388
        %v4465 = vpop.xlane.xlu0 %4464
        %4466 = vmax.xlane.f32.xlu0 %v4389
        %v4467 = vpop.xlane.xlu0 %4466
        %4468 = vmax.xlane.f32.xlu0 %v4390
        %v4469 = vpop.xlane.xlu0 %4468
        %4470 = vmax.xlane.f32.xlu0 %v4391
        %v4471 = vpop.xlane.xlu0 %4470
        %4472 = vmax.xlane.f32.xlu0 %v4392
        %v4473 = vpop.xlane.xlu0 %4472
        %4474 = vmax.xlane.f32.xlu0 %v4393
        %v4475 = vpop.xlane.xlu0 %4474
        %4476 = vmax.xlane.f32.xlu0 %v4394
        %v4477 = vpop.xlane.xlu0 %4476
        %4478 = vmax.xlane.f32.xlu0 %v4395
        %v4479 = vpop.xlane.xlu0 %4478
        %4480 = vmax.xlane.f32.xlu0 %v4396
        %v4481 = vpop.xlane.xlu0 %4480
        %4482 = vmax.xlane.f32.xlu0 %v4397
        %v4483 = vpop.xlane.xlu0 %4482
        %4484 = vmax.xlane.f32.xlu0 %v4398
        %v4485 = vpop.xlane.xlu0 %4484
        %4486 = vmax.xlane.f32.xlu0 %v4399
        %v4487 = vpop.xlane.xlu0 %4486
        %4488 = vmax.xlane.f32.xlu0 %v4400
        %v4489 = vpop.xlane.xlu0 %4488
        %4490 = vmax.xlane.f32.xlu0 %v4401
        %v4491 = vpop.xlane.xlu0 %4490
        %4492 = vmax.xlane.f32.xlu0 %v4402
        %v4493 = vpop.xlane.xlu0 %4492
        %4494 = vmax.xlane.f32.xlu0 %v4403
        %v4495 = vpop.xlane.xlu0 %4494
        %4496 = vmax.xlane.f32.xlu0 %v4404
        %v4497 = vpop.xlane.xlu0 %4496
        %4498 = vmax.xlane.f32.xlu0 %v4405
        %v4499 = vpop.xlane.xlu0 %4498
        %4500 = vmax.xlane.f32.xlu0 %v4406
        %v4501 = vpop.xlane.xlu0 %4500
        %4502 = vmax.xlane.f32.xlu0 %v4407
        %v4503 = vpop.xlane.xlu0 %4502
        %4504 = vmax.xlane.f32.xlu0 %v4408
        %v4505 = vpop.xlane.xlu0 %4504
        %4506 = vmax.xlane.f32.xlu0 %v4409
        %v4507 = vpop.xlane.xlu0 %4506
        %4508 = vmax.xlane.f32.xlu0 %v4410
        %v4509 = vpop.xlane.xlu0 %4508
        %4510 = vmax.xlane.f32.xlu0 %v4411
        %v4511 = vpop.xlane.xlu0 %4510
        %4512 = vmax.xlane.f32.xlu0 %v4412
        %v4513 = vpop.xlane.xlu0 %4512
        %4514 = vmax.xlane.f32.xlu0 %v4413
        %v4515 = vpop.xlane.xlu0 %4514
        %4516 = vmax.xlane.f32.xlu0 %v4414
        %v4517 = vpop.xlane.xlu0 %4516
        %4518 = vmax.xlane.f32.xlu0 %v4415
        %v4519 = vpop.xlane.xlu0 %4518
        %4520 = vmax.xlane.f32.xlu0 %v4416
        %v4521 = vpop.xlane.xlu0 %4520
        %4522 = vmax.xlane.f32.xlu0 %v4417
        %v4523 = vpop.xlane.xlu0 %4522
        %4524 = vmax.xlane.f32.xlu0 %v4418
        %v4525 = vpop.xlane.xlu0 %4524
        %4526 = vmax.xlane.f32.xlu0 %v4419
        %v4527 = vpop.xlane.xlu0 %4526
        %4528 = vmax.xlane.f32.xlu0 %v4420
        %v4529 = vpop.xlane.xlu0 %4528
        %4530 = vmax.xlane.f32.xlu0 %v4421
        %v4531 = vpop.xlane.xlu0 %4530
        %4532 = vmax.xlane.f32.xlu0 %v4422
        %v4533 = vpop.xlane.xlu0 %4532
        %4534 = vmax.xlane.f32.xlu0 %v4423
        %v4535 = vpop.xlane.xlu0 %4534
        %4536 = vmax.xlane.f32.xlu0 %v4424
        %v4537 = vpop.xlane.xlu0 %4536
        %4538 = vmax.xlane.f32.xlu0 %v4425
        %v4539 = vpop.xlane.xlu0 %4538
        %4540 = vmax.xlane.f32.xlu0 %v4426
        %v4541 = vpop.xlane.xlu0 %4540
        %4542 = vmax.xlane.f32.xlu0 %v4427
        %v4543 = vpop.xlane.xlu0 %4542
        %4544 = vmax.xlane.f32.xlu0 %v4428
        %v4545 = vpop.xlane.xlu0 %4544
        %4546 = vmax.xlane.f32.xlu0 %v4429
        %v4547 = vpop.xlane.xlu0 %4546
        %4548 = vmax.xlane.f32.xlu0 %v4430
        %v4549 = vpop.xlane.xlu0 %4548
        %4550 = vmax.xlane.f32.xlu0 %v4431
        %v4551 = vpop.xlane.xlu0 %4550
        %4552 = vmax.xlane.f32.xlu0 %v4432
        %v4553 = vpop.xlane.xlu0 %4552
        %4554 = vmax.xlane.f32.xlu0 %v4433
        %v4555 = vpop.xlane.xlu0 %4554
        %4556 = vmax.xlane.f32.xlu0 %v4434
        %v4557 = vpop.xlane.xlu0 %4556
        %4558 = vmax.xlane.f32.xlu0 %v4435
        %v4559 = vpop.xlane.xlu0 %4558
        %4560 = vmax.xlane.f32.xlu0 %v4436
        %v4561 = vpop.xlane.xlu0 %4560
        %4562 = vmax.xlane.f32.xlu0 %v4437
        %v4563 = vpop.xlane.xlu0 %4562
        %4564 = vmax.xlane.f32.xlu0 %v4438
        %v4565 = vpop.xlane.xlu0 %4564
        %4566 = vmax.xlane.f32.xlu0 %v4439
        %v4567 = vpop.xlane.xlu0 %4566
        %v4568 = vsub.f32 %v4376, %v4441
        %v4569 = vsub.f32 %v4377, %v4443
        %v4570 = vsub.f32 %v4378, %v4445
        %v4571 = vsub.f32 %v4379, %v4447
        %v4572 = vsub.f32 %v4380, %v4449
        %v4573 = vsub.f32 %v4381, %v4451
        %v4574 = vsub.f32 %v4382, %v4453
        %v4575 = vsub.f32 %v4383, %v4455
        %v4576 = vsub.f32 %v4384, %v4457
        %v4577 = vsub.f32 %v4385, %v4459
        %v4578 = vsub.f32 %v4386, %v4461
        %v4579 = vsub.f32 %v4387, %v4463
        %v4580 = vsub.f32 %v4388, %v4465
        %v4581 = vsub.f32 %v4389, %v4467
        %v4582 = vsub.f32 %v4390, %v4469
        %v4583 = vsub.f32 %v4391, %v4471
        %v4584 = vsub.f32 %v4392, %v4473
        %v4585 = vsub.f32 %v4393, %v4475
        %v4586 = vsub.f32 %v4394, %v4477
        %v4587 = vsub.f32 %v4395, %v4479
        %v4588 = vsub.f32 %v4396, %v4481
        %v4589 = vsub.f32 %v4397, %v4483
        %v4590 = vsub.f32 %v4398, %v4485
        %v4591 = vsub.f32 %v4399, %v4487
        %v4592 = vsub.f32 %v4400, %v4489
        %v4593 = vsub.f32 %v4401, %v4491
        %v4594 = vsub.f32 %v4402, %v4493
        %v4595 = vsub.f32 %v4403, %v4495
        %v4596 = vsub.f32 %v4404, %v4497
        %v4597 = vsub.f32 %v4405, %v4499
        %v4598 = vsub.f32 %v4406, %v4501
        %v4599 = vsub.f32 %v4407, %v4503
        %v4600 = vsub.f32 %v4408, %v4505
        %v4601 = vsub.f32 %v4409, %v4507
        %v4602 = vsub.f32 %v4410, %v4509
        %v4603 = vsub.f32 %v4411, %v4511
        %v4604 = vsub.f32 %v4412, %v4513
        %v4605 = vsub.f32 %v4413, %v4515
        %v4606 = vsub.f32 %v4414, %v4517
        %v4607 = vsub.f32 %v4415, %v4519
        %v4608 = vsub.f32 %v4416, %v4521
        %v4609 = vsub.f32 %v4417, %v4523
        %v4610 = vsub.f32 %v4418, %v4525
        %v4611 = vsub.f32 %v4419, %v4527
        %v4612 = vsub.f32 %v4420, %v4529
        %v4613 = vsub.f32 %v4421, %v4531
        %v4614 = vsub.f32 %v4422, %v4533
        %v4615 = vsub.f32 %v4423, %v4535
        %v4616 = vsub.f32 %v4424, %v4537
        %v4617 = vsub.f32 %v4425, %v4539
        %v4618 = vsub.f32 %v4426, %v4541
        %v4619 = vsub.f32 %v4427, %v4543
        %v4620 = vsub.f32 %v4428, %v4545
        %v4621 = vsub.f32 %v4429, %v4547
        %v4622 = vsub.f32 %v4430, %v4549
        %v4623 = vsub.f32 %v4431, %v4551
        %v4624 = vsub.f32 %v4432, %v4553
        %v4625 = vsub.f32 %v4433, %v4555
        %v4626 = vsub.f32 %v4434, %v4557
        %v4627 = vsub.f32 %v4435, %v4559
        %v4628 = vsub.f32 %v4436, %v4561
        %v4629 = vsub.f32 %v4437, %v4563
        %v4630 = vsub.f32 %v4438, %v4565
        %v4631 = vsub.f32 %v4439, %v4567
        %v4632 = vmul.f32 %v4568, 1.442695
        %v4633 = vpow.pop %v4632
        %v4634 = vmul.f32 %v4569, 1.442695
        %v4635 = vpow.pop %v4634
        %v4636 = vmul.f32 %v4570, 1.442695
        %v4637 = vpow.pop %v4636
        %v4638 = vmul.f32 %v4571, 1.442695
        %v4639 = vpow.pop %v4638
        %v4640 = vmul.f32 %v4572, 1.442695
        %v4641 = vpow.pop %v4640
        %v4642 = vmul.f32 %v4573, 1.442695
        %v4643 = vpow.pop %v4642
        %v4644 = vmul.f32 %v4574, 1.442695
        %v4645 = vpow.pop %v4644
        %v4646 = vmul.f32 %v4575, 1.442695
        %v4647 = vpow.pop %v4646
        %v4648 = vmul.f32 %v4576, 1.442695
        %v4649 = vpow.pop %v4648
        %v4650 = vmul.f32 %v4577, 1.442695
        %v4651 = vpow.pop %v4650
        %v4652 = vmul.f32 %v4578, 1.442695
        %v4653 = vpow.pop %v4652
        %v4654 = vmul.f32 %v4579, 1.442695
        %v4655 = vpow.pop %v4654
        %v4656 = vmul.f32 %v4580, 1.442695
        %v4657 = vpow.pop %v4656
        %v4658 = vmul.f32 %v4581, 1.442695
        %v4659 = vpow.pop %v4658
        %v4660 = vmul.f32 %v4582, 1.442695
        %v4661 = vpow.pop %v4660
        %v4662 = vmul.f32 %v4583, 1.442695
        %v4663 = vpow.pop %v4662
        %v4664 = vmul.f32 %v4584, 1.442695
        %v4665 = vpow.pop %v4664
        %v4666 = vmul.f32 %v4585, 1.442695
        %v4667 = vpow.pop %v4666
        %v4668 = vmul.f32 %v4586, 1.442695
        %v4669 = vpow.pop %v4668
        %v4670 = vmul.f32 %v4587, 1.442695
        %v4671 = vpow.pop %v4670
        %v4672 = vmul.f32 %v4588, 1.442695
        %v4673 = vpow.pop %v4672
        %v4674 = vmul.f32 %v4589, 1.442695
        %v4675 = vpow.pop %v4674
        %v4676 = vmul.f32 %v4590, 1.442695
        %v4677 = vpow.pop %v4676
        %v4678 = vmul.f32 %v4591, 1.442695
        %v4679 = vpow.pop %v4678
        %v4680 = vmul.f32 %v4592, 1.442695
        %v4681 = vpow.pop %v4680
        %v4682 = vmul.f32 %v4593, 1.442695
        %v4683 = vpow.pop %v4682
        %v4684 = vmul.f32 %v4594, 1.442695
        %v4685 = vpow.pop %v4684
        %v4686 = vmul.f32 %v4595, 1.442695
        %v4687 = vpow.pop %v4686
        %v4688 = vmul.f32 %v4596, 1.442695
        %v4689 = vpow.pop %v4688
        %v4690 = vmul.f32 %v4597, 1.442695
        %v4691 = vpow.pop %v4690
        %v4692 = vmul.f32 %v4598, 1.442695
        %v4693 = vpow.pop %v4692
        %v4694 = vmul.f32 %v4599, 1.442695
        %v4695 = vpow.pop %v4694
        %v4696 = vmul.f32 %v4600, 1.442695
        %v4697 = vpow.pop %v4696
        %v4698 = vmul.f32 %v4601, 1.442695
        %v4699 = vpow.pop %v4698
        %v4700 = vmul.f32 %v4602, 1.442695
        %v4701 = vpow.pop %v4700
        %v4702 = vmul.f32 %v4603, 1.442695
        %v4703 = vpow.pop %v4702
        %v4704 = vmul.f32 %v4604, 1.442695
        %v4705 = vpow.pop %v4704
        %v4706 = vmul.f32 %v4605, 1.442695
        %v4707 = vpow.pop %v4706
        %v4708 = vmul.f32 %v4606, 1.442695
        %v4709 = vpow.pop %v4708
        %v4710 = vmul.f32 %v4607, 1.442695
        %v4711 = vpow.pop %v4710
        %v4712 = vmul.f32 %v4608, 1.442695
        %v4713 = vpow.pop %v4712
        %v4714 = vmul.f32 %v4609, 1.442695
        %v4715 = vpow.pop %v4714
        %v4716 = vmul.f32 %v4610, 1.442695
        %v4717 = vpow.pop %v4716
        %v4718 = vmul.f32 %v4611, 1.442695
        %v4719 = vpow.pop %v4718
        %v4720 = vmul.f32 %v4612, 1.442695
        %v4721 = vpow.pop %v4720
        %v4722 = vmul.f32 %v4613, 1.442695
        %v4723 = vpow.pop %v4722
        %v4724 = vmul.f32 %v4614, 1.442695
        %v4725 = vpow.pop %v4724
        %v4726 = vmul.f32 %v4615, 1.442695
        %v4727 = vpow.pop %v4726
        %v4728 = vmul.f32 %v4616, 1.442695
        %v4729 = vpow.pop %v4728
        %v4730 = vmul.f32 %v4617, 1.442695
        %v4731 = vpow.pop %v4730
        %v4732 = vmul.f32 %v4618, 1.442695
        %v4733 = vpow.pop %v4732
        %v4734 = vmul.f32 %v4619, 1.442695
        %v4735 = vpow.pop %v4734
        %v4736 = vmul.f32 %v4620, 1.442695
        %v4737 = vpow.pop %v4736
        %v4738 = vmul.f32 %v4621, 1.442695
        %v4739 = vpow.pop %v4738
        %v4740 = vmul.f32 %v4622, 1.442695
        %v4741 = vpow.pop %v4740
        %v4742 = vmul.f32 %v4623, 1.442695
        %v4743 = vpow.pop %v4742
        %v4744 = vmul.f32 %v4624, 1.442695
        %v4745 = vpow.pop %v4744
        %v4746 = vmul.f32 %v4625, 1.442695
        %v4747 = vpow.pop %v4746
        %v4748 = vmul.f32 %v4626, 1.442695
        %v4749 = vpow.pop %v4748
        %v4750 = vmul.f32 %v4627, 1.442695
        %v4751 = vpow.pop %v4750
        %v4752 = vmul.f32 %v4628, 1.442695
        %v4753 = vpow.pop %v4752
        %v4754 = vmul.f32 %v4629, 1.442695
        %v4755 = vpow.pop %v4754
        %v4756 = vmul.f32 %v4630, 1.442695
        %v4757 = vpow.pop %v4756
        %v4758 = vmul.f32 %v4631, 1.442695
        %v4759 = vpow.pop %v4758
        %4760 = vadd.xlane.f32.xlu0 %v4633
        %v4761 = vpop.xlane.xlu0 %4760
        %4762 = vadd.xlane.f32.xlu0 %v4635
        %v4763 = vpop.xlane.xlu0 %4762
        %4764 = vadd.xlane.f32.xlu0 %v4637
        %v4765 = vpop.xlane.xlu0 %4764
        %4766 = vadd.xlane.f32.xlu0 %v4639
        %v4767 = vpop.xlane.xlu0 %4766
        %4768 = vadd.xlane.f32.xlu0 %v4641
        %v4769 = vpop.xlane.xlu0 %4768
        %4770 = vadd.xlane.f32.xlu0 %v4643
        %v4771 = vpop.xlane.xlu0 %4770
        %4772 = vadd.xlane.f32.xlu0 %v4645
        %v4773 = vpop.xlane.xlu0 %4772
        %4774 = vadd.xlane.f32.xlu0 %v4647
        %v4775 = vpop.xlane.xlu0 %4774
        %4776 = vadd.xlane.f32.xlu0 %v4649
        %v4777 = vpop.xlane.xlu0 %4776
        %4778 = vadd.xlane.f32.xlu0 %v4651
        %v4779 = vpop.xlane.xlu0 %4778
        %4780 = vadd.xlane.f32.xlu0 %v4653
        %v4781 = vpop.xlane.xlu0 %4780
        %4782 = vadd.xlane.f32.xlu0 %v4655
        %v4783 = vpop.xlane.xlu0 %4782
        %4784 = vadd.xlane.f32.xlu0 %v4657
        %v4785 = vpop.xlane.xlu0 %4784
        %4786 = vadd.xlane.f32.xlu0 %v4659
        %v4787 = vpop.xlane.xlu0 %4786
        %4788 = vadd.xlane.f32.xlu0 %v4661
        %v4789 = vpop.xlane.xlu0 %4788
        %4790 = vadd.xlane.f32.xlu0 %v4663
        %v4791 = vpop.xlane.xlu0 %4790
        %4792 = vadd.xlane.f32.xlu0 %v4665
        %v4793 = vpop.xlane.xlu0 %4792
        %4794 = vadd.xlane.f32.xlu0 %v4667
        %v4795 = vpop.xlane.xlu0 %4794
        %4796 = vadd.xlane.f32.xlu0 %v4669
        %v4797 = vpop.xlane.xlu0 %4796
        %4798 = vadd.xlane.f32.xlu0 %v4671
        %v4799 = vpop.xlane.xlu0 %4798
        %4800 = vadd.xlane.f32.xlu0 %v4673
        %v4801 = vpop.xlane.xlu0 %4800
        %4802 = vadd.xlane.f32.xlu0 %v4675
        %v4803 = vpop.xlane.xlu0 %4802
        %4804 = vadd.xlane.f32.xlu0 %v4677
        %v4805 = vpop.xlane.xlu0 %4804
        %4806 = vadd.xlane.f32.xlu0 %v4679
        %v4807 = vpop.xlane.xlu0 %4806
        %4808 = vadd.xlane.f32.xlu0 %v4681
        %v4809 = vpop.xlane.xlu0 %4808
        %4810 = vadd.xlane.f32.xlu0 %v4683
        %v4811 = vpop.xlane.xlu0 %4810
        %4812 = vadd.xlane.f32.xlu0 %v4685
        %v4813 = vpop.xlane.xlu0 %4812
        %4814 = vadd.xlane.f32.xlu0 %v4687
        %v4815 = vpop.xlane.xlu0 %4814
        %4816 = vadd.xlane.f32.xlu0 %v4689
        %v4817 = vpop.xlane.xlu0 %4816
        %4818 = vadd.xlane.f32.xlu0 %v4691
        %v4819 = vpop.xlane.xlu0 %4818
        %4820 = vadd.xlane.f32.xlu0 %v4693
        %v4821 = vpop.xlane.xlu0 %4820
        %4822 = vadd.xlane.f32.xlu0 %v4695
        %v4823 = vpop.xlane.xlu0 %4822
        %4824 = vadd.xlane.f32.xlu0 %v4697
        %v4825 = vpop.xlane.xlu0 %4824
        %4826 = vadd.xlane.f32.xlu0 %v4699
        %v4827 = vpop.xlane.xlu0 %4826
        %4828 = vadd.xlane.f32.xlu0 %v4701
        %v4829 = vpop.xlane.xlu0 %4828
        %4830 = vadd.xlane.f32.xlu0 %v4703
        %v4831 = vpop.xlane.xlu0 %4830
        %4832 = vadd.xlane.f32.xlu0 %v4705
        %v4833 = vpop.xlane.xlu0 %4832
        %4834 = vadd.xlane.f32.xlu0 %v4707
        %v4835 = vpop.xlane.xlu0 %4834
        %4836 = vadd.xlane.f32.xlu0 %v4709
        %v4837 = vpop.xlane.xlu0 %4836
        %4838 = vadd.xlane.f32.xlu0 %v4711
        %v4839 = vpop.xlane.xlu0 %4838
        %4840 = vadd.xlane.f32.xlu0 %v4713
        %v4841 = vpop.xlane.xlu0 %4840
        %4842 = vadd.xlane.f32.xlu0 %v4715
        %v4843 = vpop.xlane.xlu0 %4842
        %4844 = vadd.xlane.f32.xlu0 %v4717
        %v4845 = vpop.xlane.xlu0 %4844
        %4846 = vadd.xlane.f32.xlu0 %v4719
        %v4847 = vpop.xlane.xlu0 %4846
        %4848 = vadd.xlane.f32.xlu0 %v4721
        %v4849 = vpop.xlane.xlu0 %4848
        %4850 = vadd.xlane.f32.xlu0 %v4723
        %v4851 = vpop.xlane.xlu0 %4850
        %4852 = vadd.xlane.f32.xlu0 %v4725
        %v4853 = vpop.xlane.xlu0 %4852
        %4854 = vadd.xlane.f32.xlu0 %v4727
        %v4855 = vpop.xlane.xlu0 %4854
        %4856 = vadd.xlane.f32.xlu0 %v4729
        %v4857 = vpop.xlane.xlu0 %4856
        %4858 = vadd.xlane.f32.xlu0 %v4731
        %v4859 = vpop.xlane.xlu0 %4858
        %4860 = vadd.xlane.f32.xlu0 %v4733
        %v4861 = vpop.xlane.xlu0 %4860
        %4862 = vadd.xlane.f32.xlu0 %v4735
        %v4863 = vpop.xlane.xlu0 %4862
        %4864 = vadd.xlane.f32.xlu0 %v4737
        %v4865 = vpop.xlane.xlu0 %4864
        %4866 = vadd.xlane.f32.xlu0 %v4739
        %v4867 = vpop.xlane.xlu0 %4866
        %4868 = vadd.xlane.f32.xlu0 %v4741
        %v4869 = vpop.xlane.xlu0 %4868
        %4870 = vadd.xlane.f32.xlu0 %v4743
        %v4871 = vpop.xlane.xlu0 %4870
        %4872 = vadd.xlane.f32.xlu0 %v4745
        %v4873 = vpop.xlane.xlu0 %4872
        %4874 = vadd.xlane.f32.xlu0 %v4747
        %v4875 = vpop.xlane.xlu0 %4874
        %4876 = vadd.xlane.f32.xlu0 %v4749
        %v4877 = vpop.xlane.xlu0 %4876
        %4878 = vadd.xlane.f32.xlu0 %v4751
        %v4879 = vpop.xlane.xlu0 %4878
        %4880 = vadd.xlane.f32.xlu0 %v4753
        %v4881 = vpop.xlane.xlu0 %4880
        %4882 = vadd.xlane.f32.xlu0 %v4755
        %v4883 = vpop.xlane.xlu0 %4882
        %4884 = vadd.xlane.f32.xlu0 %v4757
        %v4885 = vpop.xlane.xlu0 %4884
        %4886 = vadd.xlane.f32.xlu0 %v4759
        %v4887 = vpop.xlane.xlu0 %4886
        %v4888 = vlog2.pop %v4761
        %v4889 = vmul.f32 %v4888, 0.6931472
        %v4890 = vlog2.pop %v4763
        %v4891 = vmul.f32 %v4890, 0.6931472
        %v4892 = vlog2.pop %v4765
        %v4893 = vmul.f32 %v4892, 0.6931472
        %v4894 = vlog2.pop %v4767
        %v4895 = vmul.f32 %v4894, 0.6931472
        %v4896 = vlog2.pop %v4769
        %v4897 = vmul.f32 %v4896, 0.6931472
        %v4898 = vlog2.pop %v4771
        %v4899 = vmul.f32 %v4898, 0.6931472
        %v4900 = vlog2.pop %v4773
        %v4901 = vmul.f32 %v4900, 0.6931472
        %v4902 = vlog2.pop %v4775
        %v4903 = vmul.f32 %v4902, 0.6931472
        %v4904 = vlog2.pop %v4777
        %v4905 = vmul.f32 %v4904, 0.6931472
        %v4906 = vlog2.pop %v4779
        %v4907 = vmul.f32 %v4906, 0.6931472
        %v4908 = vlog2.pop %v4781
        %v4909 = vmul.f32 %v4908, 0.6931472
        %v4910 = vlog2.pop %v4783
        %v4911 = vmul.f32 %v4910, 0.6931472
        %v4912 = vlog2.pop %v4785
        %v4913 = vmul.f32 %v4912, 0.6931472
        %v4914 = vlog2.pop %v4787
        %v4915 = vmul.f32 %v4914, 0.6931472
        %v4916 = vlog2.pop %v4789
        %v4917 = vmul.f32 %v4916, 0.6931472
        %v4918 = vlog2.pop %v4791
        %v4919 = vmul.f32 %v4918, 0.6931472
        %v4920 = vlog2.pop %v4793
        %v4921 = vmul.f32 %v4920, 0.6931472
        %v4922 = vlog2.pop %v4795
        %v4923 = vmul.f32 %v4922, 0.6931472
        %v4924 = vlog2.pop %v4797
        %v4925 = vmul.f32 %v4924, 0.6931472
        %v4926 = vlog2.pop %v4799
        %v4927 = vmul.f32 %v4926, 0.6931472
        %v4928 = vlog2.pop %v4801
        %v4929 = vmul.f32 %v4928, 0.6931472
        %v4930 = vlog2.pop %v4803
        %v4931 = vmul.f32 %v4930, 0.6931472
        %v4932 = vlog2.pop %v4805
        %v4933 = vmul.f32 %v4932, 0.6931472
        %v4934 = vlog2.pop %v4807
        %v4935 = vmul.f32 %v4934, 0.6931472
        %v4936 = vlog2.pop %v4809
        %v4937 = vmul.f32 %v4936, 0.6931472
        %v4938 = vlog2.pop %v4811
        %v4939 = vmul.f32 %v4938, 0.6931472
        %v4940 = vlog2.pop %v4813
        %v4941 = vmul.f32 %v4940, 0.6931472
        %v4942 = vlog2.pop %v4815
        %v4943 = vmul.f32 %v4942, 0.6931472
        %v4944 = vlog2.pop %v4817
        %v4945 = vmul.f32 %v4944, 0.6931472
        %v4946 = vlog2.pop %v4819
        %v4947 = vmul.f32 %v4946, 0.6931472
        %v4948 = vlog2.pop %v4821
        %v4949 = vmul.f32 %v4948, 0.6931472
        %v4950 = vlog2.pop %v4823
        %v4951 = vmul.f32 %v4950, 0.6931472
        %v4952 = vlog2.pop %v4825
        %v4953 = vmul.f32 %v4952, 0.6931472
        %v4954 = vlog2.pop %v4827
        %v4955 = vmul.f32 %v4954, 0.6931472
        %v4956 = vlog2.pop %v4829
        %v4957 = vmul.f32 %v4956, 0.6931472
        %v4958 = vlog2.pop %v4831
        %v4959 = vmul.f32 %v4958, 0.6931472
        %v4960 = vlog2.pop %v4833
        %v4961 = vmul.f32 %v4960, 0.6931472
        %v4962 = vlog2.pop %v4835
        %v4963 = vmul.f32 %v4962, 0.6931472
        %v4964 = vlog2.pop %v4837
        %v4965 = vmul.f32 %v4964, 0.6931472
        %v4966 = vlog2.pop %v4839
        %v4967 = vmul.f32 %v4966, 0.6931472
        %v4968 = vlog2.pop %v4841
        %v4969 = vmul.f32 %v4968, 0.6931472
        %v4970 = vlog2.pop %v4843
        %v4971 = vmul.f32 %v4970, 0.6931472
        %v4972 = vlog2.pop %v4845
        %v4973 = vmul.f32 %v4972, 0.6931472
        %v4974 = vlog2.pop %v4847
        %v4975 = vmul.f32 %v4974, 0.6931472
        %v4976 = vlog2.pop %v4849
        %v4977 = vmul.f32 %v4976, 0.6931472
        %v4978 = vlog2.pop %v4851
        %v4979 = vmul.f32 %v4978, 0.6931472
        %v4980 = vlog2.pop %v4853
        %v4981 = vmul.f32 %v4980, 0.6931472
        %v4982 = vlog2.pop %v4855
        %v4983 = vmul.f32 %v4982, 0.6931472
        %v4984 = vlog2.pop %v4857
        %v4985 = vmul.f32 %v4984, 0.6931472
        %v4986 = vlog2.pop %v4859
        %v4987 = vmul.f32 %v4986, 0.6931472
        %v4988 = vlog2.pop %v4861
        %v4989 = vmul.f32 %v4988, 0.6931472
        %v4990 = vlog2.pop %v4863
        %v4991 = vmul.f32 %v4990, 0.6931472
        %v4992 = vlog2.pop %v4865
        %v4993 = vmul.f32 %v4992, 0.6931472
        %v4994 = vlog2.pop %v4867
        %v4995 = vmul.f32 %v4994, 0.6931472
        %v4996 = vlog2.pop %v4869
        %v4997 = vmul.f32 %v4996, 0.6931472
        %v4998 = vlog2.pop %v4871
        %v4999 = vmul.f32 %v4998, 0.6931472
        %v5000 = vlog2.pop %v4873
        %v5001 = vmul.f32 %v5000, 0.6931472
        %v5002 = vlog2.pop %v4875
        %v5003 = vmul.f32 %v5002, 0.6931472
        %v5004 = vlog2.pop %v4877
        %v5005 = vmul.f32 %v5004, 0.6931472
        %v5006 = vlog2.pop %v4879
        %v5007 = vmul.f32 %v5006, 0.6931472
        %v5008 = vlog2.pop %v4881
        %v5009 = vmul.f32 %v5008, 0.6931472
        %v5010 = vlog2.pop %v4883
        %v5011 = vmul.f32 %v5010, 0.6931472
        %v5012 = vlog2.pop %v4885
        %v5013 = vmul.f32 %v5012, 0.6931472
        %v5014 = vlog2.pop %v4887
        %v5015 = vmul.f32 %v5014, 0.6931472
        %v5016 = vsub.f32 %v4568, %v4889
        %v5017 = vsub.f32 %v4569, %v4891
        %v5018 = vsub.f32 %v4570, %v4893
        %v5019 = vsub.f32 %v4571, %v4895
        %v5020 = vsub.f32 %v4572, %v4897
        %v5021 = vsub.f32 %v4573, %v4899
        %v5022 = vsub.f32 %v4574, %v4901
        %v5023 = vsub.f32 %v4575, %v4903
        %v5024 = vsub.f32 %v4576, %v4905
        %v5025 = vsub.f32 %v4577, %v4907
        %v5026 = vsub.f32 %v4578, %v4909
        %v5027 = vsub.f32 %v4579, %v4911
        %v5028 = vsub.f32 %v4580, %v4913
        %v5029 = vsub.f32 %v4581, %v4915
        %v5030 = vsub.f32 %v4582, %v4917
        %v5031 = vsub.f32 %v4583, %v4919
        %v5032 = vsub.f32 %v4584, %v4921
        %v5033 = vsub.f32 %v4585, %v4923
        %v5034 = vsub.f32 %v4586, %v4925
        %v5035 = vsub.f32 %v4587, %v4927
        %v5036 = vsub.f32 %v4588, %v4929
        %v5037 = vsub.f32 %v4589, %v4931
        %v5038 = vsub.f32 %v4590, %v4933
        %v5039 = vsub.f32 %v4591, %v4935
        %v5040 = vsub.f32 %v4592, %v4937
        %v5041 = vsub.f32 %v4593, %v4939
        %v5042 = vsub.f32 %v4594, %v4941
        %v5043 = vsub.f32 %v4595, %v4943
        %v5044 = vsub.f32 %v4596, %v4945
        %v5045 = vsub.f32 %v4597, %v4947
        %v5046 = vsub.f32 %v4598, %v4949
        %v5047 = vsub.f32 %v4599, %v4951
        %v5048 = vsub.f32 %v4600, %v4953
        %v5049 = vsub.f32 %v4601, %v4955
        %v5050 = vsub.f32 %v4602, %v4957
        %v5051 = vsub.f32 %v4603, %v4959
        %v5052 = vsub.f32 %v4604, %v4961
        %v5053 = vsub.f32 %v4605, %v4963
        %v5054 = vsub.f32 %v4606, %v4965
        %v5055 = vsub.f32 %v4607, %v4967
        %v5056 = vsub.f32 %v4608, %v4969
        %v5057 = vsub.f32 %v4609, %v4971
        %v5058 = vsub.f32 %v4610, %v4973
        %v5059 = vsub.f32 %v4611, %v4975
        %v5060 = vsub.f32 %v4612, %v4977
        %v5061 = vsub.f32 %v4613, %v4979
        %v5062 = vsub.f32 %v4614, %v4981
        %v5063 = vsub.f32 %v4615, %v4983
        %v5064 = vsub.f32 %v4616, %v4985
        %v5065 = vsub.f32 %v4617, %v4987
        %v5066 = vsub.f32 %v4618, %v4989
        %v5067 = vsub.f32 %v4619, %v4991
        %v5068 = vsub.f32 %v4620, %v4993
        %v5069 = vsub.f32 %v4621, %v4995
        %v5070 = vsub.f32 %v4622, %v4997
        %v5071 = vsub.f32 %v4623, %v4999
        %v5072 = vsub.f32 %v4624, %v5001
        %v5073 = vsub.f32 %v4625, %v5003
        %v5074 = vsub.f32 %v4626, %v5005
        %v5075 = vsub.f32 %v4627, %v5007
        %v5076 = vsub.f32 %v4628, %v5009
        %v5077 = vsub.f32 %v4629, %v5011
        %v5078 = vsub.f32 %v4630, %v5013
        %v5079 = vsub.f32 %v4631, %v5015
        %5080 = vst [vmem:[%s408] sm:$0xff] %v5016
        %5081 = vst [vmem:[%s408 + $0x8] sm:$0xff] %v5017
        %5082 = vst [vmem:[%s408 + $0x10] sm:$0xff] %v5018
        %5083 = vst [vmem:[%s408 + $0x18] sm:$0xff] %v5019
        %5084 = vst [vmem:[%s408 + $0x20] sm:$0xff] %v5020
        %5085 = vst [vmem:[%s408 + $0x28] sm:$0xff] %v5021
        %5086 = vst [vmem:[%s408 + $0x30] sm:$0xff] %v5022
        %5087 = vst [vmem:[%s408 + $0x38] sm:$0xff] %v5023
        %5088 = vst [vmem:[%s408 + $0x40] sm:$0xff] %v5024
        %5089 = vst [vmem:[%s408 + $0x48] sm:$0xff] %v5025
        %5090 = vst [vmem:[%s408 + $0x50] sm:$0xff] %v5026
        %5091 = vst [vmem:[%s408 + $0x58] sm:$0xff] %v5027
        %5092 = vst [vmem:[%s408 + $0x60] sm:$0xff] %v5028
        %5093 = vst [vmem:[%s408 + $0x68] sm:$0xff] %v5029
        %5094 = vst [vmem:[%s408 + $0x70] sm:$0xff] %v5030
        %5095 = vst [vmem:[%s408 + $0x78] sm:$0xff] %v5031
        %5096 = vst [vmem:[%s408 + $0x80] sm:$0xff] %v5032
        %5097 = vst [vmem:[%s408 + $0x88] sm:$0xff] %v5033
        %5098 = vst [vmem:[%s408 + $0x90] sm:$0xff] %v5034
        %5099 = vst [vmem:[%s408 + $0x98] sm:$0xff] %v5035
        %5100 = vst [vmem:[%s408 + $0xa0] sm:$0xff] %v5036
        %5101 = vst [vmem:[%s408 + $0xa8] sm:$0xff] %v5037
        %5102 = vst [vmem:[%s408 + $0xb0] sm:$0xff] %v5038
        %5103 = vst [vmem:[%s408 + $0xb8] sm:$0xff] %v5039
        %5104 = vst [vmem:[%s408 + $0xc0] sm:$0xff] %v5040
        %5105 = vst [vmem:[%s408 + $0xc8] sm:$0xff] %v5041
        %5106 = vst [vmem:[%s408 + $0xd0] sm:$0xff] %v5042
        %5107 = vst [vmem:[%s408 + $0xd8] sm:$0xff] %v5043
        %5108 = vst [vmem:[%s408 + $0xe0] sm:$0xff] %v5044
        %5109 = vst [vmem:[%s408 + $0xe8] sm:$0xff] %v5045
        %5110 = vst [vmem:[%s408 + $0xf0] sm:$0xff] %v5046
        %5111 = vst [vmem:[%s408 + $0xf8] sm:$0xff] %v5047
        %5112 = vst [vmem:[%s408 + $0x100] sm:$0xff] %v5048
        %5113 = vst [vmem:[%s408 + $0x108] sm:$0xff] %v5049
        %5114 = vst [vmem:[%s408 + $0x110] sm:$0xff] %v5050
        %5115 = vst [vmem:[%s408 + $0x118] sm:$0xff] %v5051
        %5116 = vst [vmem:[%s408 + $0x120] sm:$0xff] %v5052
        %5117 = vst [vmem:[%s408 + $0x128] sm:$0xff] %v5053
        %5118 = vst [vmem:[%s408 + $0x130] sm:$0xff] %v5054
        %5119 = vst [vmem:[%s408 + $0x138] sm:$0xff] %v5055
        %5120 = vst [vmem:[%s408 + $0x140] sm:$0xff] %v5056
        %5121 = vst [vmem:[%s408 + $0x148] sm:$0xff] %v5057
        %5122 = vst [vmem:[%s408 + $0x150] sm:$0xff] %v5058
        %5123 = vst [vmem:[%s408 + $0x158] sm:$0xff] %v5059
        %5124 = vst [vmem:[%s408 + $0x160] sm:$0xff] %v5060
        %5125 = vst [vmem:[%s408 + $0x168] sm:$0xff] %v5061
        %5126 = vst [vmem:[%s408 + $0x170] sm:$0xff] %v5062
        %5127 = vst [vmem:[%s408 + $0x178] sm:$0xff] %v5063
        %5128 = vst [vmem:[%s408 + $0x180] sm:$0xff] %v5064
        %5129 = vst [vmem:[%s408 + $0x188] sm:$0xff] %v5065
        %5130 = vst [vmem:[%s408 + $0x190] sm:$0xff] %v5066
        %5131 = vst [vmem:[%s408 + $0x198] sm:$0xff] %v5067
        %5132 = vst [vmem:[%s408 + $0x1a0] sm:$0xff] %v5068
        %5133 = vst [vmem:[%s408 + $0x1a8] sm:$0xff] %v5069
        %5134 = vst [vmem:[%s408 + $0x1b0] sm:$0xff] %v5070
        %5135 = vst [vmem:[%s408 + $0x1b8] sm:$0xff] %v5071
        %5136 = vst [vmem:[%s408 + $0x1c0] sm:$0xff] %v5072
        %5137 = vst [vmem:[%s408 + $0x1c8] sm:$0xff] %v5073
        %5138 = vst [vmem:[%s408 + $0x1d0] sm:$0xff] %v5074
        %5139 = vst [vmem:[%s408 + $0x1d8] sm:$0xff] %v5075
        %5140 = vst [vmem:[%s408 + $0x1e0] sm:$0xff] %v5076
        %5141 = vst [vmem:[%s408 + $0x1e8] sm:$0xff] %v5077
        %5142 = vst [vmem:[%s408 + $0x1f0] sm:$0xff] %v5078
        %5143 = vst [vmem:[%s408 + $0x1f8] sm:$0xff] %v5079
        %s5144 = sand.u32 %s215, 1
        %s5145 = scalar_lea.sflag [#allocation4], %s5144
        %s5146 = sand.u32 %s215, 1
        %s5147 = smul.addr %s5146, 512
        %s5148 = scalar_lea.vmem [#allocation11], %s5147
        // Predicated region
        $region73: #{tpu_custom_call.1} parent=51 // pred_check
          %p5149 = pneg %p225
        $region74: #{tpu_custom_call.1} parent=51 // pred_check_branch
          %5151 = sbr.rel (%p5149) target = $region76
        $region75: #{tpu_custom_call.1} parent=51 // pred_region
          %s5152 = smul.u32 4, %s29
          %s5154 = ssub.s32 8192, 8192
          %5155 = vsyncadd %s5145, %s5154
          %s5156 = smul.addr %s5152, 16
          %s5157 = smul.addr %s5156, 128
          %s5158 = scalar_lea.hbm %s8, %s5157
          %s5159 = sshll.u32 %s5148, 4
          %s5160 = int_to_ptr.vmem [resolvable:$true] %s5159
          %5165 = dma.vmem_to_hbm [thread:$0]  %s5160, 8192, %s5158, %s5145, 128, 128, 8
        $region76: #{tpu_custom_call.1} parent=51 // pred_fallthru
          _
      $region52: #{tpu_custom_call.1} parent=5 // pred_fallthru
        _
      %p5166 = scmp.le.s32.totalorder 2, %s24
      // Predicated region
      $region77: #{tpu_custom_call.1} parent=5 // pred_check
        %p5167 = pneg %p5166
      $region78: #{tpu_custom_call.1} parent=5 // pred_check_branch
        %5169 = sbr.rel (%p5167) target = $region80
      $region79: #{tpu_custom_call.1} parent=5 // pred_region
        %s5170 = ssub.s32 %s24, 2
        // Predicated region
        $region81: #{tpu_custom_call.1} parent=79 // pred_check
          %p5171 = pneg %p231
        $region82: #{tpu_custom_call.1} parent=79 // pred_check_branch
          %5173 = sbr.rel (%p5171) target = $region84
        $region83: #{tpu_custom_call.1} parent=79 // pred_region
          %s5174 = sand.u32 %s216, 1
          %s5175 = scalar_lea.sflag [#allocation4], %s5174
          %s5176 = sand.u32 %s216, 1
          %s5177 = smul.addr %s5176, 512
          %s5178 = scalar_lea.vmem [#allocation11], %s5177
          %5179 = dma.done %s5175, 8192
        $region84: #{tpu_custom_call.1} parent=79 // pred_fallthru
          _
      $region80: #{tpu_custom_call.1} parent=5 // pred_fallthru
        _
    $region6: #{tpu_custom_call.1} parent=1 // loop_footer
      %s28 = sadd.s32 1, %s24
    $region7: #{tpu_custom_call.1} parent=1 // loop_footer_branch
      %23 = sbr.rel target = $region3
    $region8: #{tpu_custom_call.1} parent=1 // loop_exit
      _
    %5180 = vsyncpa [#allocation3], 1
    %s5181 = scalar_lea.sflag [#allocation3], 1
    %5182 = vsyncpa %s5181, 1
    %5183 = vsyncpa [#allocation6], 1
    %s5184 = scalar_lea.sflag [#allocation6], 1
    %5185 = vsyncpa %s5184, 1
    %5186 = vsyncpa [#allocation9], 1
    %5187 = vsyncpa [#allocation4], 1
    %s5188 = scalar_lea.sflag [#allocation4], 1
    %5189 = vsyncpa %s5188, 1

</llo_original>
